<compile_context>
chip_gen: v7x
topology: tpu7x:2x2x1
jax: 0.10.0
libtpu: 0.0.40
codegen_flags: <defaults>
</compile_context>

<pallas_src>
import jax
import jax.numpy as jnp
from jax import lax
from jax.experimental import pallas as pl
from jax.experimental.pallas import tpu as pltpu

LOG_SIG_MAX = 2.0
LOG_SIG_MIN = -20.0


# ----------------------------------------------------------------------------
# Fused kernel: LSTM stack + actor head, single invocation, no grid.
# ----------------------------------------------------------------------------
def make_fused_kernel(num_layers, T, B_pad, H, out_dim):
    H4 = 4 * H

    def kernel(*refs):
        idx = 0
        x1_ref = refs[idx]; idx += 1          # (T, B_pad, D)   time-major
        x2_ref = refs[idx]; idx += 1          # (B_pad, D-1)
        lstm_refs = []
        for _ in range(num_layers):
            lstm_refs.append((refs[idx], refs[idx + 1], refs[idx + 2]))
            idx += 3                           # wx (D_l,4H), wh (H,4H), b (1,4H)
        (w0t_ref, b0_ref, w1at_ref, w1bt_ref, b1_ref,
         whead_ref, bhead_ref) = refs[idx:idx + 7]
        idx += 7
        out_ref = refs[idx]; idx += 1          # (B_pad, 2*out_dim)
        gx_sc = refs[idx]; idx += 1            # (T, B_pad, 4H) gate-packed input proj
        hseq_sc = refs[idx]; idx += 1          # (T, B_pad, H) prev-layer hidden seq

        f32 = jnp.float32

        # ---------------- LSTM stack (PyTorch gate order i, f, g, o along 4H) -
        h_last = None
        layer_in = x1_ref[...].reshape(T * B_pad, -1)       # (T*B, D); B_pad % 8 == 0

        for l in range(num_layers):
            wx_ref, wh_ref, b_ref = lstm_refs[l]

            # (1) Input projection for ALL timesteps in ONE lane-dense matmul:
            #     (T*B, D) @ (D, 4H=128) + bias  ->  gx_sc (T, B, 4H).
            gx = (jnp.dot(layer_in, wx_ref[...], preferred_element_type=f32)
                  + b_ref[...])                              # (T*B, 4H)
            gx_sc[...] = gx.reshape(T, B_pad, H4)

            wh = wh_ref[...]                                 # (H, 4H) hoisted once
            is_last_layer = (l == num_layers - 1)

            # (2) Serial recurrence: one lane-dense (B,H)@(H,4H) matmul per step,
            #     slab sigmoid + slab tanh (2 EUP pushes), static lane slices.
            def step(t, carry, wh=wh, write=not is_last_layer):
                h, c = carry
                pre = gx_sc[t] + jnp.dot(h, wh, preferred_element_type=f32)  # (B,4H)
                sig = jax.nn.sigmoid(pre)
                th = jnp.tanh(pre)
                i_g = sig[:, 0:H]
                f_g = sig[:, H:2 * H]
                g_g = th[:, 2 * H:3 * H]
                o_g = sig[:, 3 * H:4 * H]
                c_new = f_g * c + i_g * g_g
                h_new = o_g * jnp.tanh(c_new)
                if write:                                    # only non-last layers
                    hseq_sc[t] = h_new
                return h_new, c_new

            h0 = jnp.zeros((B_pad, H), f32)
            c0 = jnp.zeros((B_pad, H), f32)
            h_last, _c_last = lax.fori_loop(0, T, step, (h0, c0), unroll=True)

            if not is_last_layer:
                layer_in = hseq_sc[...].reshape(T * B_pad, H)

        # ---------------- Actor head (mean / log_std fused into one matmul) ---
        h00 = jnp.maximum(
            jnp.dot(x2_ref[...], w0t_ref[...], preferred_element_type=f32)
            + b0_ref[...], 0.0)                              # relu(fc0(x2))
        # cat([rnn_out, h00]) @ W1.T  ==  rnn_out @ W1[:, :H].T + h00 @ W1[:, H:].T
        prob = jnp.maximum(
            jnp.dot(h_last, w1at_ref[...], preferred_element_type=f32)
            + jnp.dot(h00, w1bt_ref[...], preferred_element_type=f32)
            + b1_ref[...], 0.0)
        head = (jnp.dot(prob, whead_ref[...], preferred_element_type=f32)
                + bhead_ref[...])                            # (B, 2*out) = [mean | log_std]
        lane = lax.broadcasted_iota(jnp.int32, (B_pad, 2 * out_dim), 1)
        out_ref[...] = jnp.where(lane >= out_dim,
                                 jnp.clip(head, LOG_SIG_MIN, LOG_SIG_MAX),
                                 head)

    return kernel


def _full_spec(a):
    n = a.ndim
    return pl.BlockSpec(a.shape, lambda: (0,) * n)


# ----------------------------------------------------------------------------
# Full forward (actor=True, rnn=True)
# ----------------------------------------------------------------------------
@jax.jit
def network_forward(x1, x2, params):
    # x1: (B, T, input_size) batch-first; x2: (B, input_size - 1)
    B, T, D = x1.shape
    H = params["lstm"][0]["wh"].shape[0]
    out2 = params["bhead"].shape[-1]
    out_dim = out2 // 2
    L = len(params["lstm"])

    # Pad batch to a multiple of 8 (sublane width) so all tiles are row-dense.
    pad_b = (-B) % 8
    if pad_b:
        x1_p = jnp.pad(x1, ((0, pad_b), (0, 0), (0, 0)))
        x2_p = jnp.pad(x2, ((0, pad_b), (0, 0)))
    else:
        x1_p, x2_p = x1, x2
    B_pad = B + pad_b

    x1_tm = jnp.transpose(x1_p, (1, 0, 2))     # time-major (T, B_pad, D); tiny

    args = [x1_tm, x2_p]
    for layer in params["lstm"]:
        args += [layer["wx"], layer["wh"], layer["b"]]
    args += [params["w0t"], params["b0"],
             params["w1at"], params["w1bt"], params["b1"],
             params["whead"], params["bhead"]]

    kernel = make_fused_kernel(L, T, B_pad, H, out_dim)

    out = pl.pallas_call(
        kernel,
        out_shape=jax.ShapeDtypeStruct((B_pad, out2), jnp.float32),
        in_specs=[_full_spec(a) for a in args],
        out_specs=pl.BlockSpec((B_pad, out2), lambda: (0, 0)),
        scratch_shapes=[
            pltpu.VMEM((T, B_pad, 4 * H), jnp.float32),   # gate-packed input proj
            pltpu.VMEM((T, B_pad, H), jnp.float32),       # prev-layer hidden seq
        ],
    )(*args)

    mean = out[:B, :out_dim]
    log_std = out[:B, out_dim:]
    return mean, log_std


# ----------------------------------------------------------------------------
# Parameter construction.  Matches the module after reset_parameters():
#   - LSTM weights/biases ~ U(-1/sqrt(H), 1/sqrt(H))   (PyTorch LSTM default)
#   - Linear weights ~ U(+-1/sqrt(out_features))       (hidden_init uses weight.size(0))
#   - Linear biases  ~ U(+-1/sqrt(in_features))        (nn.Linear default, not reset)
# Gate weights are packed along the lane dim: wx (D, 4H), wh (H, 4H), b (1, 4H),
# with gate order i, f, g, o along the 4H axis (PyTorch order).
# ----------------------------------------------------------------------------
def init_params(key, input_size, hidden_in_dim, output_dim,
                rnn_num_layers, rnn_hidden_size):
    H = rnn_hidden_size

    def unif(k, shape, lim):
        return jax.random.uniform(k, shape, jnp.float32, -lim, lim)

    keys = iter(jax.random.split(key, 64))
    lstm_layers = []
    lim_l = 1.0 / jnp.sqrt(H)
    for l in range(rnn_num_layers):
        d_in = input_size if l == 0 else H
        wih = unif(next(keys), (4 * H, d_in), lim_l)     # (4H, D) gate order i,f,g,o
        whh = unif(next(keys), (4 * H, H), lim_l)
        bih = unif(next(keys), (4 * H,), lim_l)
        bhh = unif(next(keys), (4 * H,), lim_l)
        lstm_layers.append(dict(
            wx=wih.T,                                    # (D, 4H)
            wh=whh.T,                                    # (H, 4H)
            b=(bih + bhh).reshape(1, 4 * H),             # (1, 4H)
        ))

    w0 = unif(next(keys), (H, input_size - 1), 1.0 / jnp.sqrt(H))
    b0 = unif(next(keys), (H,), 1.0 / jnp.sqrt(input_size - 1))
    w1 = unif(next(keys), (hidden_in_dim, 2 * H), 1.0 / jnp.sqrt(hidden_in_dim))
    b1 = unif(next(keys), (hidden_in_dim,), 1.0 / jnp.sqrt(2 * H))
    wmu = unif(next(keys), (output_dim, hidden_in_dim), 1.0 / jnp.sqrt(output_dim))
    bmu = unif(next(keys), (output_dim,), 1.0 / jnp.sqrt(hidden_in_dim))
    ws = unif(next(keys), (output_dim, hidden_in_dim), 1.0 / jnp.sqrt(output_dim))
    bs = unif(next(keys), (output_dim,), 1.0 / jnp.sqrt(hidden_in_dim))

    return dict(
        lstm=lstm_layers,
        w0t=w0.T, b0=b0.reshape(1, -1),
        w1at=w1[:, :H].T,                     # (H, hidden_in) for rnn_out part
        w1bt=w1[:, H:].T,                     # (H, hidden_in) for h00 part
        b1=b1.reshape(1, -1),
        whead=jnp.concatenate([wmu.T, ws.T], axis=1),          # (hidden_in, 2*out)
        bhead=jnp.concatenate([bmu, bs]).reshape(1, -1),        # (1, 2*out)
    )


if __name__ == "__main__":
    # Small shapes consistent with the module's forward.
    B, T = 2, 8
    input_size = 8            # feature dim of x1 sequence
    hidden_in_dim = 32
    output_dim = 4
    rnn_num_layers = 2
    rnn_hidden_size = 32

    key = jax.random.PRNGKey(0)
    kp, kx1, kx2 = jax.random.split(key, 3)

    params = init_params(kp, input_size, hidden_in_dim, output_dim,
                         rnn_num_layers, rnn_hidden_size)
    x1 = jax.random.normal(kx1, (B, T, input_size), jnp.float32)
    x2 = jax.random.normal(kx2, (B, input_size - 1), jnp.float32)

    mean, log_std = network_forward(x1, x2, params)
    mean, log_std = jax.block_until_ready((mean, log_std))

    assert mean.shape == (B, output_dim)
    assert log_std.shape == (B, output_dim)
    assert bool(jnp.all(jnp.isfinite(mean)))
    assert bool(jnp.all(jnp.isfinite(log_std)))
    assert bool(jnp.all(log_std >= LOG_SIG_MIN)) and bool(jnp.all(log_std <= LOG_SIG_MAX))

    # TODO(synk): critic branch (actor=False twin Q heads) and sample_normal
    # (rsample / log_prob) are not part of this kernel; actor forward only.
    print("KERNEL_OK")
</pallas_src>

<mosaic_0001>
module attributes {stable_mosaic.version = 11 : i64} {
  func.func @kernel(%arg0: memref<8x8x8xf32, #tpu.memory_space<vmem>>, %arg1: memref<8x7xf32, #tpu.memory_space<vmem>>, %arg2: memref<8x128xf32, #tpu.memory_space<vmem>>, %arg3: memref<32x128xf32, #tpu.memory_space<vmem>>, %arg4: memref<1x128xf32, #tpu.memory_space<vmem>>, %arg5: memref<32x128xf32, #tpu.memory_space<vmem>>, %arg6: memref<32x128xf32, #tpu.memory_space<vmem>>, %arg7: memref<1x128xf32, #tpu.memory_space<vmem>>, %arg8: memref<7x32xf32, #tpu.memory_space<vmem>>, %arg9: memref<1x32xf32, #tpu.memory_space<vmem>>, %arg10: memref<32x32xf32, #tpu.memory_space<vmem>>, %arg11: memref<32x32xf32, #tpu.memory_space<vmem>>, %arg12: memref<1x32xf32, #tpu.memory_space<vmem>>, %arg13: memref<32x8xf32, #tpu.memory_space<vmem>>, %arg14: memref<1x8xf32, #tpu.memory_space<vmem>>, %arg15: memref<8x8xf32, #tpu.memory_space<vmem>>, %arg16: memref<8x8x128xf32, #tpu.memory_space<vmem>>, %arg17: memref<8x8x32xf32, #tpu.memory_space<vmem>>) attributes {dimension_semantics = [], scalar_prefetch = 0 : i64, scratch_operands = 2 : i64, tpu.core_type = #tpu.core_type<tc>} {
    %c0 = arith.constant 0 : index
    %c0_0 = arith.constant 0 : index
    %c0_1 = arith.constant 0 : index
    %0 = vector.load %arg0[%c0, %c0_0, %c0_1] : memref<8x8x8xf32, #tpu.memory_space<vmem>>, vector<8x8x8xf32>
    %1 = vector.shape_cast %0 : vector<8x8x8xf32> to vector<64x8xf32>
    %c0_2 = arith.constant 0 : index
    %c0_3 = arith.constant 0 : index
    %2 = vector.load %arg2[%c0_2, %c0_3] : memref<8x128xf32, #tpu.memory_space<vmem>>, vector<8x128xf32>
    %cst = arith.constant dense<0.000000e+00> : vector<64x128xf32>
    %3 = tpu.matmul %1, %2, %cst {dimension_numbers = #tpu.dot_dimension_numbers<[1], [0], [0], [1], [0, 0, 1, 1], [], []>} : vector<64x8xf32>, vector<8x128xf32>, vector<64x128xf32> -> vector<64x128xf32>
    %c0_4 = arith.constant 0 : index
    %c0_5 = arith.constant 0 : index
    %4 = vector.load %arg4[%c0_4, %c0_5] : memref<1x128xf32, #tpu.memory_space<vmem>>, vector<1x128xf32>
    %5 = vector.broadcast %4 : vector<1x128xf32> to vector<64x128xf32>
    %6 = arith.addf %3, %5 : vector<64x128xf32>
    %7 = vector.shape_cast %6 : vector<64x128xf32> to vector<8x8x128xf32>
    %c0_6 = arith.constant 0 : index
    %c0_7 = arith.constant 0 : index
    %c0_8 = arith.constant 0 : index
    %8 = vector.load %arg16[%c0_6, %c0_7, %c0_8] : memref<8x8x128xf32, #tpu.memory_space<vmem>>, vector<8x8x128xf32>
    tpu.vector_store %arg16[%c0_6, %c0_7, %c0_8], %7 {strides = array<i32>} : memref<8x8x128xf32, #tpu.memory_space<vmem>>, vector<8x8x128xf32>,
    %c0_9 = arith.constant 0 : index
    %c0_10 = arith.constant 0 : index
    %9 = vector.load %arg3[%c0_9, %c0_10] : memref<32x128xf32, #tpu.memory_space<vmem>>, vector<32x128xf32>
    %cst_11 = arith.constant 0.000000e+00 : f32
    %10 = vector.broadcast %cst_11 : f32 to vector<8x32xf32>
    %cst_12 = arith.constant 0.000000e+00 : f32
    %11 = vector.broadcast %cst_12 : f32 to vector<8x32xf32>
    %c0_i32 = arith.constant 0 : i32
    %12 = arith.index_cast %c0_i32 : i32 to index
    %c0_13 = arith.constant 0 : index
    %c0_14 = arith.constant 0 : index
    %13 = vector.load %arg16[%12, %c0_13, %c0_14] : memref<8x8x128xf32, #tpu.memory_space<vmem>>, vector<1x8x128xf32>
    %14 = vector.shape_cast %13 : vector<1x8x128xf32> to vector<8x128xf32>
    %cst_15 = arith.constant dense<0.000000e+00> : vector<8x128xf32>
    %15 = tpu.matmul %10, %9, %cst_15 {dimension_numbers = #tpu.dot_dimension_numbers<[1], [0], [0], [1], [0, 0, 1, 1], [], []>} : vector<8x32xf32>, vector<32x128xf32>, vector<8x128xf32> -> vector<8x128xf32>
    %16 = arith.addf %14, %15 : vector<8x128xf32>
    %17 = arith.negf %16 : vector<8x128xf32>
    %18 = math.exp %17 : vector<8x128xf32>
    %cst_16 = arith.constant 1.000000e+00 : f32
    %19 = vector.broadcast %cst_16 : f32 to vector<8x128xf32>
    %20 = arith.addf %19, %18 : vector<8x128xf32>
    %21 = arith.divf %19, %20 : vector<8x128xf32>
    %22 = math.tanh %16 : vector<8x128xf32>
    %23 = vector.extract_strided_slice %21 {offsets = [0, 0], sizes = [8, 32], strides = [1, 1]} : vector<8x128xf32> to vector<8x32xf32>
    %24 = vector.extract_strided_slice %21 {offsets = [0, 32], sizes = [8, 32], strides = [1, 1]} : vector<8x128xf32> to vector<8x32xf32>
    %25 = vector.extract_strided_slice %22 {offsets = [0, 64], sizes = [8, 32], strides = [1, 1]} : vector<8x128xf32> to vector<8x32xf32>
    %26 = vector.extract_strided_slice %21 {offsets = [0, 96], sizes = [8, 32], strides = [1, 1]} : vector<8x128xf32> to vector<8x32xf32>
    %27 = arith.mulf %24, %11 : vector<8x32xf32>
    %28 = arith.mulf %23, %25 : vector<8x32xf32>
    %29 = arith.addf %27, %28 : vector<8x32xf32>
    %30 = math.tanh %29 : vector<8x32xf32>
    %31 = arith.mulf %26, %30 : vector<8x32xf32>
    %32 = arith.index_cast %c0_i32 : i32 to index
    %c0_17 = arith.constant 0 : index
    %c0_18 = arith.constant 0 : index
    %33 = vector.load %arg17[%32, %c0_17, %c0_18] : memref<8x8x32xf32, #tpu.memory_space<vmem>>, vector<1x8x32xf32>
    %34 = vector.shape_cast %33 : vector<1x8x32xf32> to vector<8x32xf32>
    %35 = vector.shape_cast %31 : vector<8x32xf32> to vector<1x8x32xf32>
    tpu.vector_store %arg17[%32, %c0_17, %c0_18], %35 {strides = array<i32>} : memref<8x8x32xf32, #tpu.memory_space<vmem>>, vector<1x8x32xf32>,
    %c1_i32 = arith.constant 1 : i32
    %36 = arith.index_cast %c1_i32 : i32 to index
    %c0_19 = arith.constant 0 : index
    %c0_20 = arith.constant 0 : index
    %37 = vector.load %arg16[%36, %c0_19, %c0_20] : memref<8x8x128xf32, #tpu.memory_space<vmem>>, vector<1x8x128xf32>
    %38 = vector.shape_cast %37 : vector<1x8x128xf32> to vector<8x128xf32>
    %cst_21 = arith.constant dense<0.000000e+00> : vector<8x128xf32>
    %39 = tpu.matmul %31, %9, %cst_21 {dimension_numbers = #tpu.dot_dimension_numbers<[1], [0], [0], [1], [0, 0, 1, 1], [], []>} : vector<8x32xf32>, vector<32x128xf32>, vector<8x128xf32> -> vector<8x128xf32>
    %40 = arith.addf %38, %39 : vector<8x128xf32>
    %41 = arith.negf %40 : vector<8x128xf32>
    %42 = math.exp %41 : vector<8x128xf32>
    %cst_22 = arith.constant 1.000000e+00 : f32
    %43 = vector.broadcast %cst_22 : f32 to vector<8x128xf32>
    %44 = arith.addf %43, %42 : vector<8x128xf32>
    %45 = arith.divf %43, %44 : vector<8x128xf32>
    %46 = math.tanh %40 : vector<8x128xf32>
    %47 = vector.extract_strided_slice %45 {offsets = [0, 0], sizes = [8, 32], strides = [1, 1]} : vector<8x128xf32> to vector<8x32xf32>
    %48 = vector.extract_strided_slice %45 {offsets = [0, 32], sizes = [8, 32], strides = [1, 1]} : vector<8x128xf32> to vector<8x32xf32>
    %49 = vector.extract_strided_slice %46 {offsets = [0, 64], sizes = [8, 32], strides = [1, 1]} : vector<8x128xf32> to vector<8x32xf32>
    %50 = vector.extract_strided_slice %45 {offsets = [0, 96], sizes = [8, 32], strides = [1, 1]} : vector<8x128xf32> to vector<8x32xf32>
    %51 = arith.mulf %48, %29 : vector<8x32xf32>
    %52 = arith.mulf %47, %49 : vector<8x32xf32>
    %53 = arith.addf %51, %52 : vector<8x32xf32>
    %54 = math.tanh %53 : vector<8x32xf32>
    %55 = arith.mulf %50, %54 : vector<8x32xf32>
    %56 = arith.index_cast %c1_i32 : i32 to index
    %c0_23 = arith.constant 0 : index
    %c0_24 = arith.constant 0 : index
    %57 = vector.load %arg17[%56, %c0_23, %c0_24] : memref<8x8x32xf32, #tpu.memory_space<vmem>>, vector<1x8x32xf32>
    %58 = vector.shape_cast %57 : vector<1x8x32xf32> to vector<8x32xf32>
    %59 = vector.shape_cast %55 : vector<8x32xf32> to vector<1x8x32xf32>
    tpu.vector_store %arg17[%56, %c0_23, %c0_24], %59 {strides = array<i32>} : memref<8x8x32xf32, #tpu.memory_space<vmem>>, vector<1x8x32xf32>,
    %c2_i32 = arith.constant 2 : i32
    %60 = arith.index_cast %c2_i32 : i32 to index
    %c0_25 = arith.constant 0 : index
    %c0_26 = arith.constant 0 : index
    %61 = vector.load %arg16[%60, %c0_25, %c0_26] : memref<8x8x128xf32, #tpu.memory_space<vmem>>, vector<1x8x128xf32>
    %62 = vector.shape_cast %61 : vector<1x8x128xf32> to vector<8x128xf32>
    %cst_27 = arith.constant dense<0.000000e+00> : vector<8x128xf32>
    %63 = tpu.matmul %55, %9, %cst_27 {dimension_numbers = #tpu.dot_dimension_numbers<[1], [0], [0], [1], [0, 0, 1, 1], [], []>} : vector<8x32xf32>, vector<32x128xf32>, vector<8x128xf32> -> vector<8x128xf32>
    %64 = arith.addf %62, %63 : vector<8x128xf32>
    %65 = arith.negf %64 : vector<8x128xf32>
    %66 = math.exp %65 : vector<8x128xf32>
    %cst_28 = arith.constant 1.000000e+00 : f32
    %67 = vector.broadcast %cst_28 : f32 to vector<8x128xf32>
    %68 = arith.addf %67, %66 : vector<8x128xf32>
    %69 = arith.divf %67, %68 : vector<8x128xf32>
    %70 = math.tanh %64 : vector<8x128xf32>
    %71 = vector.extract_strided_slice %69 {offsets = [0, 0], sizes = [8, 32], strides = [1, 1]} : vector<8x128xf32> to vector<8x32xf32>
    %72 = vector.extract_strided_slice %69 {offsets = [0, 32], sizes = [8, 32], strides = [1, 1]} : vector<8x128xf32> to vector<8x32xf32>
    %73 = vector.extract_strided_slice %70 {offsets = [0, 64], sizes = [8, 32], strides = [1, 1]} : vector<8x128xf32> to vector<8x32xf32>
    %74 = vector.extract_strided_slice %69 {offsets = [0, 96], sizes = [8, 32], strides = [1, 1]} : vector<8x128xf32> to vector<8x32xf32>
    %75 = arith.mulf %72, %53 : vector<8x32xf32>
    %76 = arith.mulf %71, %73 : vector<8x32xf32>
    %77 = arith.addf %75, %76 : vector<8x32xf32>
    %78 = math.tanh %77 : vector<8x32xf32>
    %79 = arith.mulf %74, %78 : vector<8x32xf32>
    %80 = arith.index_cast %c2_i32 : i32 to index
    %c0_29 = arith.constant 0 : index
    %c0_30 = arith.constant 0 : index
    %81 = vector.load %arg17[%80, %c0_29, %c0_30] : memref<8x8x32xf32, #tpu.memory_space<vmem>>, vector<1x8x32xf32>
    %82 = vector.shape_cast %81 : vector<1x8x32xf32> to vector<8x32xf32>
    %83 = vector.shape_cast %79 : vector<8x32xf32> to vector<1x8x32xf32>
    tpu.vector_store %arg17[%80, %c0_29, %c0_30], %83 {strides = array<i32>} : memref<8x8x32xf32, #tpu.memory_space<vmem>>, vector<1x8x32xf32>,
    %c3_i32 = arith.constant 3 : i32
    %84 = arith.index_cast %c3_i32 : i32 to index
    %c0_31 = arith.constant 0 : index
    %c0_32 = arith.constant 0 : index
    %85 = vector.load %arg16[%84, %c0_31, %c0_32] : memref<8x8x128xf32, #tpu.memory_space<vmem>>, vector<1x8x128xf32>
    %86 = vector.shape_cast %85 : vector<1x8x128xf32> to vector<8x128xf32>
    %cst_33 = arith.constant dense<0.000000e+00> : vector<8x128xf32>
    %87 = tpu.matmul %79, %9, %cst_33 {dimension_numbers = #tpu.dot_dimension_numbers<[1], [0], [0], [1], [0, 0, 1, 1], [], []>} : vector<8x32xf32>, vector<32x128xf32>, vector<8x128xf32> -> vector<8x128xf32>
    %88 = arith.addf %86, %87 : vector<8x128xf32>
    %89 = arith.negf %88 : vector<8x128xf32>
    %90 = math.exp %89 : vector<8x128xf32>
    %cst_34 = arith.constant 1.000000e+00 : f32
    %91 = vector.broadcast %cst_34 : f32 to vector<8x128xf32>
    %92 = arith.addf %91, %90 : vector<8x128xf32>
    %93 = arith.divf %91, %92 : vector<8x128xf32>
    %94 = math.tanh %88 : vector<8x128xf32>
    %95 = vector.extract_strided_slice %93 {offsets = [0, 0], sizes = [8, 32], strides = [1, 1]} : vector<8x128xf32> to vector<8x32xf32>
    %96 = vector.extract_strided_slice %93 {offsets = [0, 32], sizes = [8, 32], strides = [1, 1]} : vector<8x128xf32> to vector<8x32xf32>
    %97 = vector.extract_strided_slice %94 {offsets = [0, 64], sizes = [8, 32], strides = [1, 1]} : vector<8x128xf32> to vector<8x32xf32>
    %98 = vector.extract_strided_slice %93 {offsets = [0, 96], sizes = [8, 32], strides = [1, 1]} : vector<8x128xf32> to vector<8x32xf32>
    %99 = arith.mulf %96, %77 : vector<8x32xf32>
    %100 = arith.mulf %95, %97 : vector<8x32xf32>
    %101 = arith.addf %99, %100 : vector<8x32xf32>
    %102 = math.tanh %101 : vector<8x32xf32>
    %103 = arith.mulf %98, %102 : vector<8x32xf32>
    %104 = arith.index_cast %c3_i32 : i32 to index
    %c0_35 = arith.constant 0 : index
    %c0_36 = arith.constant 0 : index
    %105 = vector.load %arg17[%104, %c0_35, %c0_36] : memref<8x8x32xf32, #tpu.memory_space<vmem>>, vector<1x8x32xf32>
    %106 = vector.shape_cast %105 : vector<1x8x32xf32> to vector<8x32xf32>
    %107 = vector.shape_cast %103 : vector<8x32xf32> to vector<1x8x32xf32>
    tpu.vector_store %arg17[%104, %c0_35, %c0_36], %107 {strides = array<i32>} : memref<8x8x32xf32, #tpu.memory_space<vmem>>, vector<1x8x32xf32>,
    %c4_i32 = arith.constant 4 : i32
    %108 = arith.index_cast %c4_i32 : i32 to index
    %c0_37 = arith.constant 0 : index
    %c0_38 = arith.constant 0 : index
    %109 = vector.load %arg16[%108, %c0_37, %c0_38] : memref<8x8x128xf32, #tpu.memory_space<vmem>>, vector<1x8x128xf32>
    %110 = vector.shape_cast %109 : vector<1x8x128xf32> to vector<8x128xf32>
    %cst_39 = arith.constant dense<0.000000e+00> : vector<8x128xf32>
    %111 = tpu.matmul %103, %9, %cst_39 {dimension_numbers = #tpu.dot_dimension_numbers<[1], [0], [0], [1], [0, 0, 1, 1], [], []>} : vector<8x32xf32>, vector<32x128xf32>, vector<8x128xf32> -> vector<8x128xf32>
    %112 = arith.addf %110, %111 : vector<8x128xf32>
    %113 = arith.negf %112 : vector<8x128xf32>
    %114 = math.exp %113 : vector<8x128xf32>
    %cst_40 = arith.constant 1.000000e+00 : f32
    %115 = vector.broadcast %cst_40 : f32 to vector<8x128xf32>
    %116 = arith.addf %115, %114 : vector<8x128xf32>
    %117 = arith.divf %115, %116 : vector<8x128xf32>
    %118 = math.tanh %112 : vector<8x128xf32>
    %119 = vector.extract_strided_slice %117 {offsets = [0, 0], sizes = [8, 32], strides = [1, 1]} : vector<8x128xf32> to vector<8x32xf32>
    %120 = vector.extract_strided_slice %117 {offsets = [0, 32], sizes = [8, 32], strides = [1, 1]} : vector<8x128xf32> to vector<8x32xf32>
    %121 = vector.extract_strided_slice %118 {offsets = [0, 64], sizes = [8, 32], strides = [1, 1]} : vector<8x128xf32> to vector<8x32xf32>
    %122 = vector.extract_strided_slice %117 {offsets = [0, 96], sizes = [8, 32], strides = [1, 1]} : vector<8x128xf32> to vector<8x32xf32>
    %123 = arith.mulf %120, %101 : vector<8x32xf32>
    %124 = arith.mulf %119, %121 : vector<8x32xf32>
    %125 = arith.addf %123, %124 : vector<8x32xf32>
    %126 = math.tanh %125 : vector<8x32xf32>
    %127 = arith.mulf %122, %126 : vector<8x32xf32>
    %128 = arith.index_cast %c4_i32 : i32 to index
    %c0_41 = arith.constant 0 : index
    %c0_42 = arith.constant 0 : index
    %129 = vector.load %arg17[%128, %c0_41, %c0_42] : memref<8x8x32xf32, #tpu.memory_space<vmem>>, vector<1x8x32xf32>
    %130 = vector.shape_cast %129 : vector<1x8x32xf32> to vector<8x32xf32>
    %131 = vector.shape_cast %127 : vector<8x32xf32> to vector<1x8x32xf32>
    tpu.vector_store %arg17[%128, %c0_41, %c0_42], %131 {strides = array<i32>} : memref<8x8x32xf32, #tpu.memory_space<vmem>>, vector<1x8x32xf32>,
    %c5_i32 = arith.constant 5 : i32
    %132 = arith.index_cast %c5_i32 : i32 to index
    %c0_43 = arith.constant 0 : index
    %c0_44 = arith.constant 0 : index
    %133 = vector.load %arg16[%132, %c0_43, %c0_44] : memref<8x8x128xf32, #tpu.memory_space<vmem>>, vector<1x8x128xf32>
    %134 = vector.shape_cast %133 : vector<1x8x128xf32> to vector<8x128xf32>
    %cst_45 = arith.constant dense<0.000000e+00> : vector<8x128xf32>
    %135 = tpu.matmul %127, %9, %cst_45 {dimension_numbers = #tpu.dot_dimension_numbers<[1], [0], [0], [1], [0, 0, 1, 1], [], []>} : vector<8x32xf32>, vector<32x128xf32>, vector<8x128xf32> -> vector<8x128xf32>
    %136 = arith.addf %134, %135 : vector<8x128xf32>
    %137 = arith.negf %136 : vector<8x128xf32>
    %138 = math.exp %137 : vector<8x128xf32>
    %cst_46 = arith.constant 1.000000e+00 : f32
    %139 = vector.broadcast %cst_46 : f32 to vector<8x128xf32>
    %140 = arith.addf %139, %138 : vector<8x128xf32>
    %141 = arith.divf %139, %140 : vector<8x128xf32>
    %142 = math.tanh %136 : vector<8x128xf32>
    %143 = vector.extract_strided_slice %141 {offsets = [0, 0], sizes = [8, 32], strides = [1, 1]} : vector<8x128xf32> to vector<8x32xf32>
    %144 = vector.extract_strided_slice %141 {offsets = [0, 32], sizes = [8, 32], strides = [1, 1]} : vector<8x128xf32> to vector<8x32xf32>
    %145 = vector.extract_strided_slice %142 {offsets = [0, 64], sizes = [8, 32], strides = [1, 1]} : vector<8x128xf32> to vector<8x32xf32>
    %146 = vector.extract_strided_slice %141 {offsets = [0, 96], sizes = [8, 32], strides = [1, 1]} : vector<8x128xf32> to vector<8x32xf32>
    %147 = arith.mulf %144, %125 : vector<8x32xf32>
    %148 = arith.mulf %143, %145 : vector<8x32xf32>
    %149 = arith.addf %147, %148 : vector<8x32xf32>
    %150 = math.tanh %149 : vector<8x32xf32>
    %151 = arith.mulf %146, %150 : vector<8x32xf32>
    %152 = arith.index_cast %c5_i32 : i32 to index
    %c0_47 = arith.constant 0 : index
    %c0_48 = arith.constant 0 : index
    %153 = vector.load %arg17[%152, %c0_47, %c0_48] : memref<8x8x32xf32, #tpu.memory_space<vmem>>, vector<1x8x32xf32>
    %154 = vector.shape_cast %153 : vector<1x8x32xf32> to vector<8x32xf32>
    %155 = vector.shape_cast %151 : vector<8x32xf32> to vector<1x8x32xf32>
    tpu.vector_store %arg17[%152, %c0_47, %c0_48], %155 {strides = array<i32>} : memref<8x8x32xf32, #tpu.memory_space<vmem>>, vector<1x8x32xf32>,
    %c6_i32 = arith.constant 6 : i32
    %156 = arith.index_cast %c6_i32 : i32 to index
    %c0_49 = arith.constant 0 : index
    %c0_50 = arith.constant 0 : index
    %157 = vector.load %arg16[%156, %c0_49, %c0_50] : memref<8x8x128xf32, #tpu.memory_space<vmem>>, vector<1x8x128xf32>
    %158 = vector.shape_cast %157 : vector<1x8x128xf32> to vector<8x128xf32>
    %cst_51 = arith.constant dense<0.000000e+00> : vector<8x128xf32>
    %159 = tpu.matmul %151, %9, %cst_51 {dimension_numbers = #tpu.dot_dimension_numbers<[1], [0], [0], [1], [0, 0, 1, 1], [], []>} : vector<8x32xf32>, vector<32x128xf32>, vector<8x128xf32> -> vector<8x128xf32>
    %160 = arith.addf %158, %159 : vector<8x128xf32>
    %161 = arith.negf %160 : vector<8x128xf32>
    %162 = math.exp %161 : vector<8x128xf32>
    %cst_52 = arith.constant 1.000000e+00 : f32
    %163 = vector.broadcast %cst_52 : f32 to vector<8x128xf32>
    %164 = arith.addf %163, %162 : vector<8x128xf32>
    %165 = arith.divf %163, %164 : vector<8x128xf32>
    %166 = math.tanh %160 : vector<8x128xf32>
    %167 = vector.extract_strided_slice %165 {offsets = [0, 0], sizes = [8, 32], strides = [1, 1]} : vector<8x128xf32> to vector<8x32xf32>
    %168 = vector.extract_strided_slice %165 {offsets = [0, 32], sizes = [8, 32], strides = [1, 1]} : vector<8x128xf32> to vector<8x32xf32>
    %169 = vector.extract_strided_slice %166 {offsets = [0, 64], sizes = [8, 32], strides = [1, 1]} : vector<8x128xf32> to vector<8x32xf32>
    %170 = vector.extract_strided_slice %165 {offsets = [0, 96], sizes = [8, 32], strides = [1, 1]} : vector<8x128xf32> to vector<8x32xf32>
    %171 = arith.mulf %168, %149 : vector<8x32xf32>
    %172 = arith.mulf %167, %169 : vector<8x32xf32>
    %173 = arith.addf %171, %172 : vector<8x32xf32>
    %174 = math.tanh %173 : vector<8x32xf32>
    %175 = arith.mulf %170, %174 : vector<8x32xf32>
    %176 = arith.index_cast %c6_i32 : i32 to index
    %c0_53 = arith.constant 0 : index
    %c0_54 = arith.constant 0 : index
    %177 = vector.load %arg17[%176, %c0_53, %c0_54] : memref<8x8x32xf32, #tpu.memory_space<vmem>>, vector<1x8x32xf32>
    %178 = vector.shape_cast %177 : vector<1x8x32xf32> to vector<8x32xf32>
    %179 = vector.shape_cast %175 : vector<8x32xf32> to vector<1x8x32xf32>
    tpu.vector_store %arg17[%176, %c0_53, %c0_54], %179 {strides = array<i32>} : memref<8x8x32xf32, #tpu.memory_space<vmem>>, vector<1x8x32xf32>,
    %c7_i32 = arith.constant 7 : i32
    %180 = arith.index_cast %c7_i32 : i32 to index
    %c0_55 = arith.constant 0 : index
    %c0_56 = arith.constant 0 : index
    %181 = vector.load %arg16[%180, %c0_55, %c0_56] : memref<8x8x128xf32, #tpu.memory_space<vmem>>, vector<1x8x128xf32>
    %182 = vector.shape_cast %181 : vector<1x8x128xf32> to vector<8x128xf32>
    %cst_57 = arith.constant dense<0.000000e+00> : vector<8x128xf32>
    %183 = tpu.matmul %175, %9, %cst_57 {dimension_numbers = #tpu.dot_dimension_numbers<[1], [0], [0], [1], [0, 0, 1, 1], [], []>} : vector<8x32xf32>, vector<32x128xf32>, vector<8x128xf32> -> vector<8x128xf32>
    %184 = arith.addf %182, %183 : vector<8x128xf32>
    %185 = arith.negf %184 : vector<8x128xf32>
    %186 = math.exp %185 : vector<8x128xf32>
    %cst_58 = arith.constant 1.000000e+00 : f32
    %187 = vector.broadcast %cst_58 : f32 to vector<8x128xf32>
    %188 = arith.addf %187, %186 : vector<8x128xf32>
    %189 = arith.divf %187, %188 : vector<8x128xf32>
    %190 = math.tanh %184 : vector<8x128xf32>
    %191 = vector.extract_strided_slice %189 {offsets = [0, 0], sizes = [8, 32], strides = [1, 1]} : vector<8x128xf32> to vector<8x32xf32>
    %192 = vector.extract_strided_slice %189 {offsets = [0, 32], sizes = [8, 32], strides = [1, 1]} : vector<8x128xf32> to vector<8x32xf32>
    %193 = vector.extract_strided_slice %190 {offsets = [0, 64], sizes = [8, 32], strides = [1, 1]} : vector<8x128xf32> to vector<8x32xf32>
    %194 = vector.extract_strided_slice %189 {offsets = [0, 96], sizes = [8, 32], strides = [1, 1]} : vector<8x128xf32> to vector<8x32xf32>
    %195 = arith.mulf %192, %173 : vector<8x32xf32>
    %196 = arith.mulf %191, %193 : vector<8x32xf32>
    %197 = arith.addf %195, %196 : vector<8x32xf32>
    %198 = math.tanh %197 : vector<8x32xf32>
    %199 = arith.mulf %194, %198 : vector<8x32xf32>
    %200 = arith.index_cast %c7_i32 : i32 to index
    %c0_59 = arith.constant 0 : index
    %c0_60 = arith.constant 0 : index
    %201 = vector.load %arg17[%200, %c0_59, %c0_60] : memref<8x8x32xf32, #tpu.memory_space<vmem>>, vector<1x8x32xf32>
    %202 = vector.shape_cast %201 : vector<1x8x32xf32> to vector<8x32xf32>
    %203 = vector.shape_cast %199 : vector<8x32xf32> to vector<1x8x32xf32>
    tpu.vector_store %arg17[%200, %c0_59, %c0_60], %203 {strides = array<i32>} : memref<8x8x32xf32, #tpu.memory_space<vmem>>, vector<1x8x32xf32>,
    %c8_i32 = arith.constant 8 : i32
    %c0_61 = arith.constant 0 : index
    %c0_62 = arith.constant 0 : index
    %c0_63 = arith.constant 0 : index
    %204 = vector.load %arg17[%c0_61, %c0_62, %c0_63] : memref<8x8x32xf32, #tpu.memory_space<vmem>>, vector<8x8x32xf32>
    %205 = vector.shape_cast %204 : vector<8x8x32xf32> to vector<64x32xf32>
    %c0_64 = arith.constant 0 : index
    %c0_65 = arith.constant 0 : index
    %206 = vector.load %arg5[%c0_64, %c0_65] : memref<32x128xf32, #tpu.memory_space<vmem>>, vector<32x128xf32>
    %cst_66 = arith.constant dense<0.000000e+00> : vector<64x128xf32>
    %207 = tpu.matmul %205, %206, %cst_66 {dimension_numbers = #tpu.dot_dimension_numbers<[1], [0], [0], [1], [0, 0, 1, 1], [], []>} : vector<64x32xf32>, vector<32x128xf32>, vector<64x128xf32> -> vector<64x128xf32>
    %c0_67 = arith.constant 0 : index
    %c0_68 = arith.constant 0 : index
    %208 = vector.load %arg7[%c0_67, %c0_68] : memref<1x128xf32, #tpu.memory_space<vmem>>, vector<1x128xf32>
    %209 = vector.broadcast %208 : vector<1x128xf32> to vector<64x128xf32>
    %210 = arith.addf %207, %209 : vector<64x128xf32>
    %211 = vector.shape_cast %210 : vector<64x128xf32> to vector<8x8x128xf32>
    %c0_69 = arith.constant 0 : index
    %c0_70 = arith.constant 0 : index
    %c0_71 = arith.constant 0 : index
    %212 = vector.load %arg16[%c0_69, %c0_70, %c0_71] : memref<8x8x128xf32, #tpu.memory_space<vmem>>, vector<8x8x128xf32>
    tpu.vector_store %arg16[%c0_69, %c0_70, %c0_71], %211 {strides = array<i32>} : memref<8x8x128xf32, #tpu.memory_space<vmem>>, vector<8x8x128xf32>,
    %c0_72 = arith.constant 0 : index
    %c0_73 = arith.constant 0 : index
    %213 = vector.load %arg6[%c0_72, %c0_73] : memref<32x128xf32, #tpu.memory_space<vmem>>, vector<32x128xf32>
    %cst_74 = arith.constant 0.000000e+00 : f32
    %214 = vector.broadcast %cst_74 : f32 to vector<8x32xf32>
    %cst_75 = arith.constant 0.000000e+00 : f32
    %215 = vector.broadcast %cst_75 : f32 to vector<8x32xf32>
    %c0_i32_76 = arith.constant 0 : i32
    %216 = arith.index_cast %c0_i32_76 : i32 to index
    %c0_77 = arith.constant 0 : index
    %c0_78 = arith.constant 0 : index
    %217 = vector.load %arg16[%216, %c0_77, %c0_78] : memref<8x8x128xf32, #tpu.memory_space<vmem>>, vector<1x8x128xf32>
    %218 = vector.shape_cast %217 : vector<1x8x128xf32> to vector<8x128xf32>
    %cst_79 = arith.constant dense<0.000000e+00> : vector<8x128xf32>
    %219 = tpu.matmul %214, %213, %cst_79 {dimension_numbers = #tpu.dot_dimension_numbers<[1], [0], [0], [1], [0, 0, 1, 1], [], []>} : vector<8x32xf32>, vector<32x128xf32>, vector<8x128xf32> -> vector<8x128xf32>
    %220 = arith.addf %218, %219 : vector<8x128xf32>
    %221 = arith.negf %220 : vector<8x128xf32>
    %222 = math.exp %221 : vector<8x128xf32>
    %cst_80 = arith.constant 1.000000e+00 : f32
    %223 = vector.broadcast %cst_80 : f32 to vector<8x128xf32>
    %224 = arith.addf %223, %222 : vector<8x128xf32>
    %225 = arith.divf %223, %224 : vector<8x128xf32>
    %226 = math.tanh %220 : vector<8x128xf32>
    %227 = vector.extract_strided_slice %225 {offsets = [0, 0], sizes = [8, 32], strides = [1, 1]} : vector<8x128xf32> to vector<8x32xf32>
    %228 = vector.extract_strided_slice %225 {offsets = [0, 32], sizes = [8, 32], strides = [1, 1]} : vector<8x128xf32> to vector<8x32xf32>
    %229 = vector.extract_strided_slice %226 {offsets = [0, 64], sizes = [8, 32], strides = [1, 1]} : vector<8x128xf32> to vector<8x32xf32>
    %230 = vector.extract_strided_slice %225 {offsets = [0, 96], sizes = [8, 32], strides = [1, 1]} : vector<8x128xf32> to vector<8x32xf32>
    %231 = arith.mulf %228, %215 : vector<8x32xf32>
    %232 = arith.mulf %227, %229 : vector<8x32xf32>
    %233 = arith.addf %231, %232 : vector<8x32xf32>
    %234 = math.tanh %233 : vector<8x32xf32>
    %235 = arith.mulf %230, %234 : vector<8x32xf32>
    %c1_i32_81 = arith.constant 1 : i32
    %236 = arith.index_cast %c1_i32_81 : i32 to index
    %c0_82 = arith.constant 0 : index
    %c0_83 = arith.constant 0 : index
    %237 = vector.load %arg16[%236, %c0_82, %c0_83] : memref<8x8x128xf32, #tpu.memory_space<vmem>>, vector<1x8x128xf32>
    %238 = vector.shape_cast %237 : vector<1x8x128xf32> to vector<8x128xf32>
    %cst_84 = arith.constant dense<0.000000e+00> : vector<8x128xf32>
    %239 = tpu.matmul %235, %213, %cst_84 {dimension_numbers = #tpu.dot_dimension_numbers<[1], [0], [0], [1], [0, 0, 1, 1], [], []>} : vector<8x32xf32>, vector<32x128xf32>, vector<8x128xf32> -> vector<8x128xf32>
    %240 = arith.addf %238, %239 : vector<8x128xf32>
    %241 = arith.negf %240 : vector<8x128xf32>
    %242 = math.exp %241 : vector<8x128xf32>
    %cst_85 = arith.constant 1.000000e+00 : f32
    %243 = vector.broadcast %cst_85 : f32 to vector<8x128xf32>
    %244 = arith.addf %243, %242 : vector<8x128xf32>
    %245 = arith.divf %243, %244 : vector<8x128xf32>
    %246 = math.tanh %240 : vector<8x128xf32>
    %247 = vector.extract_strided_slice %245 {offsets = [0, 0], sizes = [8, 32], strides = [1, 1]} : vector<8x128xf32> to vector<8x32xf32>
    %248 = vector.extract_strided_slice %245 {offsets = [0, 32], sizes = [8, 32], strides = [1, 1]} : vector<8x128xf32> to vector<8x32xf32>
    %249 = vector.extract_strided_slice %246 {offsets = [0, 64], sizes = [8, 32], strides = [1, 1]} : vector<8x128xf32> to vector<8x32xf32>
    %250 = vector.extract_strided_slice %245 {offsets = [0, 96], sizes = [8, 32], strides = [1, 1]} : vector<8x128xf32> to vector<8x32xf32>
    %251 = arith.mulf %248, %233 : vector<8x32xf32>
    %252 = arith.mulf %247, %249 : vector<8x32xf32>
    %253 = arith.addf %251, %252 : vector<8x32xf32>
    %254 = math.tanh %253 : vector<8x32xf32>
    %255 = arith.mulf %250, %254 : vector<8x32xf32>
    %c2_i32_86 = arith.constant 2 : i32
    %256 = arith.index_cast %c2_i32_86 : i32 to index
    %c0_87 = arith.constant 0 : index
    %c0_88 = arith.constant 0 : index
    %257 = vector.load %arg16[%256, %c0_87, %c0_88] : memref<8x8x128xf32, #tpu.memory_space<vmem>>, vector<1x8x128xf32>
    %258 = vector.shape_cast %257 : vector<1x8x128xf32> to vector<8x128xf32>
    %cst_89 = arith.constant dense<0.000000e+00> : vector<8x128xf32>
    %259 = tpu.matmul %255, %213, %cst_89 {dimension_numbers = #tpu.dot_dimension_numbers<[1], [0], [0], [1], [0, 0, 1, 1], [], []>} : vector<8x32xf32>, vector<32x128xf32>, vector<8x128xf32> -> vector<8x128xf32>
    %260 = arith.addf %258, %259 : vector<8x128xf32>
    %261 = arith.negf %260 : vector<8x128xf32>
    %262 = math.exp %261 : vector<8x128xf32>
    %cst_90 = arith.constant 1.000000e+00 : f32
    %263 = vector.broadcast %cst_90 : f32 to vector<8x128xf32>
    %264 = arith.addf %263, %262 : vector<8x128xf32>
    %265 = arith.divf %263, %264 : vector<8x128xf32>
    %266 = math.tanh %260 : vector<8x128xf32>
    %267 = vector.extract_strided_slice %265 {offsets = [0, 0], sizes = [8, 32], strides = [1, 1]} : vector<8x128xf32> to vector<8x32xf32>
    %268 = vector.extract_strided_slice %265 {offsets = [0, 32], sizes = [8, 32], strides = [1, 1]} : vector<8x128xf32> to vector<8x32xf32>
    %269 = vector.extract_strided_slice %266 {offsets = [0, 64], sizes = [8, 32], strides = [1, 1]} : vector<8x128xf32> to vector<8x32xf32>
    %270 = vector.extract_strided_slice %265 {offsets = [0, 96], sizes = [8, 32], strides = [1, 1]} : vector<8x128xf32> to vector<8x32xf32>
    %271 = arith.mulf %268, %253 : vector<8x32xf32>
    %272 = arith.mulf %267, %269 : vector<8x32xf32>
    %273 = arith.addf %271, %272 : vector<8x32xf32>
    %274 = math.tanh %273 : vector<8x32xf32>
    %275 = arith.mulf %270, %274 : vector<8x32xf32>
    %c3_i32_91 = arith.constant 3 : i32
    %276 = arith.index_cast %c3_i32_91 : i32 to index
    %c0_92 = arith.constant 0 : index
    %c0_93 = arith.constant 0 : index
    %277 = vector.load %arg16[%276, %c0_92, %c0_93] : memref<8x8x128xf32, #tpu.memory_space<vmem>>, vector<1x8x128xf32>
    %278 = vector.shape_cast %277 : vector<1x8x128xf32> to vector<8x128xf32>
    %cst_94 = arith.constant dense<0.000000e+00> : vector<8x128xf32>
    %279 = tpu.matmul %275, %213, %cst_94 {dimension_numbers = #tpu.dot_dimension_numbers<[1], [0], [0], [1], [0, 0, 1, 1], [], []>} : vector<8x32xf32>, vector<32x128xf32>, vector<8x128xf32> -> vector<8x128xf32>
    %280 = arith.addf %278, %279 : vector<8x128xf32>
    %281 = arith.negf %280 : vector<8x128xf32>
    %282 = math.exp %281 : vector<8x128xf32>
    %cst_95 = arith.constant 1.000000e+00 : f32
    %283 = vector.broadcast %cst_95 : f32 to vector<8x128xf32>
    %284 = arith.addf %283, %282 : vector<8x128xf32>
    %285 = arith.divf %283, %284 : vector<8x128xf32>
    %286 = math.tanh %280 : vector<8x128xf32>
    %287 = vector.extract_strided_slice %285 {offsets = [0, 0], sizes = [8, 32], strides = [1, 1]} : vector<8x128xf32> to vector<8x32xf32>
    %288 = vector.extract_strided_slice %285 {offsets = [0, 32], sizes = [8, 32], strides = [1, 1]} : vector<8x128xf32> to vector<8x32xf32>
    %289 = vector.extract_strided_slice %286 {offsets = [0, 64], sizes = [8, 32], strides = [1, 1]} : vector<8x128xf32> to vector<8x32xf32>
    %290 = vector.extract_strided_slice %285 {offsets = [0, 96], sizes = [8, 32], strides = [1, 1]} : vector<8x128xf32> to vector<8x32xf32>
    %291 = arith.mulf %288, %273 : vector<8x32xf32>
    %292 = arith.mulf %287, %289 : vector<8x32xf32>
    %293 = arith.addf %291, %292 : vector<8x32xf32>
    %294 = math.tanh %293 : vector<8x32xf32>
    %295 = arith.mulf %290, %294 : vector<8x32xf32>
    %c4_i32_96 = arith.constant 4 : i32
    %296 = arith.index_cast %c4_i32_96 : i32 to index
    %c0_97 = arith.constant 0 : index
    %c0_98 = arith.constant 0 : index
    %297 = vector.load %arg16[%296, %c0_97, %c0_98] : memref<8x8x128xf32, #tpu.memory_space<vmem>>, vector<1x8x128xf32>
    %298 = vector.shape_cast %297 : vector<1x8x128xf32> to vector<8x128xf32>
    %cst_99 = arith.constant dense<0.000000e+00> : vector<8x128xf32>
    %299 = tpu.matmul %295, %213, %cst_99 {dimension_numbers = #tpu.dot_dimension_numbers<[1], [0], [0], [1], [0, 0, 1, 1], [], []>} : vector<8x32xf32>, vector<32x128xf32>, vector<8x128xf32> -> vector<8x128xf32>
    %300 = arith.addf %298, %299 : vector<8x128xf32>
    %301 = arith.negf %300 : vector<8x128xf32>
    %302 = math.exp %301 : vector<8x128xf32>
    %cst_100 = arith.constant 1.000000e+00 : f32
    %303 = vector.broadcast %cst_100 : f32 to vector<8x128xf32>
    %304 = arith.addf %303, %302 : vector<8x128xf32>
    %305 = arith.divf %303, %304 : vector<8x128xf32>
    %306 = math.tanh %300 : vector<8x128xf32>
    %307 = vector.extract_strided_slice %305 {offsets = [0, 0], sizes = [8, 32], strides = [1, 1]} : vector<8x128xf32> to vector<8x32xf32>
    %308 = vector.extract_strided_slice %305 {offsets = [0, 32], sizes = [8, 32], strides = [1, 1]} : vector<8x128xf32> to vector<8x32xf32>
    %309 = vector.extract_strided_slice %306 {offsets = [0, 64], sizes = [8, 32], strides = [1, 1]} : vector<8x128xf32> to vector<8x32xf32>
    %310 = vector.extract_strided_slice %305 {offsets = [0, 96], sizes = [8, 32], strides = [1, 1]} : vector<8x128xf32> to vector<8x32xf32>
    %311 = arith.mulf %308, %293 : vector<8x32xf32>
    %312 = arith.mulf %307, %309 : vector<8x32xf32>
    %313 = arith.addf %311, %312 : vector<8x32xf32>
    %314 = math.tanh %313 : vector<8x32xf32>
    %315 = arith.mulf %310, %314 : vector<8x32xf32>
    %c5_i32_101 = arith.constant 5 : i32
    %316 = arith.index_cast %c5_i32_101 : i32 to index
    %c0_102 = arith.constant 0 : index
    %c0_103 = arith.constant 0 : index
    %317 = vector.load %arg16[%316, %c0_102, %c0_103] : memref<8x8x128xf32, #tpu.memory_space<vmem>>, vector<1x8x128xf32>
    %318 = vector.shape_cast %317 : vector<1x8x128xf32> to vector<8x128xf32>
    %cst_104 = arith.constant dense<0.000000e+00> : vector<8x128xf32>
    %319 = tpu.matmul %315, %213, %cst_104 {dimension_numbers = #tpu.dot_dimension_numbers<[1], [0], [0], [1], [0, 0, 1, 1], [], []>} : vector<8x32xf32>, vector<32x128xf32>, vector<8x128xf32> -> vector<8x128xf32>
    %320 = arith.addf %318, %319 : vector<8x128xf32>
    %321 = arith.negf %320 : vector<8x128xf32>
    %322 = math.exp %321 : vector<8x128xf32>
    %cst_105 = arith.constant 1.000000e+00 : f32
    %323 = vector.broadcast %cst_105 : f32 to vector<8x128xf32>
    %324 = arith.addf %323, %322 : vector<8x128xf32>
    %325 = arith.divf %323, %324 : vector<8x128xf32>
    %326 = math.tanh %320 : vector<8x128xf32>
    %327 = vector.extract_strided_slice %325 {offsets = [0, 0], sizes = [8, 32], strides = [1, 1]} : vector<8x128xf32> to vector<8x32xf32>
    %328 = vector.extract_strided_slice %325 {offsets = [0, 32], sizes = [8, 32], strides = [1, 1]} : vector<8x128xf32> to vector<8x32xf32>
    %329 = vector.extract_strided_slice %326 {offsets = [0, 64], sizes = [8, 32], strides = [1, 1]} : vector<8x128xf32> to vector<8x32xf32>
    %330 = vector.extract_strided_slice %325 {offsets = [0, 96], sizes = [8, 32], strides = [1, 1]} : vector<8x128xf32> to vector<8x32xf32>
    %331 = arith.mulf %328, %313 : vector<8x32xf32>
    %332 = arith.mulf %327, %329 : vector<8x32xf32>
    %333 = arith.addf %331, %332 : vector<8x32xf32>
    %334 = math.tanh %333 : vector<8x32xf32>
    %335 = arith.mulf %330, %334 : vector<8x32xf32>
    %c6_i32_106 = arith.constant 6 : i32
    %336 = arith.index_cast %c6_i32_106 : i32 to index
    %c0_107 = arith.constant 0 : index
    %c0_108 = arith.constant 0 : index
    %337 = vector.load %arg16[%336, %c0_107, %c0_108] : memref<8x8x128xf32, #tpu.memory_space<vmem>>, vector<1x8x128xf32>
    %338 = vector.shape_cast %337 : vector<1x8x128xf32> to vector<8x128xf32>
    %cst_109 = arith.constant dense<0.000000e+00> : vector<8x128xf32>
    %339 = tpu.matmul %335, %213, %cst_109 {dimension_numbers = #tpu.dot_dimension_numbers<[1], [0], [0], [1], [0, 0, 1, 1], [], []>} : vector<8x32xf32>, vector<32x128xf32>, vector<8x128xf32> -> vector<8x128xf32>
    %340 = arith.addf %338, %339 : vector<8x128xf32>
    %341 = arith.negf %340 : vector<8x128xf32>
    %342 = math.exp %341 : vector<8x128xf32>
    %cst_110 = arith.constant 1.000000e+00 : f32
    %343 = vector.broadcast %cst_110 : f32 to vector<8x128xf32>
    %344 = arith.addf %343, %342 : vector<8x128xf32>
    %345 = arith.divf %343, %344 : vector<8x128xf32>
    %346 = math.tanh %340 : vector<8x128xf32>
    %347 = vector.extract_strided_slice %345 {offsets = [0, 0], sizes = [8, 32], strides = [1, 1]} : vector<8x128xf32> to vector<8x32xf32>
    %348 = vector.extract_strided_slice %345 {offsets = [0, 32], sizes = [8, 32], strides = [1, 1]} : vector<8x128xf32> to vector<8x32xf32>
    %349 = vector.extract_strided_slice %346 {offsets = [0, 64], sizes = [8, 32], strides = [1, 1]} : vector<8x128xf32> to vector<8x32xf32>
    %350 = vector.extract_strided_slice %345 {offsets = [0, 96], sizes = [8, 32], strides = [1, 1]} : vector<8x128xf32> to vector<8x32xf32>
    %351 = arith.mulf %348, %333 : vector<8x32xf32>
    %352 = arith.mulf %347, %349 : vector<8x32xf32>
    %353 = arith.addf %351, %352 : vector<8x32xf32>
    %354 = math.tanh %353 : vector<8x32xf32>
    %355 = arith.mulf %350, %354 : vector<8x32xf32>
    %c7_i32_111 = arith.constant 7 : i32
    %356 = arith.index_cast %c7_i32_111 : i32 to index
    %c0_112 = arith.constant 0 : index
    %c0_113 = arith.constant 0 : index
    %357 = vector.load %arg16[%356, %c0_112, %c0_113] : memref<8x8x128xf32, #tpu.memory_space<vmem>>, vector<1x8x128xf32>
    %358 = vector.shape_cast %357 : vector<1x8x128xf32> to vector<8x128xf32>
    %cst_114 = arith.constant dense<0.000000e+00> : vector<8x128xf32>
    %359 = tpu.matmul %355, %213, %cst_114 {dimension_numbers = #tpu.dot_dimension_numbers<[1], [0], [0], [1], [0, 0, 1, 1], [], []>} : vector<8x32xf32>, vector<32x128xf32>, vector<8x128xf32> -> vector<8x128xf32>
    %360 = arith.addf %358, %359 : vector<8x128xf32>
    %361 = arith.negf %360 : vector<8x128xf32>
    %362 = math.exp %361 : vector<8x128xf32>
    %cst_115 = arith.constant 1.000000e+00 : f32
    %363 = vector.broadcast %cst_115 : f32 to vector<8x128xf32>
    %364 = arith.addf %363, %362 : vector<8x128xf32>
    %365 = arith.divf %363, %364 : vector<8x128xf32>
    %366 = math.tanh %360 : vector<8x128xf32>
    %367 = vector.extract_strided_slice %365 {offsets = [0, 0], sizes = [8, 32], strides = [1, 1]} : vector<8x128xf32> to vector<8x32xf32>
    %368 = vector.extract_strided_slice %365 {offsets = [0, 32], sizes = [8, 32], strides = [1, 1]} : vector<8x128xf32> to vector<8x32xf32>
    %369 = vector.extract_strided_slice %366 {offsets = [0, 64], sizes = [8, 32], strides = [1, 1]} : vector<8x128xf32> to vector<8x32xf32>
    %370 = vector.extract_strided_slice %365 {offsets = [0, 96], sizes = [8, 32], strides = [1, 1]} : vector<8x128xf32> to vector<8x32xf32>
    %371 = arith.mulf %368, %353 : vector<8x32xf32>
    %372 = arith.mulf %367, %369 : vector<8x32xf32>
    %373 = arith.addf %371, %372 : vector<8x32xf32>
    %374 = math.tanh %373 : vector<8x32xf32>
    %375 = arith.mulf %370, %374 : vector<8x32xf32>
    %c8_i32_116 = arith.constant 8 : i32
    %c0_117 = arith.constant 0 : index
    %c0_118 = arith.constant 0 : index
    %376 = vector.load %arg1[%c0_117, %c0_118] : memref<8x7xf32, #tpu.memory_space<vmem>>, vector<8x7xf32>
    %c0_119 = arith.constant 0 : index
    %c0_120 = arith.constant 0 : index
    %377 = vector.load %arg8[%c0_119, %c0_120] : memref<7x32xf32, #tpu.memory_space<vmem>>, vector<7x32xf32>
    %cst_121 = arith.constant dense<0.000000e+00> : vector<8x32xf32>
    %378 = tpu.matmul %376, %377, %cst_121 {dimension_numbers = #tpu.dot_dimension_numbers<[1], [0], [0], [1], [0, 0, 1, 1], [], []>} : vector<8x7xf32>, vector<7x32xf32>, vector<8x32xf32> -> vector<8x32xf32>
    %c0_122 = arith.constant 0 : index
    %c0_123 = arith.constant 0 : index
    %379 = vector.load %arg9[%c0_122, %c0_123] : memref<1x32xf32, #tpu.memory_space<vmem>>, vector<1x32xf32>
    %380 = vector.broadcast %379 : vector<1x32xf32> to vector<8x32xf32>
    %381 = arith.addf %378, %380 : vector<8x32xf32>
    %cst_124 = arith.constant 0.000000e+00 : f32
    %382 = vector.broadcast %cst_124 : f32 to vector<8x32xf32>
    %383 = arith.maximumf %381, %382 : vector<8x32xf32>
    %c0_125 = arith.constant 0 : index
    %c0_126 = arith.constant 0 : index
    %384 = vector.load %arg10[%c0_125, %c0_126] : memref<32x32xf32, #tpu.memory_space<vmem>>, vector<32x32xf32>
    %cst_127 = arith.constant dense<0.000000e+00> : vector<8x32xf32>
    %385 = tpu.matmul %375, %384, %cst_127 {dimension_numbers = #tpu.dot_dimension_numbers<[1], [0], [0], [1], [0, 0, 1, 1], [], []>} : vector<8x32xf32>, vector<32x32xf32>, vector<8x32xf32> -> vector<8x32xf32>
    %c0_128 = arith.constant 0 : index
    %c0_129 = arith.constant 0 : index
    %386 = vector.load %arg11[%c0_128, %c0_129] : memref<32x32xf32, #tpu.memory_space<vmem>>, vector<32x32xf32>
    %cst_130 = arith.constant dense<0.000000e+00> : vector<8x32xf32>
    %387 = tpu.matmul %383, %386, %cst_130 {dimension_numbers = #tpu.dot_dimension_numbers<[1], [0], [0], [1], [0, 0, 1, 1], [], []>} : vector<8x32xf32>, vector<32x32xf32>, vector<8x32xf32> -> vector<8x32xf32>
    %388 = arith.addf %385, %387 : vector<8x32xf32>
    %c0_131 = arith.constant 0 : index
    %c0_132 = arith.constant 0 : index
    %389 = vector.load %arg12[%c0_131, %c0_132] : memref<1x32xf32, #tpu.memory_space<vmem>>, vector<1x32xf32>
    %390 = vector.broadcast %389 : vector<1x32xf32> to vector<8x32xf32>
    %391 = arith.addf %388, %390 : vector<8x32xf32>
    %cst_133 = arith.constant 0.000000e+00 : f32
    %392 = vector.broadcast %cst_133 : f32 to vector<8x32xf32>
    %393 = arith.maximumf %391, %392 : vector<8x32xf32>
    %c0_134 = arith.constant 0 : index
    %c0_135 = arith.constant 0 : index
    %394 = vector.load %arg13[%c0_134, %c0_135] : memref<32x8xf32, #tpu.memory_space<vmem>>, vector<32x8xf32>
    %cst_136 = arith.constant dense<0.000000e+00> : vector<8x8xf32>
    %395 = tpu.matmul %393, %394, %cst_136 {dimension_numbers = #tpu.dot_dimension_numbers<[1], [0], [0], [1], [0, 0, 1, 1], [], []>} : vector<8x32xf32>, vector<32x8xf32>, vector<8x8xf32> -> vector<8x8xf32>
    %c0_137 = arith.constant 0 : index
    %c0_138 = arith.constant 0 : index
    %396 = vector.load %arg14[%c0_137, %c0_138] : memref<1x8xf32, #tpu.memory_space<vmem>>, vector<1x8xf32>
    %397 = vector.broadcast %396 : vector<1x8xf32> to vector<8x8xf32>
    %398 = arith.addf %395, %397 : vector<8x8xf32>
    %399 = tpu.iota {dimensions = array<i32: 1>} : vector<8x8xi32>
    %c4_i32_139 = arith.constant 4 : i32
    %400 = vector.broadcast %c4_i32_139 : i32 to vector<8x8xi32>
    %401 = arith.cmpi sge, %399, %400 : vector<8x8xi32>
    %cst_140 = arith.constant -2.000000e+01 : f32
    %cst_141 = arith.constant 2.000000e+00 : f32
    %402 = vector.broadcast %cst_140 : f32 to vector<8x8xf32>
    %403 = arith.maximumf %402, %398 : vector<8x8xf32>
    %404 = vector.broadcast %cst_141 : f32 to vector<8x8xf32>
    %405 = arith.minimumf %404, %403 : vector<8x8xf32>
    %406 = arith.select %401, %405, %398 : vector<8x8xi1>, vector<8x8xf32>
    %c0_142 = arith.constant 0 : index
    %c0_143 = arith.constant 0 : index
    %407 = vector.load %arg15[%c0_142, %c0_143] : memref<8x8xf32, #tpu.memory_space<vmem>>, vector<8x8xf32>
    tpu.vector_store %arg15[%c0_142, %c0_143], %406 {strides = array<i32>} : memref<8x8xf32, #tpu.memory_space<vmem>>, vector<8x8xf32>,
    return
  }
}

</mosaic_0001>

<llo_original>
// kernel: network_forward.1
$region0: #{network_forward.1}
  #allocation0 [shape = 'u32[]', space=smem, size = 0x4, offset = 0x4, fixed_abs, tag = 'smem constant byte address 0x4 - core index']
  #allocation1 [shape = 'u32[144,128]{1,0:T(1,128)}', space=vmem, size = 0x12000, scoped, tag = 'internal scratch']
  #allocation2 [shape = 'f32[8,8,128]{2,1,0:T(8,128)}', space=vmem, size = 0x8000, scoped, tag = 'scratch operand']
  #allocation3 [shape = 'f32[8,8,32]{2,1,0:T(8,128)}', space=vmem, size = 0x8000, scoped, tag = 'scratch operand']
  %s0 = inlined_call_operand.vmem [shape: f32[8,8,8], index: 0, kind: input, shape index: {}]
  %s1 = inlined_call_operand.vmem [shape: f32[8,7], index: 1, kind: input, shape index: {}]
  %s2 = inlined_call_operand.vmem [shape: f32[8,128], index: 2, kind: input, shape index: {}]
  %s3 = inlined_call_operand.vmem [shape: f32[32,128], index: 3, kind: input, shape index: {}]
  %s4 = inlined_call_operand.vmem [shape: f32[1,128], index: 4, kind: input, shape index: {}]
  %s5 = inlined_call_operand.vmem [shape: f32[32,128], index: 5, kind: input, shape index: {}]
  %s6 = inlined_call_operand.vmem [shape: f32[32,128], index: 6, kind: input, shape index: {}]
  %s7 = inlined_call_operand.hbm [shape: f32[1,128], index: 7, kind: input, shape index: {}]
  %s8 = inlined_call_operand.hbm [shape: f32[7,32], index: 8, kind: input, shape index: {}]
  %s9 = inlined_call_operand.vmem [shape: f32[1,32], index: 9, kind: input, shape index: {}]
  %s10 = inlined_call_operand.vmem [shape: f32[32,32], index: 10, kind: input, shape index: {}]
  %s11 = inlined_call_operand.vmem [shape: f32[32,32], index: 11, kind: input, shape index: {}]
  %s12 = inlined_call_operand.vmem [shape: f32[1,32], index: 12, kind: input, shape index: {}]
  %s13 = inlined_call_operand.vmem [shape: f32[32,8], index: 13, kind: input, shape index: {}]
  %s14 = inlined_call_operand.hbm [shape: f32[1,8], index: 14, kind: input, shape index: {}]
  %s15 = inlined_call_operand.vmem [shape: f32[8,8], index: 15, kind: output, shape index: {}]
  %s16 = sld [smem:[#allocation0]]
  $region82: #{network_forward.1} parent=0
    _
  %s18 = ssub.s32 1, %s16
  %s19 = scalar_select 0, %s18, %s16
  $region1: #{network_forward.1} parent=0
    #allocation4 [shape = 'u8[512]{0}', space=vmem, size = 0x400, scoped, tag = 'input window, operand 7, single buffered']
    #allocation5 [shape = 's32[1]{0}', space=sflag, size = 0x4, scoped, tag = 'scoped memory for network_forward.1']
    #allocation6 [shape = 'u8[4096]{0}', space=vmem, size = 0x1000, scoped, tag = 'input window, operand 8, single buffered']
    #allocation7 [shape = 's32[1]{0}', space=sflag, size = 0x4, scoped, tag = 'scoped memory for network_forward.1']
    #allocation8 [shape = 'u8[512]{0}', space=vmem, size = 0x400, scoped, tag = 'input window, operand 14, single buffered']
    %20 = vsyncpa [#allocation5], 0
    %21 = vsyncpa [#allocation7], 0
    // Predicated region
    $region2: #{network_forward.1} parent=1 // pred_check
      _
    $region3: #{network_forward.1} parent=1 // pred_check_branch
      %23 = sbr.rel (0) target = $region5
    $region4: #{network_forward.1} parent=1 // pred_region
      _
    $region5: #{network_forward.1} parent=1 // pred_fallthru
      _
    // Predicated region
    $region6: #{network_forward.1} parent=1 // pred_check
      _
    $region7: #{network_forward.1} parent=1 // pred_check_branch
      %25 = sbr.rel (0) target = $region9
    $region8: #{network_forward.1} parent=1 // pred_region
      _
    $region9: #{network_forward.1} parent=1 // pred_fallthru
      _
    // Predicated region
    $region10: #{network_forward.1} parent=1 // pred_check
      _
    $region11: #{network_forward.1} parent=1 // pred_check_branch
      %27 = sbr.rel (0) target = $region13
    $region12: #{network_forward.1} parent=1 // pred_region
      _
    $region13: #{network_forward.1} parent=1 // pred_fallthru
      _
    // Predicated region
    $region14: #{network_forward.1} parent=1 // pred_check
      _
    $region15: #{network_forward.1} parent=1 // pred_check_branch
      %29 = sbr.rel (0) target = $region17
    $region16: #{network_forward.1} parent=1 // pred_region
      _
    $region17: #{network_forward.1} parent=1 // pred_fallthru
      _
    // Predicated region
    $region18: #{network_forward.1} parent=1 // pred_check
      _
    $region19: #{network_forward.1} parent=1 // pred_check_branch
      %31 = sbr.rel (0) target = $region21
    $region20: #{network_forward.1} parent=1 // pred_region
      _
    $region21: #{network_forward.1} parent=1 // pred_fallthru
      _
    // Predicated region
    $region22: #{network_forward.1} parent=1 // pred_check
      _
    $region23: #{network_forward.1} parent=1 // pred_check_branch
      %33 = sbr.rel (0) target = $region25
    $region24: #{network_forward.1} parent=1 // pred_region
      _
    $region25: #{network_forward.1} parent=1 // pred_fallthru
      _
    // Predicated region
    $region26: #{network_forward.1} parent=1 // pred_check
      _
    $region27: #{network_forward.1} parent=1 // pred_check_branch
      %35 = sbr.rel (0) target = $region29
    $region28: #{network_forward.1} parent=1 // pred_region
      _
    $region29: #{network_forward.1} parent=1 // pred_fallthru
      _
    // Predicated region
    $region30: #{network_forward.1} parent=1 // pred_check
      _
    $region31: #{network_forward.1} parent=1 // pred_check_branch
      %37 = sbr.rel (0) target = $region33
    $region32: #{network_forward.1} parent=1 // pred_region
      %s39 = ssub.s32 16, 16
      %40 = vsyncadd [#allocation5], %s39
      %s42 = sshll.u32 [#allocation4], 4
      %s43 = int_to_ptr.vmem [resolvable:$true] %s42
      %45 = dma.hbm_to_vmem [thread:$0]  %s7, 16, %s43, [#allocation5]
    $region33: #{network_forward.1} parent=1 // pred_fallthru
      _
    // Predicated region
    $region34: #{network_forward.1} parent=1 // pred_check
      _
    $region35: #{network_forward.1} parent=1 // pred_check_branch
      %47 = sbr.rel (0) target = $region37
    $region36: #{network_forward.1} parent=1 // pred_region
      %s49 = ssub.s32 128, 128
      %50 = vsyncadd [#allocation7], %s49
      %s52 = sshll.u32 [#allocation6], 4
      %s53 = int_to_ptr.vmem [resolvable:$true] %s52
      %55 = dma.hbm_to_vmem [thread:$0]  %s8, 128, %s53, [#allocation7]
    $region37: #{network_forward.1} parent=1 // pred_fallthru
      _
    // Predicated region
    $region38: #{network_forward.1} parent=1 // pred_check
      _
    $region39: #{network_forward.1} parent=1 // pred_check_branch
      %57 = sbr.rel (0) target = $region41
    $region40: #{network_forward.1} parent=1 // pred_region
      _
    $region41: #{network_forward.1} parent=1 // pred_fallthru
      _
    // Predicated region
    $region42: #{network_forward.1} parent=1 // pred_check
      _
    $region43: #{network_forward.1} parent=1 // pred_check_branch
      %59 = sbr.rel (0) target = $region45
    $region44: #{network_forward.1} parent=1 // pred_region
      _
    $region45: #{network_forward.1} parent=1 // pred_fallthru
      _
    // Predicated region
    $region46: #{network_forward.1} parent=1 // pred_check
      _
    $region47: #{network_forward.1} parent=1 // pred_check_branch
      %61 = sbr.rel (0) target = $region49
    $region48: #{network_forward.1} parent=1 // pred_region
      _
    $region49: #{network_forward.1} parent=1 // pred_fallthru
      _
    // Predicated region
    $region50: #{network_forward.1} parent=1 // pred_check
      _
    $region51: #{network_forward.1} parent=1 // pred_check_branch
      %63 = sbr.rel (0) target = $region53
    $region52: #{network_forward.1} parent=1 // pred_region
      _
    $region53: #{network_forward.1} parent=1 // pred_fallthru
      _
    // Predicated region
    $region54: #{network_forward.1} parent=1 // pred_check
      _
    $region55: #{network_forward.1} parent=1 // pred_check_branch
      %65 = sbr.rel (0) target = $region57
    $region56: #{network_forward.1} parent=1 // pred_region
      _
    $region57: #{network_forward.1} parent=1 // pred_fallthru
      _
    // Predicated region
    $region58: #{network_forward.1} parent=1 // pred_check
      _
    $region59: #{network_forward.1} parent=1 // pred_check_branch
      %67 = sbr.rel (0) target = $region61
    $region60: #{network_forward.1} parent=1 // pred_region
      %s69 = ssub.s32 16, 16
      %70 = vsyncadd [#allocation7], %s69
      %s72 = sshll.u32 [#allocation8], 4
      %s73 = int_to_ptr.vmem [resolvable:$true] %s72
      %75 = dma.hbm_to_vmem [thread:$0]  %s14, 16, %s73, [#allocation7]
    $region61: #{network_forward.1} parent=1 // pred_fallthru
      _
    // Predicated region
    $region62: #{network_forward.1} parent=1 // pred_check
      _
    $region63: #{network_forward.1} parent=1 // pred_check_branch
      %77 = sbr.rel (0) target = $region65
    $region64: #{network_forward.1} parent=1 // pred_region
      %78 = dma.done [#allocation5], 16
    $region65: #{network_forward.1} parent=1 // pred_fallthru
      _
    // Predicated region
    $region66: #{network_forward.1} parent=1 // pred_check
      _
    $region67: #{network_forward.1} parent=1 // pred_check_branch
      %80 = sbr.rel (0) target = $region69
    $region68: #{network_forward.1} parent=1 // pred_region
      %81 = dma.done [#allocation7], 128
    $region69: #{network_forward.1} parent=1 // pred_fallthru
      _
    // Predicated region
    $region70: #{network_forward.1} parent=1 // pred_check
      _
    $region71: #{network_forward.1} parent=1 // pred_check_branch
      %83 = sbr.rel (0) target = $region73
    $region72: #{network_forward.1} parent=1 // pred_region
      %84 = dma.done [#allocation7], 16
    $region73: #{network_forward.1} parent=1 // pred_fallthru
      _
    %v85 = vld [vmem:[%s0] sm:$0xff]
    %v86 = vld [vmem:[%s0 + $0x8] sm:$0xff]
    %v87 = vld [vmem:[%s0 + $0x10] sm:$0xff]
    %v88 = vld [vmem:[%s0 + $0x18] sm:$0xff]
    %v89 = vld [vmem:[%s0 + $0x20] sm:$0xff]
    %v90 = vld [vmem:[%s0 + $0x28] sm:$0xff]
    %v91 = vld [vmem:[%s0 + $0x30] sm:$0xff]
    %v92 = vld [vmem:[%s0 + $0x38] sm:$0xff]
    %v93 = vld [vmem:[%s2] sm:$0xff]
    %v94 = vld [vmem:[%s4] sm:$0x1]
    %v96 = vlaneseq
    %v97 = vshrl.u32 %v96, 7
    %v98 = vsub.s32 0, %v97
    %v99 = vrot.slane %v94, %v98
    %vm101 = vcmask 64512
    %v103 = vsel %vm101, %v85, 0
    %v106 = vsel %vm101, %v86, 0
    %v109 = vsel %vm101, %v87, 0
    %v112 = vsel %vm101, %v88, 0
    %v115 = vsel %vm101, %v89, 0
    %v118 = vsel %vm101, %v90, 0
    %v121 = vsel %vm101, %v91, 0
    %v124 = vsel %vm101, %v92, 0
    %126 = vmatprep.subr.mxu0 0.0
    %127 = vmatpush1.msra.mxu0 %v93
    %128 = vmatprep.subr.mxu0 0.0
    %129 = vmatpush1.msra.mxu0 0.0
    %130 = vmatprep.subr.mxu0 0.0
    %131 = vmatpush1.msra.mxu0 0.0
    %132 = vmatprep.subr.mxu0 0.0
    %133 = vmatpush1.msra.mxu0 0.0
    %134 = vmatprep.subr.mxu0 0.0
    %135 = vmatpush1.msra.mxu0 0.0
    %136 = vmatprep.subr.mxu0 0.0
    %137 = vmatpush1.msra.mxu0 0.0
    %138 = vmatprep.subr.mxu0 0.0
    %139 = vmatpush1.msra.mxu0 0.0
    %140 = vmatprep.subr.mxu0 0.0
    %141 = vmatpush1.msra.mxu0 0.0
    %142 = vmatprep.subr.mxu0 0.0
    %143 = vmatpush1.msra.mxu0 0.0
    %144 = vmatprep.subr.mxu0 0.0
    %145 = vmatpush1.msra.mxu0 0.0
    %146 = vmatprep.subr.mxu0 0.0
    %147 = vmatpush1.msra.mxu0 0.0
    %148 = vmatprep.subr.mxu0 0.0
    %149 = vmatpush1.msra.mxu0 0.0
    %150 = vmatprep.subr.mxu0 0.0
    %151 = vmatpush1.msra.mxu0 0.0
    %152 = vmatprep.subr.mxu0 0.0
    %153 = vmatpush1.msra.mxu0 0.0
    %154 = vmatprep.subr.mxu0 0.0
    %155 = vmatpush1.msra.mxu0 0.0
    %156 = vmatprep.subr.mxu0 0.0
    %157 = vmatpush1.msra.mxu0 0.0
    %158 = vmatprep.subr.mxu0 0.0
    %159 = vmatpush1.msra.mxu0 0.0
    %160 = vmatprep.subr.mxu0 0.0
    %161 = vmatpush1.msra.mxu0 0.0
    %162 = vmatprep.subr.mxu0 0.0
    %163 = vmatpush1.msra.mxu0 0.0
    %164 = vmatprep.subr.mxu0 0.0
    %165 = vmatpush1.msra.mxu0 0.0
    %166 = vmatprep.subr.mxu0 0.0
    %167 = vmatpush1.msra.mxu0 0.0
    %168 = vmatprep.subr.mxu0 0.0
    %169 = vmatpush1.msra.mxu0 0.0
    %170 = vmatprep.subr.mxu0 0.0
    %171 = vmatpush1.msra.mxu0 0.0
    %172 = vmatprep.subr.mxu0 0.0
    %173 = vmatpush1.msra.mxu0 0.0
    %174 = vmatprep.subr.mxu0 0.0
    %175 = vmatpush1.msra.mxu0 0.0
    %176 = vmatprep.subr.mxu0 0.0
    %177 = vmatpush1.msra.mxu0 0.0
    %178 = vmatprep.subr.mxu0 0.0
    %179 = vmatpush1.msra.mxu0 0.0
    %180 = vmatprep.subr.mxu0 0.0
    %181 = vmatpush1.msra.mxu0 0.0
    %182 = vmatprep.subr.mxu0 0.0
    %183 = vmatpush1.msra.mxu0 0.0
    %184 = vmatprep.subr.mxu0 0.0
    %185 = vmatpush1.msra.mxu0 0.0
    %186 = vmatprep.subr.mxu0 0.0
    %187 = vmatpush1.msra.mxu0 0.0
    %188 = vmatprep.subr.mxu0 0.0
    %189 = vmatpush1.msra.mxu0 0.0
    %190 = vmatprep.mubr.f32.mxu0 0.0
    %191 = vmatmul.mubr.f32.gmra.mrb[0].mxu0 %v103
    %v192 = vpop.f32.mrb[0].mxu0
    %v193 = vadd.f32 %v99, %v192
    %v194 = vpop.f32.mrb[0].mxu0
    %195 = vmatprep.mubr.f32.mxu0 0.0
    %196 = vmatmul.mubr.f32.gmra.mrb[0].mxu0 %v106
    %v197 = vpop.f32.mrb[0].mxu0
    %v198 = vadd.f32 %v99, %v197
    %v199 = vpop.f32.mrb[0].mxu0
    %200 = vmatprep.mubr.f32.mxu0 0.0
    %201 = vmatmul.mubr.f32.gmra.mrb[0].mxu0 %v109
    %v202 = vpop.f32.mrb[0].mxu0
    %v203 = vadd.f32 %v99, %v202
    %v204 = vpop.f32.mrb[0].mxu0
    %205 = vmatprep.mubr.f32.mxu0 0.0
    %206 = vmatmul.mubr.f32.gmra.mrb[0].mxu0 %v112
    %v207 = vpop.f32.mrb[0].mxu0
    %v208 = vadd.f32 %v99, %v207
    %v209 = vpop.f32.mrb[0].mxu0
    %210 = vmatprep.mubr.f32.mxu0 0.0
    %211 = vmatmul.mubr.f32.gmra.mrb[0].mxu0 %v115
    %v212 = vpop.f32.mrb[0].mxu0
    %v213 = vadd.f32 %v99, %v212
    %v214 = vpop.f32.mrb[0].mxu0
    %215 = vmatprep.mubr.f32.mxu0 0.0
    %216 = vmatmul.mubr.f32.gmra.mrb[0].mxu0 %v118
    %v217 = vpop.f32.mrb[0].mxu0
    %v218 = vadd.f32 %v99, %v217
    %v219 = vpop.f32.mrb[0].mxu0
    %220 = vmatprep.mubr.f32.mxu0 0.0
    %221 = vmatmul.mubr.f32.gmra.mrb[0].mxu0 %v121
    %v222 = vpop.f32.mrb[0].mxu0
    %v223 = vadd.f32 %v99, %v222
    %v224 = vpop.f32.mrb[0].mxu0
    %225 = vmatprep.mubr.f32.mxu0 0.0
    %226 = vmatmul.mubr.f32.gmra.mrb[0].mxu0 %v124
    %v227 = vpop.f32.mrb[0].mxu0
    %v228 = vadd.f32 %v99, %v227
    %v229 = vpop.f32.mrb[0].mxu0
    %230 = vdwg.mxu0
    %231 = vst [vmem:[#allocation2] sm:$0xff] %v193
    %232 = vst [vmem:[#allocation2 + $0x8] sm:$0xff] %v198
    %233 = vst [vmem:[#allocation2 + $0x10] sm:$0xff] %v203
    %234 = vst [vmem:[#allocation2 + $0x18] sm:$0xff] %v208
    %235 = vst [vmem:[#allocation2 + $0x20] sm:$0xff] %v213
    %236 = vst [vmem:[#allocation2 + $0x28] sm:$0xff] %v218
    %237 = vst [vmem:[#allocation2 + $0x30] sm:$0xff] %v223
    %238 = vst [vmem:[#allocation2 + $0x38] sm:$0xff] %v228
    %v239 = vld [vmem:[%s3] sm:$0xff]
    %v240 = vld [vmem:[%s3 + $0x8] sm:$0xff]
    %v241 = vld [vmem:[%s3 + $0x10] sm:$0xff]
    %v242 = vld [vmem:[%s3 + $0x18] sm:$0xff]
    %v243 = vld [vmem:[#allocation2] sm:$0xff]
    %vm244 = vcmask 261120
    %v246 = vsel %vm244, 0.0, 0
    %248 = vmatprep.subr.mxu0 0.0
    %249 = vmatpush1.msra.mxu0 %v239
    %250 = vmatprep.subr.mxu0 0.0
    %251 = vmatpush1.msra.mxu0 %v240
    %252 = vmatprep.subr.mxu0 0.0
    %253 = vmatpush1.msra.mxu0 %v241
    %254 = vmatprep.subr.mxu0 0.0
    %255 = vmatpush1.msra.mxu0 %v242
    %256 = vmatprep.subr.mxu0 0.0
    %257 = vmatpush1.msra.mxu0 0.0
    %258 = vmatprep.subr.mxu0 0.0
    %259 = vmatpush1.msra.mxu0 0.0
    %260 = vmatprep.subr.mxu0 0.0
    %261 = vmatpush1.msra.mxu0 0.0
    %262 = vmatprep.subr.mxu0 0.0
    %263 = vmatpush1.msra.mxu0 0.0
    %264 = vmatprep.subr.mxu0 0.0
    %265 = vmatpush1.msra.mxu0 0.0
    %266 = vmatprep.subr.mxu0 0.0
    %267 = vmatpush1.msra.mxu0 0.0
    %268 = vmatprep.subr.mxu0 0.0
    %269 = vmatpush1.msra.mxu0 0.0
    %270 = vmatprep.subr.mxu0 0.0
    %271 = vmatpush1.msra.mxu0 0.0
    %272 = vmatprep.subr.mxu0 0.0
    %273 = vmatpush1.msra.mxu0 0.0
    %274 = vmatprep.subr.mxu0 0.0
    %275 = vmatpush1.msra.mxu0 0.0
    %276 = vmatprep.subr.mxu0 0.0
    %277 = vmatpush1.msra.mxu0 0.0
    %278 = vmatprep.subr.mxu0 0.0
    %279 = vmatpush1.msra.mxu0 0.0
    %280 = vmatprep.subr.mxu0 0.0
    %281 = vmatpush1.msra.mxu0 0.0
    %282 = vmatprep.subr.mxu0 0.0
    %283 = vmatpush1.msra.mxu0 0.0
    %284 = vmatprep.subr.mxu0 0.0
    %285 = vmatpush1.msra.mxu0 0.0
    %286 = vmatprep.subr.mxu0 0.0
    %287 = vmatpush1.msra.mxu0 0.0
    %288 = vmatprep.subr.mxu0 0.0
    %289 = vmatpush1.msra.mxu0 0.0
    %290 = vmatprep.subr.mxu0 0.0
    %291 = vmatpush1.msra.mxu0 0.0
    %292 = vmatprep.subr.mxu0 0.0
    %293 = vmatpush1.msra.mxu0 0.0
    %294 = vmatprep.subr.mxu0 0.0
    %295 = vmatpush1.msra.mxu0 0.0
    %296 = vmatprep.subr.mxu0 0.0
    %297 = vmatpush1.msra.mxu0 0.0
    %298 = vmatprep.subr.mxu0 0.0
    %299 = vmatpush1.msra.mxu0 0.0
    %300 = vmatprep.subr.mxu0 0.0
    %301 = vmatpush1.msra.mxu0 0.0
    %302 = vmatprep.subr.mxu0 0.0
    %303 = vmatpush1.msra.mxu0 0.0
    %304 = vmatprep.subr.mxu0 0.0
    %305 = vmatpush1.msra.mxu0 0.0
    %306 = vmatprep.subr.mxu0 0.0
    %307 = vmatpush1.msra.mxu0 0.0
    %308 = vmatprep.subr.mxu0 0.0
    %309 = vmatpush1.msra.mxu0 0.0
    %310 = vmatprep.subr.mxu0 0.0
    %311 = vmatpush1.msra.mxu0 0.0
    %312 = vmatprep.mubr.f32.mxu0 0.0
    %313 = vmatmul.mubr.f32.gmra.mrb[0].mxu0 %v246
    %v314 = vpop.f32.mrb[0].mxu0
    %v315 = vadd.f32 0.0, %v314
    %v316 = vpop.f32.mrb[0].mxu0
    %317 = vdwg.mxu0
    %v318 = vadd.f32 %v243, %v315
    %v319 = vxor.u32 %v318, 2147483648
    %v320 = vmul.f32 %v319, 1.442695
    %v321 = vpow.pop %v320
    %v322 = vadd.f32 %v321, 1.0
    %v323 = vrcp.pop %v322
    %v324 = vmul.f32 1.0, %v323
    %v325 = vtanh.pop %v318
    %v326 = vmul.f32 %v324, 0.0
    %328 = vrot.lane.b32.xlu0 %v325, 64
    %v329 = vpop.permute.xlu0 %328
    %v331 = vmul.f32 %v324, %v329
    %333 = vrot.lane.b32.xlu0 %v331, 32
    %v334 = vpop.permute.xlu0 %333
    %v336 = vadd.f32 %v326, %v334
    %v337 = vtanh.pop %v336
    %339 = vrot.lane.b32.xlu0 %v337, 64
    %v340 = vpop.permute.xlu0 %339
    %v342 = vmul.f32 %v324, %v340
    %344 = vrot.lane.b32.xlu0 %v342, 32
    %v345 = vpop.permute.xlu0 %344
    %347 = vst.msk [vmem:[#allocation3] sm:$0xff] %vm244, %v345
    %s348 = scalar_lea.vmem [#allocation2], 8
    %v349 = vld [vmem:[%s348] sm:$0xff]
    %v350 = vsel %vm244, %v345, 0
    %352 = vmatprep.subr.mxu0 0.0
    %353 = vmatpush1.msra.mxu0 %v239
    %354 = vmatprep.subr.mxu0 0.0
    %355 = vmatpush1.msra.mxu0 %v240
    %356 = vmatprep.subr.mxu0 0.0
    %357 = vmatpush1.msra.mxu0 %v241
    %358 = vmatprep.subr.mxu0 0.0
    %359 = vmatpush1.msra.mxu0 %v242
    %360 = vmatprep.subr.mxu0 0.0
    %361 = vmatpush1.msra.mxu0 0.0
    %362 = vmatprep.subr.mxu0 0.0
    %363 = vmatpush1.msra.mxu0 0.0
    %364 = vmatprep.subr.mxu0 0.0
    %365 = vmatpush1.msra.mxu0 0.0
    %366 = vmatprep.subr.mxu0 0.0
    %367 = vmatpush1.msra.mxu0 0.0
    %368 = vmatprep.subr.mxu0 0.0
    %369 = vmatpush1.msra.mxu0 0.0
    %370 = vmatprep.subr.mxu0 0.0
    %371 = vmatpush1.msra.mxu0 0.0
    %372 = vmatprep.subr.mxu0 0.0
    %373 = vmatpush1.msra.mxu0 0.0
    %374 = vmatprep.subr.mxu0 0.0
    %375 = vmatpush1.msra.mxu0 0.0
    %376 = vmatprep.subr.mxu0 0.0
    %377 = vmatpush1.msra.mxu0 0.0
    %378 = vmatprep.subr.mxu0 0.0
    %379 = vmatpush1.msra.mxu0 0.0
    %380 = vmatprep.subr.mxu0 0.0
    %381 = vmatpush1.msra.mxu0 0.0
    %382 = vmatprep.subr.mxu0 0.0
    %383 = vmatpush1.msra.mxu0 0.0
    %384 = vmatprep.subr.mxu0 0.0
    %385 = vmatpush1.msra.mxu0 0.0
    %386 = vmatprep.subr.mxu0 0.0
    %387 = vmatpush1.msra.mxu0 0.0
    %388 = vmatprep.subr.mxu0 0.0
    %389 = vmatpush1.msra.mxu0 0.0
    %390 = vmatprep.subr.mxu0 0.0
    %391 = vmatpush1.msra.mxu0 0.0
    %392 = vmatprep.subr.mxu0 0.0
    %393 = vmatpush1.msra.mxu0 0.0
    %394 = vmatprep.subr.mxu0 0.0
    %395 = vmatpush1.msra.mxu0 0.0
    %396 = vmatprep.subr.mxu0 0.0
    %397 = vmatpush1.msra.mxu0 0.0
    %398 = vmatprep.subr.mxu0 0.0
    %399 = vmatpush1.msra.mxu0 0.0
    %400 = vmatprep.subr.mxu0 0.0
    %401 = vmatpush1.msra.mxu0 0.0
    %402 = vmatprep.subr.mxu0 0.0
    %403 = vmatpush1.msra.mxu0 0.0
    %404 = vmatprep.subr.mxu0 0.0
    %405 = vmatpush1.msra.mxu0 0.0
    %406 = vmatprep.subr.mxu0 0.0
    %407 = vmatpush1.msra.mxu0 0.0
    %408 = vmatprep.subr.mxu0 0.0
    %409 = vmatpush1.msra.mxu0 0.0
    %410 = vmatprep.subr.mxu0 0.0
    %411 = vmatpush1.msra.mxu0 0.0
    %412 = vmatprep.subr.mxu0 0.0
    %413 = vmatpush1.msra.mxu0 0.0
    %414 = vmatprep.subr.mxu0 0.0
    %415 = vmatpush1.msra.mxu0 0.0
    %416 = vmatprep.mubr.f32.mxu0 0.0
    %417 = vmatmul.mubr.f32.gmra.mrb[0].mxu0 %v350
    %v418 = vpop.f32.mrb[0].mxu0
    %v419 = vadd.f32 0.0, %v418
    %v420 = vpop.f32.mrb[0].mxu0
    %421 = vdwg.mxu0
    %v422 = vadd.f32 %v349, %v419
    %v423 = vxor.u32 %v422, 2147483648
    %v424 = vmul.f32 %v423, 1.442695
    %v425 = vpow.pop %v424
    %v426 = vadd.f32 %v425, 1.0
    %v427 = vrcp.pop %v426
    %v428 = vmul.f32 1.0, %v427
    %v429 = vtanh.pop %v422
    %v430 = vmul.f32 %v428, %v336
    %432 = vrot.lane.b32.xlu0 %v429, 64
    %v433 = vpop.permute.xlu0 %432
    %v435 = vmul.f32 %v428, %v433
    %437 = vrot.lane.b32.xlu0 %v435, 32
    %v438 = vpop.permute.xlu0 %437
    %v440 = vadd.f32 %v430, %v438
    %v441 = vtanh.pop %v440
    %443 = vrot.lane.b32.xlu0 %v441, 64
    %v444 = vpop.permute.xlu0 %443
    %v446 = vmul.f32 %v428, %v444
    %448 = vrot.lane.b32.xlu0 %v446, 32
    %v449 = vpop.permute.xlu0 %448
    %s451 = scalar_lea.vmem [#allocation3], 8
    %452 = vst.msk [vmem:[%s451] sm:$0xff] %vm244, %v449
    %s453 = scalar_lea.vmem [#allocation2], 16
    %v454 = vld [vmem:[%s453] sm:$0xff]
    %v455 = vsel %vm244, %v449, 0
    %457 = vmatprep.subr.mxu0 0.0
    %458 = vmatpush1.msra.mxu0 %v239
    %459 = vmatprep.subr.mxu0 0.0
    %460 = vmatpush1.msra.mxu0 %v240
    %461 = vmatprep.subr.mxu0 0.0
    %462 = vmatpush1.msra.mxu0 %v241
    %463 = vmatprep.subr.mxu0 0.0
    %464 = vmatpush1.msra.mxu0 %v242
    %465 = vmatprep.subr.mxu0 0.0
    %466 = vmatpush1.msra.mxu0 0.0
    %467 = vmatprep.subr.mxu0 0.0
    %468 = vmatpush1.msra.mxu0 0.0
    %469 = vmatprep.subr.mxu0 0.0
    %470 = vmatpush1.msra.mxu0 0.0
    %471 = vmatprep.subr.mxu0 0.0
    %472 = vmatpush1.msra.mxu0 0.0
    %473 = vmatprep.subr.mxu0 0.0
    %474 = vmatpush1.msra.mxu0 0.0
    %475 = vmatprep.subr.mxu0 0.0
    %476 = vmatpush1.msra.mxu0 0.0
    %477 = vmatprep.subr.mxu0 0.0
    %478 = vmatpush1.msra.mxu0 0.0
    %479 = vmatprep.subr.mxu0 0.0
    %480 = vmatpush1.msra.mxu0 0.0
    %481 = vmatprep.subr.mxu0 0.0
    %482 = vmatpush1.msra.mxu0 0.0
    %483 = vmatprep.subr.mxu0 0.0
    %484 = vmatpush1.msra.mxu0 0.0
    %485 = vmatprep.subr.mxu0 0.0
    %486 = vmatpush1.msra.mxu0 0.0
    %487 = vmatprep.subr.mxu0 0.0
    %488 = vmatpush1.msra.mxu0 0.0
    %489 = vmatprep.subr.mxu0 0.0
    %490 = vmatpush1.msra.mxu0 0.0
    %491 = vmatprep.subr.mxu0 0.0
    %492 = vmatpush1.msra.mxu0 0.0
    %493 = vmatprep.subr.mxu0 0.0
    %494 = vmatpush1.msra.mxu0 0.0
    %495 = vmatprep.subr.mxu0 0.0
    %496 = vmatpush1.msra.mxu0 0.0
    %497 = vmatprep.subr.mxu0 0.0
    %498 = vmatpush1.msra.mxu0 0.0
    %499 = vmatprep.subr.mxu0 0.0
    %500 = vmatpush1.msra.mxu0 0.0
    %501 = vmatprep.subr.mxu0 0.0
    %502 = vmatpush1.msra.mxu0 0.0
    %503 = vmatprep.subr.mxu0 0.0
    %504 = vmatpush1.msra.mxu0 0.0
    %505 = vmatprep.subr.mxu0 0.0
    %506 = vmatpush1.msra.mxu0 0.0
    %507 = vmatprep.subr.mxu0 0.0
    %508 = vmatpush1.msra.mxu0 0.0
    %509 = vmatprep.subr.mxu0 0.0
    %510 = vmatpush1.msra.mxu0 0.0
    %511 = vmatprep.subr.mxu0 0.0
    %512 = vmatpush1.msra.mxu0 0.0
    %513 = vmatprep.subr.mxu0 0.0
    %514 = vmatpush1.msra.mxu0 0.0
    %515 = vmatprep.subr.mxu0 0.0
    %516 = vmatpush1.msra.mxu0 0.0
    %517 = vmatprep.subr.mxu0 0.0
    %518 = vmatpush1.msra.mxu0 0.0
    %519 = vmatprep.subr.mxu0 0.0
    %520 = vmatpush1.msra.mxu0 0.0
    %521 = vmatprep.mubr.f32.mxu0 0.0
    %522 = vmatmul.mubr.f32.gmra.mrb[0].mxu0 %v455
    %v523 = vpop.f32.mrb[0].mxu0
    %v524 = vadd.f32 0.0, %v523
    %v525 = vpop.f32.mrb[0].mxu0
    %526 = vdwg.mxu0
    %v527 = vadd.f32 %v454, %v524
    %v528 = vxor.u32 %v527, 2147483648
    %v529 = vmul.f32 %v528, 1.442695
    %v530 = vpow.pop %v529
    %v531 = vadd.f32 %v530, 1.0
    %v532 = vrcp.pop %v531
    %v533 = vmul.f32 1.0, %v532
    %v534 = vtanh.pop %v527
    %v535 = vmul.f32 %v533, %v440
    %537 = vrot.lane.b32.xlu0 %v534, 64
    %v538 = vpop.permute.xlu0 %537
    %v540 = vmul.f32 %v533, %v538
    %542 = vrot.lane.b32.xlu0 %v540, 32
    %v543 = vpop.permute.xlu0 %542
    %v545 = vadd.f32 %v535, %v543
    %v546 = vtanh.pop %v545
    %548 = vrot.lane.b32.xlu0 %v546, 64
    %v549 = vpop.permute.xlu0 %548
    %v551 = vmul.f32 %v533, %v549
    %553 = vrot.lane.b32.xlu0 %v551, 32
    %v554 = vpop.permute.xlu0 %553
    %s556 = scalar_lea.vmem [#allocation3], 16
    %557 = vst.msk [vmem:[%s556] sm:$0xff] %vm244, %v554
    %s558 = scalar_lea.vmem [#allocation2], 24
    %v559 = vld [vmem:[%s558] sm:$0xff]
    %v560 = vsel %vm244, %v554, 0
    %562 = vmatprep.subr.mxu0 0.0
    %563 = vmatpush1.msra.mxu0 %v239
    %564 = vmatprep.subr.mxu0 0.0
    %565 = vmatpush1.msra.mxu0 %v240
    %566 = vmatprep.subr.mxu0 0.0
    %567 = vmatpush1.msra.mxu0 %v241
    %568 = vmatprep.subr.mxu0 0.0
    %569 = vmatpush1.msra.mxu0 %v242
    %570 = vmatprep.subr.mxu0 0.0
    %571 = vmatpush1.msra.mxu0 0.0
    %572 = vmatprep.subr.mxu0 0.0
    %573 = vmatpush1.msra.mxu0 0.0
    %574 = vmatprep.subr.mxu0 0.0
    %575 = vmatpush1.msra.mxu0 0.0
    %576 = vmatprep.subr.mxu0 0.0
    %577 = vmatpush1.msra.mxu0 0.0
    %578 = vmatprep.subr.mxu0 0.0
    %579 = vmatpush1.msra.mxu0 0.0
    %580 = vmatprep.subr.mxu0 0.0
    %581 = vmatpush1.msra.mxu0 0.0
    %582 = vmatprep.subr.mxu0 0.0
    %583 = vmatpush1.msra.mxu0 0.0
    %584 = vmatprep.subr.mxu0 0.0
    %585 = vmatpush1.msra.mxu0 0.0
    %586 = vmatprep.subr.mxu0 0.0
    %587 = vmatpush1.msra.mxu0 0.0
    %588 = vmatprep.subr.mxu0 0.0
    %589 = vmatpush1.msra.mxu0 0.0
    %590 = vmatprep.subr.mxu0 0.0
    %591 = vmatpush1.msra.mxu0 0.0
    %592 = vmatprep.subr.mxu0 0.0
    %593 = vmatpush1.msra.mxu0 0.0
    %594 = vmatprep.subr.mxu0 0.0
    %595 = vmatpush1.msra.mxu0 0.0
    %596 = vmatprep.subr.mxu0 0.0
    %597 = vmatpush1.msra.mxu0 0.0
    %598 = vmatprep.subr.mxu0 0.0
    %599 = vmatpush1.msra.mxu0 0.0
    %600 = vmatprep.subr.mxu0 0.0
    %601 = vmatpush1.msra.mxu0 0.0
    %602 = vmatprep.subr.mxu0 0.0
    %603 = vmatpush1.msra.mxu0 0.0
    %604 = vmatprep.subr.mxu0 0.0
    %605 = vmatpush1.msra.mxu0 0.0
    %606 = vmatprep.subr.mxu0 0.0
    %607 = vmatpush1.msra.mxu0 0.0
    %608 = vmatprep.subr.mxu0 0.0
    %609 = vmatpush1.msra.mxu0 0.0
    %610 = vmatprep.subr.mxu0 0.0
    %611 = vmatpush1.msra.mxu0 0.0
    %612 = vmatprep.subr.mxu0 0.0
    %613 = vmatpush1.msra.mxu0 0.0
    %614 = vmatprep.subr.mxu0 0.0
    %615 = vmatpush1.msra.mxu0 0.0
    %616 = vmatprep.subr.mxu0 0.0
    %617 = vmatpush1.msra.mxu0 0.0
    %618 = vmatprep.subr.mxu0 0.0
    %619 = vmatpush1.msra.mxu0 0.0
    %620 = vmatprep.subr.mxu0 0.0
    %621 = vmatpush1.msra.mxu0 0.0
    %622 = vmatprep.subr.mxu0 0.0
    %623 = vmatpush1.msra.mxu0 0.0
    %624 = vmatprep.subr.mxu0 0.0
    %625 = vmatpush1.msra.mxu0 0.0
    %626 = vmatprep.mubr.f32.mxu0 0.0
    %627 = vmatmul.mubr.f32.gmra.mrb[0].mxu0 %v560
    %v628 = vpop.f32.mrb[0].mxu0
    %v629 = vadd.f32 0.0, %v628
    %v630 = vpop.f32.mrb[0].mxu0
    %631 = vdwg.mxu0
    %v632 = vadd.f32 %v559, %v629
    %v633 = vxor.u32 %v632, 2147483648
    %v634 = vmul.f32 %v633, 1.442695
    %v635 = vpow.pop %v634
    %v636 = vadd.f32 %v635, 1.0
    %v637 = vrcp.pop %v636
    %v638 = vmul.f32 1.0, %v637
    %v639 = vtanh.pop %v632
    %v640 = vmul.f32 %v638, %v545
    %642 = vrot.lane.b32.xlu0 %v639, 64
    %v643 = vpop.permute.xlu0 %642
    %v645 = vmul.f32 %v638, %v643
    %647 = vrot.lane.b32.xlu0 %v645, 32
    %v648 = vpop.permute.xlu0 %647
    %v650 = vadd.f32 %v640, %v648
    %v651 = vtanh.pop %v650
    %653 = vrot.lane.b32.xlu0 %v651, 64
    %v654 = vpop.permute.xlu0 %653
    %v656 = vmul.f32 %v638, %v654
    %658 = vrot.lane.b32.xlu0 %v656, 32
    %v659 = vpop.permute.xlu0 %658
    %s661 = scalar_lea.vmem [#allocation3], 24
    %662 = vst.msk [vmem:[%s661] sm:$0xff] %vm244, %v659
    %s663 = scalar_lea.vmem [#allocation2], 32
    %v664 = vld [vmem:[%s663] sm:$0xff]
    %v665 = vsel %vm244, %v659, 0
    %667 = vmatprep.subr.mxu0 0.0
    %668 = vmatpush1.msra.mxu0 %v239
    %669 = vmatprep.subr.mxu0 0.0
    %670 = vmatpush1.msra.mxu0 %v240
    %671 = vmatprep.subr.mxu0 0.0
    %672 = vmatpush1.msra.mxu0 %v241
    %673 = vmatprep.subr.mxu0 0.0
    %674 = vmatpush1.msra.mxu0 %v242
    %675 = vmatprep.subr.mxu0 0.0
    %676 = vmatpush1.msra.mxu0 0.0
    %677 = vmatprep.subr.mxu0 0.0
    %678 = vmatpush1.msra.mxu0 0.0
    %679 = vmatprep.subr.mxu0 0.0
    %680 = vmatpush1.msra.mxu0 0.0
    %681 = vmatprep.subr.mxu0 0.0
    %682 = vmatpush1.msra.mxu0 0.0
    %683 = vmatprep.subr.mxu0 0.0
    %684 = vmatpush1.msra.mxu0 0.0
    %685 = vmatprep.subr.mxu0 0.0
    %686 = vmatpush1.msra.mxu0 0.0
    %687 = vmatprep.subr.mxu0 0.0
    %688 = vmatpush1.msra.mxu0 0.0
    %689 = vmatprep.subr.mxu0 0.0
    %690 = vmatpush1.msra.mxu0 0.0
    %691 = vmatprep.subr.mxu0 0.0
    %692 = vmatpush1.msra.mxu0 0.0
    %693 = vmatprep.subr.mxu0 0.0
    %694 = vmatpush1.msra.mxu0 0.0
    %695 = vmatprep.subr.mxu0 0.0
    %696 = vmatpush1.msra.mxu0 0.0
    %697 = vmatprep.subr.mxu0 0.0
    %698 = vmatpush1.msra.mxu0 0.0
    %699 = vmatprep.subr.mxu0 0.0
    %700 = vmatpush1.msra.mxu0 0.0
    %701 = vmatprep.subr.mxu0 0.0
    %702 = vmatpush1.msra.mxu0 0.0
    %703 = vmatprep.subr.mxu0 0.0
    %704 = vmatpush1.msra.mxu0 0.0
    %705 = vmatprep.subr.mxu0 0.0
    %706 = vmatpush1.msra.mxu0 0.0
    %707 = vmatprep.subr.mxu0 0.0
    %708 = vmatpush1.msra.mxu0 0.0
    %709 = vmatprep.subr.mxu0 0.0
    %710 = vmatpush1.msra.mxu0 0.0
    %711 = vmatprep.subr.mxu0 0.0
    %712 = vmatpush1.msra.mxu0 0.0
    %713 = vmatprep.subr.mxu0 0.0
    %714 = vmatpush1.msra.mxu0 0.0
    %715 = vmatprep.subr.mxu0 0.0
    %716 = vmatpush1.msra.mxu0 0.0
    %717 = vmatprep.subr.mxu0 0.0
    %718 = vmatpush1.msra.mxu0 0.0
    %719 = vmatprep.subr.mxu0 0.0
    %720 = vmatpush1.msra.mxu0 0.0
    %721 = vmatprep.subr.mxu0 0.0
    %722 = vmatpush1.msra.mxu0 0.0
    %723 = vmatprep.subr.mxu0 0.0
    %724 = vmatpush1.msra.mxu0 0.0
    %725 = vmatprep.subr.mxu0 0.0
    %726 = vmatpush1.msra.mxu0 0.0
    %727 = vmatprep.subr.mxu0 0.0
    %728 = vmatpush1.msra.mxu0 0.0
    %729 = vmatprep.subr.mxu0 0.0
    %730 = vmatpush1.msra.mxu0 0.0
    %731 = vmatprep.mubr.f32.mxu0 0.0
    %732 = vmatmul.mubr.f32.gmra.mrb[0].mxu0 %v665
    %v733 = vpop.f32.mrb[0].mxu0
    %v734 = vadd.f32 0.0, %v733
    %v735 = vpop.f32.mrb[0].mxu0
    %736 = vdwg.mxu0
    %v737 = vadd.f32 %v664, %v734
    %v738 = vxor.u32 %v737, 2147483648
    %v739 = vmul.f32 %v738, 1.442695
    %v740 = vpow.pop %v739
    %v741 = vadd.f32 %v740, 1.0
    %v742 = vrcp.pop %v741
    %v743 = vmul.f32 1.0, %v742
    %v744 = vtanh.pop %v737
    %v745 = vmul.f32 %v743, %v650
    %747 = vrot.lane.b32.xlu0 %v744, 64
    %v748 = vpop.permute.xlu0 %747
    %v750 = vmul.f32 %v743, %v748
    %752 = vrot.lane.b32.xlu0 %v750, 32
    %v753 = vpop.permute.xlu0 %752
    %v755 = vadd.f32 %v745, %v753
    %v756 = vtanh.pop %v755
    %758 = vrot.lane.b32.xlu0 %v756, 64
    %v759 = vpop.permute.xlu0 %758
    %v761 = vmul.f32 %v743, %v759
    %763 = vrot.lane.b32.xlu0 %v761, 32
    %v764 = vpop.permute.xlu0 %763
    %s766 = scalar_lea.vmem [#allocation3], 32
    %767 = vst.msk [vmem:[%s766] sm:$0xff] %vm244, %v764
    %s768 = scalar_lea.vmem [#allocation2], 40
    %v769 = vld [vmem:[%s768] sm:$0xff]
    %v770 = vsel %vm244, %v764, 0
    %772 = vmatprep.subr.mxu0 0.0
    %773 = vmatpush1.msra.mxu0 %v239
    %774 = vmatprep.subr.mxu0 0.0
    %775 = vmatpush1.msra.mxu0 %v240
    %776 = vmatprep.subr.mxu0 0.0
    %777 = vmatpush1.msra.mxu0 %v241
    %778 = vmatprep.subr.mxu0 0.0
    %779 = vmatpush1.msra.mxu0 %v242
    %780 = vmatprep.subr.mxu0 0.0
    %781 = vmatpush1.msra.mxu0 0.0
    %782 = vmatprep.subr.mxu0 0.0
    %783 = vmatpush1.msra.mxu0 0.0
    %784 = vmatprep.subr.mxu0 0.0
    %785 = vmatpush1.msra.mxu0 0.0
    %786 = vmatprep.subr.mxu0 0.0
    %787 = vmatpush1.msra.mxu0 0.0
    %788 = vmatprep.subr.mxu0 0.0
    %789 = vmatpush1.msra.mxu0 0.0
    %790 = vmatprep.subr.mxu0 0.0
    %791 = vmatpush1.msra.mxu0 0.0
    %792 = vmatprep.subr.mxu0 0.0
    %793 = vmatpush1.msra.mxu0 0.0
    %794 = vmatprep.subr.mxu0 0.0
    %795 = vmatpush1.msra.mxu0 0.0
    %796 = vmatprep.subr.mxu0 0.0
    %797 = vmatpush1.msra.mxu0 0.0
    %798 = vmatprep.subr.mxu0 0.0
    %799 = vmatpush1.msra.mxu0 0.0
    %800 = vmatprep.subr.mxu0 0.0
    %801 = vmatpush1.msra.mxu0 0.0
    %802 = vmatprep.subr.mxu0 0.0
    %803 = vmatpush1.msra.mxu0 0.0
    %804 = vmatprep.subr.mxu0 0.0
    %805 = vmatpush1.msra.mxu0 0.0
    %806 = vmatprep.subr.mxu0 0.0
    %807 = vmatpush1.msra.mxu0 0.0
    %808 = vmatprep.subr.mxu0 0.0
    %809 = vmatpush1.msra.mxu0 0.0
    %810 = vmatprep.subr.mxu0 0.0
    %811 = vmatpush1.msra.mxu0 0.0
    %812 = vmatprep.subr.mxu0 0.0
    %813 = vmatpush1.msra.mxu0 0.0
    %814 = vmatprep.subr.mxu0 0.0
    %815 = vmatpush1.msra.mxu0 0.0
    %816 = vmatprep.subr.mxu0 0.0
    %817 = vmatpush1.msra.mxu0 0.0
    %818 = vmatprep.subr.mxu0 0.0
    %819 = vmatpush1.msra.mxu0 0.0
    %820 = vmatprep.subr.mxu0 0.0
    %821 = vmatpush1.msra.mxu0 0.0
    %822 = vmatprep.subr.mxu0 0.0
    %823 = vmatpush1.msra.mxu0 0.0
    %824 = vmatprep.subr.mxu0 0.0
    %825 = vmatpush1.msra.mxu0 0.0
    %826 = vmatprep.subr.mxu0 0.0
    %827 = vmatpush1.msra.mxu0 0.0
    %828 = vmatprep.subr.mxu0 0.0
    %829 = vmatpush1.msra.mxu0 0.0
    %830 = vmatprep.subr.mxu0 0.0
    %831 = vmatpush1.msra.mxu0 0.0
    %832 = vmatprep.subr.mxu0 0.0
    %833 = vmatpush1.msra.mxu0 0.0
    %834 = vmatprep.subr.mxu0 0.0
    %835 = vmatpush1.msra.mxu0 0.0
    %836 = vmatprep.mubr.f32.mxu0 0.0
    %837 = vmatmul.mubr.f32.gmra.mrb[0].mxu0 %v770
    %v838 = vpop.f32.mrb[0].mxu0
    %v839 = vadd.f32 0.0, %v838
    %v840 = vpop.f32.mrb[0].mxu0
    %841 = vdwg.mxu0
    %v842 = vadd.f32 %v769, %v839
    %v843 = vxor.u32 %v842, 2147483648
    %v844 = vmul.f32 %v843, 1.442695
    %v845 = vpow.pop %v844
    %v846 = vadd.f32 %v845, 1.0
    %v847 = vrcp.pop %v846
    %v848 = vmul.f32 1.0, %v847
    %v849 = vtanh.pop %v842
    %v850 = vmul.f32 %v848, %v755
    %852 = vrot.lane.b32.xlu0 %v849, 64
    %v853 = vpop.permute.xlu0 %852
    %v855 = vmul.f32 %v848, %v853
    %857 = vrot.lane.b32.xlu0 %v855, 32
    %v858 = vpop.permute.xlu0 %857
    %v860 = vadd.f32 %v850, %v858
    %v861 = vtanh.pop %v860
    %863 = vrot.lane.b32.xlu0 %v861, 64
    %v864 = vpop.permute.xlu0 %863
    %v866 = vmul.f32 %v848, %v864
    %868 = vrot.lane.b32.xlu0 %v866, 32
    %v869 = vpop.permute.xlu0 %868
    %s871 = scalar_lea.vmem [#allocation3], 40
    %872 = vst.msk [vmem:[%s871] sm:$0xff] %vm244, %v869
    %s873 = scalar_lea.vmem [#allocation2], 48
    %v874 = vld [vmem:[%s873] sm:$0xff]
    %v875 = vsel %vm244, %v869, 0
    %877 = vmatprep.subr.mxu0 0.0
    %878 = vmatpush1.msra.mxu0 %v239
    %879 = vmatprep.subr.mxu0 0.0
    %880 = vmatpush1.msra.mxu0 %v240
    %881 = vmatprep.subr.mxu0 0.0
    %882 = vmatpush1.msra.mxu0 %v241
    %883 = vmatprep.subr.mxu0 0.0
    %884 = vmatpush1.msra.mxu0 %v242
    %885 = vmatprep.subr.mxu0 0.0
    %886 = vmatpush1.msra.mxu0 0.0
    %887 = vmatprep.subr.mxu0 0.0
    %888 = vmatpush1.msra.mxu0 0.0
    %889 = vmatprep.subr.mxu0 0.0
    %890 = vmatpush1.msra.mxu0 0.0
    %891 = vmatprep.subr.mxu0 0.0
    %892 = vmatpush1.msra.mxu0 0.0
    %893 = vmatprep.subr.mxu0 0.0
    %894 = vmatpush1.msra.mxu0 0.0
    %895 = vmatprep.subr.mxu0 0.0
    %896 = vmatpush1.msra.mxu0 0.0
    %897 = vmatprep.subr.mxu0 0.0
    %898 = vmatpush1.msra.mxu0 0.0
    %899 = vmatprep.subr.mxu0 0.0
    %900 = vmatpush1.msra.mxu0 0.0
    %901 = vmatprep.subr.mxu0 0.0
    %902 = vmatpush1.msra.mxu0 0.0
    %903 = vmatprep.subr.mxu0 0.0
    %904 = vmatpush1.msra.mxu0 0.0
    %905 = vmatprep.subr.mxu0 0.0
    %906 = vmatpush1.msra.mxu0 0.0
    %907 = vmatprep.subr.mxu0 0.0
    %908 = vmatpush1.msra.mxu0 0.0
    %909 = vmatprep.subr.mxu0 0.0
    %910 = vmatpush1.msra.mxu0 0.0
    %911 = vmatprep.subr.mxu0 0.0
    %912 = vmatpush1.msra.mxu0 0.0
    %913 = vmatprep.subr.mxu0 0.0
    %914 = vmatpush1.msra.mxu0 0.0
    %915 = vmatprep.subr.mxu0 0.0
    %916 = vmatpush1.msra.mxu0 0.0
    %917 = vmatprep.subr.mxu0 0.0
    %918 = vmatpush1.msra.mxu0 0.0
    %919 = vmatprep.subr.mxu0 0.0
    %920 = vmatpush1.msra.mxu0 0.0
    %921 = vmatprep.subr.mxu0 0.0
    %922 = vmatpush1.msra.mxu0 0.0
    %923 = vmatprep.subr.mxu0 0.0
    %924 = vmatpush1.msra.mxu0 0.0
    %925 = vmatprep.subr.mxu0 0.0
    %926 = vmatpush1.msra.mxu0 0.0
    %927 = vmatprep.subr.mxu0 0.0
    %928 = vmatpush1.msra.mxu0 0.0
    %929 = vmatprep.subr.mxu0 0.0
    %930 = vmatpush1.msra.mxu0 0.0
    %931 = vmatprep.subr.mxu0 0.0
    %932 = vmatpush1.msra.mxu0 0.0
    %933 = vmatprep.subr.mxu0 0.0
    %934 = vmatpush1.msra.mxu0 0.0
    %935 = vmatprep.subr.mxu0 0.0
    %936 = vmatpush1.msra.mxu0 0.0
    %937 = vmatprep.subr.mxu0 0.0
    %938 = vmatpush1.msra.mxu0 0.0
    %939 = vmatprep.subr.mxu0 0.0
    %940 = vmatpush1.msra.mxu0 0.0
    %941 = vmatprep.mubr.f32.mxu0 0.0
    %942 = vmatmul.mubr.f32.gmra.mrb[0].mxu0 %v875
    %v943 = vpop.f32.mrb[0].mxu0
    %v944 = vadd.f32 0.0, %v943
    %v945 = vpop.f32.mrb[0].mxu0
    %946 = vdwg.mxu0
    %v947 = vadd.f32 %v874, %v944
    %v948 = vxor.u32 %v947, 2147483648
    %v949 = vmul.f32 %v948, 1.442695
    %v950 = vpow.pop %v949
    %v951 = vadd.f32 %v950, 1.0
    %v952 = vrcp.pop %v951
    %v953 = vmul.f32 1.0, %v952
    %v954 = vtanh.pop %v947
    %v955 = vmul.f32 %v953, %v860
    %957 = vrot.lane.b32.xlu0 %v954, 64
    %v958 = vpop.permute.xlu0 %957
    %v960 = vmul.f32 %v953, %v958
    %962 = vrot.lane.b32.xlu0 %v960, 32
    %v963 = vpop.permute.xlu0 %962
    %v965 = vadd.f32 %v955, %v963
    %v966 = vtanh.pop %v965
    %968 = vrot.lane.b32.xlu0 %v966, 64
    %v969 = vpop.permute.xlu0 %968
    %v971 = vmul.f32 %v953, %v969
    %973 = vrot.lane.b32.xlu0 %v971, 32
    %v974 = vpop.permute.xlu0 %973
    %s976 = scalar_lea.vmem [#allocation3], 48
    %977 = vst.msk [vmem:[%s976] sm:$0xff] %vm244, %v974
    %s978 = scalar_lea.vmem [#allocation2], 56
    %v979 = vld [vmem:[%s978] sm:$0xff]
    %v980 = vsel %vm244, %v974, 0
    %982 = vmatprep.subr.mxu0 0.0
    %983 = vmatpush1.msra.mxu0 %v239
    %984 = vmatprep.subr.mxu0 0.0
    %985 = vmatpush1.msra.mxu0 %v240
    %986 = vmatprep.subr.mxu0 0.0
    %987 = vmatpush1.msra.mxu0 %v241
    %988 = vmatprep.subr.mxu0 0.0
    %989 = vmatpush1.msra.mxu0 %v242
    %990 = vmatprep.subr.mxu0 0.0
    %991 = vmatpush1.msra.mxu0 0.0
    %992 = vmatprep.subr.mxu0 0.0
    %993 = vmatpush1.msra.mxu0 0.0
    %994 = vmatprep.subr.mxu0 0.0
    %995 = vmatpush1.msra.mxu0 0.0
    %996 = vmatprep.subr.mxu0 0.0
    %997 = vmatpush1.msra.mxu0 0.0
    %998 = vmatprep.subr.mxu0 0.0
    %999 = vmatpush1.msra.mxu0 0.0
    %1000 = vmatprep.subr.mxu0 0.0
    %1001 = vmatpush1.msra.mxu0 0.0
    %1002 = vmatprep.subr.mxu0 0.0
    %1003 = vmatpush1.msra.mxu0 0.0
    %1004 = vmatprep.subr.mxu0 0.0
    %1005 = vmatpush1.msra.mxu0 0.0
    %1006 = vmatprep.subr.mxu0 0.0
    %1007 = vmatpush1.msra.mxu0 0.0
    %1008 = vmatprep.subr.mxu0 0.0
    %1009 = vmatpush1.msra.mxu0 0.0
    %1010 = vmatprep.subr.mxu0 0.0
    %1011 = vmatpush1.msra.mxu0 0.0
    %1012 = vmatprep.subr.mxu0 0.0
    %1013 = vmatpush1.msra.mxu0 0.0
    %1014 = vmatprep.subr.mxu0 0.0
    %1015 = vmatpush1.msra.mxu0 0.0
    %1016 = vmatprep.subr.mxu0 0.0
    %1017 = vmatpush1.msra.mxu0 0.0
    %1018 = vmatprep.subr.mxu0 0.0
    %1019 = vmatpush1.msra.mxu0 0.0
    %1020 = vmatprep.subr.mxu0 0.0
    %1021 = vmatpush1.msra.mxu0 0.0
    %1022 = vmatprep.subr.mxu0 0.0
    %1023 = vmatpush1.msra.mxu0 0.0
    %1024 = vmatprep.subr.mxu0 0.0
    %1025 = vmatpush1.msra.mxu0 0.0
    %1026 = vmatprep.subr.mxu0 0.0
    %1027 = vmatpush1.msra.mxu0 0.0
    %1028 = vmatprep.subr.mxu0 0.0
    %1029 = vmatpush1.msra.mxu0 0.0
    %1030 = vmatprep.subr.mxu0 0.0
    %1031 = vmatpush1.msra.mxu0 0.0
    %1032 = vmatprep.subr.mxu0 0.0
    %1033 = vmatpush1.msra.mxu0 0.0
    %1034 = vmatprep.subr.mxu0 0.0
    %1035 = vmatpush1.msra.mxu0 0.0
    %1036 = vmatprep.subr.mxu0 0.0
    %1037 = vmatpush1.msra.mxu0 0.0
    %1038 = vmatprep.subr.mxu0 0.0
    %1039 = vmatpush1.msra.mxu0 0.0
    %1040 = vmatprep.subr.mxu0 0.0
    %1041 = vmatpush1.msra.mxu0 0.0
    %1042 = vmatprep.subr.mxu0 0.0
    %1043 = vmatpush1.msra.mxu0 0.0
    %1044 = vmatprep.subr.mxu0 0.0
    %1045 = vmatpush1.msra.mxu0 0.0
    %1046 = vmatprep.mubr.f32.mxu0 0.0
    %1047 = vmatmul.mubr.f32.gmra.mrb[0].mxu0 %v980
    %v1048 = vpop.f32.mrb[0].mxu0
    %v1049 = vadd.f32 0.0, %v1048
    %v1050 = vpop.f32.mrb[0].mxu0
    %1051 = vdwg.mxu0
    %v1052 = vadd.f32 %v979, %v1049
    %v1053 = vxor.u32 %v1052, 2147483648
    %v1054 = vmul.f32 %v1053, 1.442695
    %v1055 = vpow.pop %v1054
    %v1056 = vadd.f32 %v1055, 1.0
    %v1057 = vrcp.pop %v1056
    %v1058 = vmul.f32 1.0, %v1057
    %v1059 = vtanh.pop %v1052
    %v1060 = vmul.f32 %v1058, %v965
    %1062 = vrot.lane.b32.xlu0 %v1059, 64
    %v1063 = vpop.permute.xlu0 %1062
    %v1065 = vmul.f32 %v1058, %v1063
    %1067 = vrot.lane.b32.xlu0 %v1065, 32
    %v1068 = vpop.permute.xlu0 %1067
    %v1070 = vadd.f32 %v1060, %v1068
    %v1071 = vtanh.pop %v1070
    %1073 = vrot.lane.b32.xlu0 %v1071, 64
    %v1074 = vpop.permute.xlu0 %1073
    %v1076 = vmul.f32 %v1058, %v1074
    %1078 = vrot.lane.b32.xlu0 %v1076, 32
    %v1079 = vpop.permute.xlu0 %1078
    %s1081 = scalar_lea.vmem [#allocation3], 56
    %1082 = vst.msk [vmem:[%s1081] sm:$0xff] %vm244, %v1079
    %v1083 = vld [vmem:[#allocation3] sm:$0xff]
    %v1084 = vld [vmem:[#allocation3 + $0x8] sm:$0xff]
    %v1085 = vld [vmem:[#allocation3 + $0x10] sm:$0xff]
    %v1086 = vld [vmem:[#allocation3 + $0x18] sm:$0xff]
    %v1087 = vld [vmem:[#allocation3 + $0x20] sm:$0xff]
    %v1088 = vld [vmem:[#allocation3 + $0x28] sm:$0xff]
    %v1089 = vld [vmem:[#allocation3 + $0x30] sm:$0xff]
    %v1090 = vld [vmem:[#allocation3 + $0x38] sm:$0xff]
    %v1091 = vld [vmem:[%s5] sm:$0xff]
    %v1092 = vld [vmem:[%s5 + $0x8] sm:$0xff]
    %v1093 = vld [vmem:[%s5 + $0x10] sm:$0xff]
    %v1094 = vld [vmem:[%s5 + $0x18] sm:$0xff]
    %v1095 = vld [vmem:[#allocation4] sm:$0x1]
    %v1097 = vlaneseq
    %v1098 = vshrl.u32 %v1097, 7
    %v1099 = vsub.s32 0, %v1098
    %v1100 = vrot.slane %v1095, %v1099
    %v1103 = vsel %vm244, %v1083, 0
    %v1106 = vsel %vm244, %v1084, 0
    %v1109 = vsel %vm244, %v1085, 0
    %v1112 = vsel %vm244, %v1086, 0
    %v1115 = vsel %vm244, %v1087, 0
    %v1118 = vsel %vm244, %v1088, 0
    %v1121 = vsel %vm244, %v1089, 0
    %v1124 = vsel %vm244, %v1090, 0
    %1126 = vmatprep.subr.mxu0 0.0
    %1127 = vmatpush1.msra.mxu0 %v1091
    %1128 = vmatprep.subr.mxu0 0.0
    %1129 = vmatpush1.msra.mxu0 %v1092
    %1130 = vmatprep.subr.mxu0 0.0
    %1131 = vmatpush1.msra.mxu0 %v1093
    %1132 = vmatprep.subr.mxu0 0.0
    %1133 = vmatpush1.msra.mxu0 %v1094
    %1134 = vmatprep.subr.mxu0 0.0
    %1135 = vmatpush1.msra.mxu0 0.0
    %1136 = vmatprep.subr.mxu0 0.0
    %1137 = vmatpush1.msra.mxu0 0.0
    %1138 = vmatprep.subr.mxu0 0.0
    %1139 = vmatpush1.msra.mxu0 0.0
    %1140 = vmatprep.subr.mxu0 0.0
    %1141 = vmatpush1.msra.mxu0 0.0
    %1142 = vmatprep.subr.mxu0 0.0
    %1143 = vmatpush1.msra.mxu0 0.0
    %1144 = vmatprep.subr.mxu0 0.0
    %1145 = vmatpush1.msra.mxu0 0.0
    %1146 = vmatprep.subr.mxu0 0.0
    %1147 = vmatpush1.msra.mxu0 0.0
    %1148 = vmatprep.subr.mxu0 0.0
    %1149 = vmatpush1.msra.mxu0 0.0
    %1150 = vmatprep.subr.mxu0 0.0
    %1151 = vmatpush1.msra.mxu0 0.0
    %1152 = vmatprep.subr.mxu0 0.0
    %1153 = vmatpush1.msra.mxu0 0.0
    %1154 = vmatprep.subr.mxu0 0.0
    %1155 = vmatpush1.msra.mxu0 0.0
    %1156 = vmatprep.subr.mxu0 0.0
    %1157 = vmatpush1.msra.mxu0 0.0
    %1158 = vmatprep.subr.mxu0 0.0
    %1159 = vmatpush1.msra.mxu0 0.0
    %1160 = vmatprep.subr.mxu0 0.0
    %1161 = vmatpush1.msra.mxu0 0.0
    %1162 = vmatprep.subr.mxu0 0.0
    %1163 = vmatpush1.msra.mxu0 0.0
    %1164 = vmatprep.subr.mxu0 0.0
    %1165 = vmatpush1.msra.mxu0 0.0
    %1166 = vmatprep.subr.mxu0 0.0
    %1167 = vmatpush1.msra.mxu0 0.0
    %1168 = vmatprep.subr.mxu0 0.0
    %1169 = vmatpush1.msra.mxu0 0.0
    %1170 = vmatprep.subr.mxu0 0.0
    %1171 = vmatpush1.msra.mxu0 0.0
    %1172 = vmatprep.subr.mxu0 0.0
    %1173 = vmatpush1.msra.mxu0 0.0
    %1174 = vmatprep.subr.mxu0 0.0
    %1175 = vmatpush1.msra.mxu0 0.0
    %1176 = vmatprep.subr.mxu0 0.0
    %1177 = vmatpush1.msra.mxu0 0.0
    %1178 = vmatprep.subr.mxu0 0.0
    %1179 = vmatpush1.msra.mxu0 0.0
    %1180 = vmatprep.subr.mxu0 0.0
    %1181 = vmatpush1.msra.mxu0 0.0
    %1182 = vmatprep.subr.mxu0 0.0
    %1183 = vmatpush1.msra.mxu0 0.0
    %1184 = vmatprep.subr.mxu0 0.0
    %1185 = vmatpush1.msra.mxu0 0.0
    %1186 = vmatprep.subr.mxu0 0.0
    %1187 = vmatpush1.msra.mxu0 0.0
    %1188 = vmatprep.subr.mxu0 0.0
    %1189 = vmatpush1.msra.mxu0 0.0
    %1190 = vmatprep.mubr.f32.mxu0 0.0
    %1191 = vmatmul.mubr.f32.gmra.mrb[0].mxu0 %v1103
    %v1192 = vpop.f32.mrb[0].mxu0
    %v1193 = vadd.f32 %v1100, %v1192
    %v1194 = vpop.f32.mrb[0].mxu0
    %1195 = vmatprep.mubr.f32.mxu0 0.0
    %1196 = vmatmul.mubr.f32.gmra.mrb[0].mxu0 %v1106
    %v1197 = vpop.f32.mrb[0].mxu0
    %v1198 = vadd.f32 %v1100, %v1197
    %v1199 = vpop.f32.mrb[0].mxu0
    %1200 = vmatprep.mubr.f32.mxu0 0.0
    %1201 = vmatmul.mubr.f32.gmra.mrb[0].mxu0 %v1109
    %v1202 = vpop.f32.mrb[0].mxu0
    %v1203 = vadd.f32 %v1100, %v1202
    %v1204 = vpop.f32.mrb[0].mxu0
    %1205 = vmatprep.mubr.f32.mxu0 0.0
    %1206 = vmatmul.mubr.f32.gmra.mrb[0].mxu0 %v1112
    %v1207 = vpop.f32.mrb[0].mxu0
    %v1208 = vadd.f32 %v1100, %v1207
    %v1209 = vpop.f32.mrb[0].mxu0
    %1210 = vmatprep.mubr.f32.mxu0 0.0
    %1211 = vmatmul.mubr.f32.gmra.mrb[0].mxu0 %v1115
    %v1212 = vpop.f32.mrb[0].mxu0
    %v1213 = vadd.f32 %v1100, %v1212
    %v1214 = vpop.f32.mrb[0].mxu0
    %1215 = vmatprep.mubr.f32.mxu0 0.0
    %1216 = vmatmul.mubr.f32.gmra.mrb[0].mxu0 %v1118
    %v1217 = vpop.f32.mrb[0].mxu0
    %v1218 = vadd.f32 %v1100, %v1217
    %v1219 = vpop.f32.mrb[0].mxu0
    %1220 = vmatprep.mubr.f32.mxu0 0.0
    %1221 = vmatmul.mubr.f32.gmra.mrb[0].mxu0 %v1121
    %v1222 = vpop.f32.mrb[0].mxu0
    %v1223 = vadd.f32 %v1100, %v1222
    %v1224 = vpop.f32.mrb[0].mxu0
    %1225 = vmatprep.mubr.f32.mxu0 0.0
    %1226 = vmatmul.mubr.f32.gmra.mrb[0].mxu0 %v1124
    %v1227 = vpop.f32.mrb[0].mxu0
    %v1228 = vadd.f32 %v1100, %v1227
    %v1229 = vpop.f32.mrb[0].mxu0
    %1230 = vdwg.mxu0
    %1231 = vst [vmem:[#allocation2] sm:$0xff] %v1193
    %1232 = vst [vmem:[#allocation2 + $0x8] sm:$0xff] %v1198
    %1233 = vst [vmem:[#allocation2 + $0x10] sm:$0xff] %v1203
    %1234 = vst [vmem:[#allocation2 + $0x18] sm:$0xff] %v1208
    %1235 = vst [vmem:[#allocation2 + $0x20] sm:$0xff] %v1213
    %1236 = vst [vmem:[#allocation2 + $0x28] sm:$0xff] %v1218
    %1237 = vst [vmem:[#allocation2 + $0x30] sm:$0xff] %v1223
    %1238 = vst [vmem:[#allocation2 + $0x38] sm:$0xff] %v1228
    %v1239 = vld [vmem:[%s6] sm:$0xff]
    %v1240 = vld [vmem:[%s6 + $0x8] sm:$0xff]
    %v1241 = vld [vmem:[%s6 + $0x10] sm:$0xff]
    %v1242 = vld [vmem:[%s6 + $0x18] sm:$0xff]
    %v1243 = vld [vmem:[#allocation2] sm:$0xff]
    %1244 = vmatprep.subr.mxu0 0.0
    %1245 = vmatpush1.msra.mxu0 %v1239
    %1246 = vmatprep.subr.mxu0 0.0
    %1247 = vmatpush1.msra.mxu0 %v1240
    %1248 = vmatprep.subr.mxu0 0.0
    %1249 = vmatpush1.msra.mxu0 %v1241
    %1250 = vmatprep.subr.mxu0 0.0
    %1251 = vmatpush1.msra.mxu0 %v1242
    %1252 = vmatprep.subr.mxu0 0.0
    %1253 = vmatpush1.msra.mxu0 0.0
    %1254 = vmatprep.subr.mxu0 0.0
    %1255 = vmatpush1.msra.mxu0 0.0
    %1256 = vmatprep.subr.mxu0 0.0
    %1257 = vmatpush1.msra.mxu0 0.0
    %1258 = vmatprep.subr.mxu0 0.0
    %1259 = vmatpush1.msra.mxu0 0.0
    %1260 = vmatprep.subr.mxu0 0.0
    %1261 = vmatpush1.msra.mxu0 0.0
    %1262 = vmatprep.subr.mxu0 0.0
    %1263 = vmatpush1.msra.mxu0 0.0
    %1264 = vmatprep.subr.mxu0 0.0
    %1265 = vmatpush1.msra.mxu0 0.0
    %1266 = vmatprep.subr.mxu0 0.0
    %1267 = vmatpush1.msra.mxu0 0.0
    %1268 = vmatprep.subr.mxu0 0.0
    %1269 = vmatpush1.msra.mxu0 0.0
    %1270 = vmatprep.subr.mxu0 0.0
    %1271 = vmatpush1.msra.mxu0 0.0
    %1272 = vmatprep.subr.mxu0 0.0
    %1273 = vmatpush1.msra.mxu0 0.0
    %1274 = vmatprep.subr.mxu0 0.0
    %1275 = vmatpush1.msra.mxu0 0.0
    %1276 = vmatprep.subr.mxu0 0.0
    %1277 = vmatpush1.msra.mxu0 0.0
    %1278 = vmatprep.subr.mxu0 0.0
    %1279 = vmatpush1.msra.mxu0 0.0
    %1280 = vmatprep.subr.mxu0 0.0
    %1281 = vmatpush1.msra.mxu0 0.0
    %1282 = vmatprep.subr.mxu0 0.0
    %1283 = vmatpush1.msra.mxu0 0.0
    %1284 = vmatprep.subr.mxu0 0.0
    %1285 = vmatpush1.msra.mxu0 0.0
    %1286 = vmatprep.subr.mxu0 0.0
    %1287 = vmatpush1.msra.mxu0 0.0
    %1288 = vmatprep.subr.mxu0 0.0
    %1289 = vmatpush1.msra.mxu0 0.0
    %1290 = vmatprep.subr.mxu0 0.0
    %1291 = vmatpush1.msra.mxu0 0.0
    %1292 = vmatprep.subr.mxu0 0.0
    %1293 = vmatpush1.msra.mxu0 0.0
    %1294 = vmatprep.subr.mxu0 0.0
    %1295 = vmatpush1.msra.mxu0 0.0
    %1296 = vmatprep.subr.mxu0 0.0
    %1297 = vmatpush1.msra.mxu0 0.0
    %1298 = vmatprep.subr.mxu0 0.0
    %1299 = vmatpush1.msra.mxu0 0.0
    %1300 = vmatprep.subr.mxu0 0.0
    %1301 = vmatpush1.msra.mxu0 0.0
    %1302 = vmatprep.subr.mxu0 0.0
    %1303 = vmatpush1.msra.mxu0 0.0
    %1304 = vmatprep.subr.mxu0 0.0
    %1305 = vmatpush1.msra.mxu0 0.0
    %1306 = vmatprep.subr.mxu0 0.0
    %1307 = vmatpush1.msra.mxu0 0.0
    %1308 = vmatprep.mubr.f32.mxu0 0.0
    %1309 = vmatmul.mubr.f32.gmra.mrb[0].mxu0 %v246
    %v1310 = vpop.f32.mrb[0].mxu0
    %v1311 = vadd.f32 0.0, %v1310
    %v1312 = vpop.f32.mrb[0].mxu0
    %1313 = vdwg.mxu0
    %v1314 = vadd.f32 %v1243, %v1311
    %v1315 = vxor.u32 %v1314, 2147483648
    %v1316 = vmul.f32 %v1315, 1.442695
    %v1317 = vpow.pop %v1316
    %v1318 = vadd.f32 %v1317, 1.0
    %v1319 = vrcp.pop %v1318
    %v1320 = vmul.f32 1.0, %v1319
    %v1321 = vtanh.pop %v1314
    %v1322 = vmul.f32 %v1320, 0.0
    %1324 = vrot.lane.b32.xlu0 %v1321, 64
    %v1325 = vpop.permute.xlu0 %1324
    %v1327 = vmul.f32 %v1320, %v1325
    %1329 = vrot.lane.b32.xlu0 %v1327, 32
    %v1330 = vpop.permute.xlu0 %1329
    %v1332 = vadd.f32 %v1322, %v1330
    %v1333 = vtanh.pop %v1332
    %1335 = vrot.lane.b32.xlu0 %v1333, 64
    %v1336 = vpop.permute.xlu0 %1335
    %v1338 = vmul.f32 %v1320, %v1336
    %v1339 = vld [vmem:[%s348] sm:$0xff]
    %1341 = vrot.lane.b32.xlu0 %v1338, 32
    %v1342 = vpop.permute.xlu0 %1341
    %v1343 = vsel %vm244, %v1342, 0
    %1345 = vmatprep.subr.mxu0 0.0
    %1346 = vmatpush1.msra.mxu0 %v1239
    %1347 = vmatprep.subr.mxu0 0.0
    %1348 = vmatpush1.msra.mxu0 %v1240
    %1349 = vmatprep.subr.mxu0 0.0
    %1350 = vmatpush1.msra.mxu0 %v1241
    %1351 = vmatprep.subr.mxu0 0.0
    %1352 = vmatpush1.msra.mxu0 %v1242
    %1353 = vmatprep.subr.mxu0 0.0
    %1354 = vmatpush1.msra.mxu0 0.0
    %1355 = vmatprep.subr.mxu0 0.0
    %1356 = vmatpush1.msra.mxu0 0.0
    %1357 = vmatprep.subr.mxu0 0.0
    %1358 = vmatpush1.msra.mxu0 0.0
    %1359 = vmatprep.subr.mxu0 0.0
    %1360 = vmatpush1.msra.mxu0 0.0
    %1361 = vmatprep.subr.mxu0 0.0
    %1362 = vmatpush1.msra.mxu0 0.0
    %1363 = vmatprep.subr.mxu0 0.0
    %1364 = vmatpush1.msra.mxu0 0.0
    %1365 = vmatprep.subr.mxu0 0.0
    %1366 = vmatpush1.msra.mxu0 0.0
    %1367 = vmatprep.subr.mxu0 0.0
    %1368 = vmatpush1.msra.mxu0 0.0
    %1369 = vmatprep.subr.mxu0 0.0
    %1370 = vmatpush1.msra.mxu0 0.0
    %1371 = vmatprep.subr.mxu0 0.0
    %1372 = vmatpush1.msra.mxu0 0.0
    %1373 = vmatprep.subr.mxu0 0.0
    %1374 = vmatpush1.msra.mxu0 0.0
    %1375 = vmatprep.subr.mxu0 0.0
    %1376 = vmatpush1.msra.mxu0 0.0
    %1377 = vmatprep.subr.mxu0 0.0
    %1378 = vmatpush1.msra.mxu0 0.0
    %1379 = vmatprep.subr.mxu0 0.0
    %1380 = vmatpush1.msra.mxu0 0.0
    %1381 = vmatprep.subr.mxu0 0.0
    %1382 = vmatpush1.msra.mxu0 0.0
    %1383 = vmatprep.subr.mxu0 0.0
    %1384 = vmatpush1.msra.mxu0 0.0
    %1385 = vmatprep.subr.mxu0 0.0
    %1386 = vmatpush1.msra.mxu0 0.0
    %1387 = vmatprep.subr.mxu0 0.0
    %1388 = vmatpush1.msra.mxu0 0.0
    %1389 = vmatprep.subr.mxu0 0.0
    %1390 = vmatpush1.msra.mxu0 0.0
    %1391 = vmatprep.subr.mxu0 0.0
    %1392 = vmatpush1.msra.mxu0 0.0
    %1393 = vmatprep.subr.mxu0 0.0
    %1394 = vmatpush1.msra.mxu0 0.0
    %1395 = vmatprep.subr.mxu0 0.0
    %1396 = vmatpush1.msra.mxu0 0.0
    %1397 = vmatprep.subr.mxu0 0.0
    %1398 = vmatpush1.msra.mxu0 0.0
    %1399 = vmatprep.subr.mxu0 0.0
    %1400 = vmatpush1.msra.mxu0 0.0
    %1401 = vmatprep.subr.mxu0 0.0
    %1402 = vmatpush1.msra.mxu0 0.0
    %1403 = vmatprep.subr.mxu0 0.0
    %1404 = vmatpush1.msra.mxu0 0.0
    %1405 = vmatprep.subr.mxu0 0.0
    %1406 = vmatpush1.msra.mxu0 0.0
    %1407 = vmatprep.subr.mxu0 0.0
    %1408 = vmatpush1.msra.mxu0 0.0
    %1409 = vmatprep.mubr.f32.mxu0 0.0
    %1410 = vmatmul.mubr.f32.gmra.mrb[0].mxu0 %v1343
    %v1411 = vpop.f32.mrb[0].mxu0
    %v1412 = vadd.f32 0.0, %v1411
    %v1413 = vpop.f32.mrb[0].mxu0
    %1414 = vdwg.mxu0
    %v1415 = vadd.f32 %v1339, %v1412
    %v1416 = vxor.u32 %v1415, 2147483648
    %v1417 = vmul.f32 %v1416, 1.442695
    %v1418 = vpow.pop %v1417
    %v1419 = vadd.f32 %v1418, 1.0
    %v1420 = vrcp.pop %v1419
    %v1421 = vmul.f32 1.0, %v1420
    %v1422 = vtanh.pop %v1415
    %v1423 = vmul.f32 %v1421, %v1332
    %1425 = vrot.lane.b32.xlu0 %v1422, 64
    %v1426 = vpop.permute.xlu0 %1425
    %v1428 = vmul.f32 %v1421, %v1426
    %1430 = vrot.lane.b32.xlu0 %v1428, 32
    %v1431 = vpop.permute.xlu0 %1430
    %v1433 = vadd.f32 %v1423, %v1431
    %v1434 = vtanh.pop %v1433
    %1436 = vrot.lane.b32.xlu0 %v1434, 64
    %v1437 = vpop.permute.xlu0 %1436
    %v1439 = vmul.f32 %v1421, %v1437
    %v1440 = vld [vmem:[%s453] sm:$0xff]
    %1442 = vrot.lane.b32.xlu0 %v1439, 32
    %v1443 = vpop.permute.xlu0 %1442
    %v1444 = vsel %vm244, %v1443, 0
    %1446 = vmatprep.subr.mxu0 0.0
    %1447 = vmatpush1.msra.mxu0 %v1239
    %1448 = vmatprep.subr.mxu0 0.0
    %1449 = vmatpush1.msra.mxu0 %v1240
    %1450 = vmatprep.subr.mxu0 0.0
    %1451 = vmatpush1.msra.mxu0 %v1241
    %1452 = vmatprep.subr.mxu0 0.0
    %1453 = vmatpush1.msra.mxu0 %v1242
    %1454 = vmatprep.subr.mxu0 0.0
    %1455 = vmatpush1.msra.mxu0 0.0
    %1456 = vmatprep.subr.mxu0 0.0
    %1457 = vmatpush1.msra.mxu0 0.0
    %1458 = vmatprep.subr.mxu0 0.0
    %1459 = vmatpush1.msra.mxu0 0.0
    %1460 = vmatprep.subr.mxu0 0.0
    %1461 = vmatpush1.msra.mxu0 0.0
    %1462 = vmatprep.subr.mxu0 0.0
    %1463 = vmatpush1.msra.mxu0 0.0
    %1464 = vmatprep.subr.mxu0 0.0
    %1465 = vmatpush1.msra.mxu0 0.0
    %1466 = vmatprep.subr.mxu0 0.0
    %1467 = vmatpush1.msra.mxu0 0.0
    %1468 = vmatprep.subr.mxu0 0.0
    %1469 = vmatpush1.msra.mxu0 0.0
    %1470 = vmatprep.subr.mxu0 0.0
    %1471 = vmatpush1.msra.mxu0 0.0
    %1472 = vmatprep.subr.mxu0 0.0
    %1473 = vmatpush1.msra.mxu0 0.0
    %1474 = vmatprep.subr.mxu0 0.0
    %1475 = vmatpush1.msra.mxu0 0.0
    %1476 = vmatprep.subr.mxu0 0.0
    %1477 = vmatpush1.msra.mxu0 0.0
    %1478 = vmatprep.subr.mxu0 0.0
    %1479 = vmatpush1.msra.mxu0 0.0
    %1480 = vmatprep.subr.mxu0 0.0
    %1481 = vmatpush1.msra.mxu0 0.0
    %1482 = vmatprep.subr.mxu0 0.0
    %1483 = vmatpush1.msra.mxu0 0.0
    %1484 = vmatprep.subr.mxu0 0.0
    %1485 = vmatpush1.msra.mxu0 0.0
    %1486 = vmatprep.subr.mxu0 0.0
    %1487 = vmatpush1.msra.mxu0 0.0
    %1488 = vmatprep.subr.mxu0 0.0
    %1489 = vmatpush1.msra.mxu0 0.0
    %1490 = vmatprep.subr.mxu0 0.0
    %1491 = vmatpush1.msra.mxu0 0.0
    %1492 = vmatprep.subr.mxu0 0.0
    %1493 = vmatpush1.msra.mxu0 0.0
    %1494 = vmatprep.subr.mxu0 0.0
    %1495 = vmatpush1.msra.mxu0 0.0
    %1496 = vmatprep.subr.mxu0 0.0
    %1497 = vmatpush1.msra.mxu0 0.0
    %1498 = vmatprep.subr.mxu0 0.0
    %1499 = vmatpush1.msra.mxu0 0.0
    %1500 = vmatprep.subr.mxu0 0.0
    %1501 = vmatpush1.msra.mxu0 0.0
    %1502 = vmatprep.subr.mxu0 0.0
    %1503 = vmatpush1.msra.mxu0 0.0
    %1504 = vmatprep.subr.mxu0 0.0
    %1505 = vmatpush1.msra.mxu0 0.0
    %1506 = vmatprep.subr.mxu0 0.0
    %1507 = vmatpush1.msra.mxu0 0.0
    %1508 = vmatprep.subr.mxu0 0.0
    %1509 = vmatpush1.msra.mxu0 0.0
    %1510 = vmatprep.mubr.f32.mxu0 0.0
    %1511 = vmatmul.mubr.f32.gmra.mrb[0].mxu0 %v1444
    %v1512 = vpop.f32.mrb[0].mxu0
    %v1513 = vadd.f32 0.0, %v1512
    %v1514 = vpop.f32.mrb[0].mxu0
    %1515 = vdwg.mxu0
    %v1516 = vadd.f32 %v1440, %v1513
    %v1517 = vxor.u32 %v1516, 2147483648
    %v1518 = vmul.f32 %v1517, 1.442695
    %v1519 = vpow.pop %v1518
    %v1520 = vadd.f32 %v1519, 1.0
    %v1521 = vrcp.pop %v1520
    %v1522 = vmul.f32 1.0, %v1521
    %v1523 = vtanh.pop %v1516
    %v1524 = vmul.f32 %v1522, %v1433
    %1526 = vrot.lane.b32.xlu0 %v1523, 64
    %v1527 = vpop.permute.xlu0 %1526
    %v1529 = vmul.f32 %v1522, %v1527
    %1531 = vrot.lane.b32.xlu0 %v1529, 32
    %v1532 = vpop.permute.xlu0 %1531
    %v1534 = vadd.f32 %v1524, %v1532
    %v1535 = vtanh.pop %v1534
    %1537 = vrot.lane.b32.xlu0 %v1535, 64
    %v1538 = vpop.permute.xlu0 %1537
    %v1540 = vmul.f32 %v1522, %v1538
    %v1541 = vld [vmem:[%s558] sm:$0xff]
    %1543 = vrot.lane.b32.xlu0 %v1540, 32
    %v1544 = vpop.permute.xlu0 %1543
    %v1545 = vsel %vm244, %v1544, 0
    %1547 = vmatprep.subr.mxu0 0.0
    %1548 = vmatpush1.msra.mxu0 %v1239
    %1549 = vmatprep.subr.mxu0 0.0
    %1550 = vmatpush1.msra.mxu0 %v1240
    %1551 = vmatprep.subr.mxu0 0.0
    %1552 = vmatpush1.msra.mxu0 %v1241
    %1553 = vmatprep.subr.mxu0 0.0
    %1554 = vmatpush1.msra.mxu0 %v1242
    %1555 = vmatprep.subr.mxu0 0.0
    %1556 = vmatpush1.msra.mxu0 0.0
    %1557 = vmatprep.subr.mxu0 0.0
    %1558 = vmatpush1.msra.mxu0 0.0
    %1559 = vmatprep.subr.mxu0 0.0
    %1560 = vmatpush1.msra.mxu0 0.0
    %1561 = vmatprep.subr.mxu0 0.0
    %1562 = vmatpush1.msra.mxu0 0.0
    %1563 = vmatprep.subr.mxu0 0.0
    %1564 = vmatpush1.msra.mxu0 0.0
    %1565 = vmatprep.subr.mxu0 0.0
    %1566 = vmatpush1.msra.mxu0 0.0
    %1567 = vmatprep.subr.mxu0 0.0
    %1568 = vmatpush1.msra.mxu0 0.0
    %1569 = vmatprep.subr.mxu0 0.0
    %1570 = vmatpush1.msra.mxu0 0.0
    %1571 = vmatprep.subr.mxu0 0.0
    %1572 = vmatpush1.msra.mxu0 0.0
    %1573 = vmatprep.subr.mxu0 0.0
    %1574 = vmatpush1.msra.mxu0 0.0
    %1575 = vmatprep.subr.mxu0 0.0
    %1576 = vmatpush1.msra.mxu0 0.0
    %1577 = vmatprep.subr.mxu0 0.0
    %1578 = vmatpush1.msra.mxu0 0.0
    %1579 = vmatprep.subr.mxu0 0.0
    %1580 = vmatpush1.msra.mxu0 0.0
    %1581 = vmatprep.subr.mxu0 0.0
    %1582 = vmatpush1.msra.mxu0 0.0
    %1583 = vmatprep.subr.mxu0 0.0
    %1584 = vmatpush1.msra.mxu0 0.0
    %1585 = vmatprep.subr.mxu0 0.0
    %1586 = vmatpush1.msra.mxu0 0.0
    %1587 = vmatprep.subr.mxu0 0.0
    %1588 = vmatpush1.msra.mxu0 0.0
    %1589 = vmatprep.subr.mxu0 0.0
    %1590 = vmatpush1.msra.mxu0 0.0
    %1591 = vmatprep.subr.mxu0 0.0
    %1592 = vmatpush1.msra.mxu0 0.0
    %1593 = vmatprep.subr.mxu0 0.0
    %1594 = vmatpush1.msra.mxu0 0.0
    %1595 = vmatprep.subr.mxu0 0.0
    %1596 = vmatpush1.msra.mxu0 0.0
    %1597 = vmatprep.subr.mxu0 0.0
    %1598 = vmatpush1.msra.mxu0 0.0
    %1599 = vmatprep.subr.mxu0 0.0
    %1600 = vmatpush1.msra.mxu0 0.0
    %1601 = vmatprep.subr.mxu0 0.0
    %1602 = vmatpush1.msra.mxu0 0.0
    %1603 = vmatprep.subr.mxu0 0.0
    %1604 = vmatpush1.msra.mxu0 0.0
    %1605 = vmatprep.subr.mxu0 0.0
    %1606 = vmatpush1.msra.mxu0 0.0
    %1607 = vmatprep.subr.mxu0 0.0
    %1608 = vmatpush1.msra.mxu0 0.0
    %1609 = vmatprep.subr.mxu0 0.0
    %1610 = vmatpush1.msra.mxu0 0.0
    %1611 = vmatprep.mubr.f32.mxu0 0.0
    %1612 = vmatmul.mubr.f32.gmra.mrb[0].mxu0 %v1545
    %v1613 = vpop.f32.mrb[0].mxu0
    %v1614 = vadd.f32 0.0, %v1613
    %v1615 = vpop.f32.mrb[0].mxu0
    %1616 = vdwg.mxu0
    %v1617 = vadd.f32 %v1541, %v1614
    %v1618 = vxor.u32 %v1617, 2147483648
    %v1619 = vmul.f32 %v1618, 1.442695
    %v1620 = vpow.pop %v1619
    %v1621 = vadd.f32 %v1620, 1.0
    %v1622 = vrcp.pop %v1621
    %v1623 = vmul.f32 1.0, %v1622
    %v1624 = vtanh.pop %v1617
    %v1625 = vmul.f32 %v1623, %v1534
    %1627 = vrot.lane.b32.xlu0 %v1624, 64
    %v1628 = vpop.permute.xlu0 %1627
    %v1630 = vmul.f32 %v1623, %v1628
    %1632 = vrot.lane.b32.xlu0 %v1630, 32
    %v1633 = vpop.permute.xlu0 %1632
    %v1635 = vadd.f32 %v1625, %v1633
    %v1636 = vtanh.pop %v1635
    %1638 = vrot.lane.b32.xlu0 %v1636, 64
    %v1639 = vpop.permute.xlu0 %1638
    %v1641 = vmul.f32 %v1623, %v1639
    %v1642 = vld [vmem:[%s663] sm:$0xff]
    %1644 = vrot.lane.b32.xlu0 %v1641, 32
    %v1645 = vpop.permute.xlu0 %1644
    %v1646 = vsel %vm244, %v1645, 0
    %1648 = vmatprep.subr.mxu0 0.0
    %1649 = vmatpush1.msra.mxu0 %v1239
    %1650 = vmatprep.subr.mxu0 0.0
    %1651 = vmatpush1.msra.mxu0 %v1240
    %1652 = vmatprep.subr.mxu0 0.0
    %1653 = vmatpush1.msra.mxu0 %v1241
    %1654 = vmatprep.subr.mxu0 0.0
    %1655 = vmatpush1.msra.mxu0 %v1242
    %1656 = vmatprep.subr.mxu0 0.0
    %1657 = vmatpush1.msra.mxu0 0.0
    %1658 = vmatprep.subr.mxu0 0.0
    %1659 = vmatpush1.msra.mxu0 0.0
    %1660 = vmatprep.subr.mxu0 0.0
    %1661 = vmatpush1.msra.mxu0 0.0
    %1662 = vmatprep.subr.mxu0 0.0
    %1663 = vmatpush1.msra.mxu0 0.0
    %1664 = vmatprep.subr.mxu0 0.0
    %1665 = vmatpush1.msra.mxu0 0.0
    %1666 = vmatprep.subr.mxu0 0.0
    %1667 = vmatpush1.msra.mxu0 0.0
    %1668 = vmatprep.subr.mxu0 0.0
    %1669 = vmatpush1.msra.mxu0 0.0
    %1670 = vmatprep.subr.mxu0 0.0
    %1671 = vmatpush1.msra.mxu0 0.0
    %1672 = vmatprep.subr.mxu0 0.0
    %1673 = vmatpush1.msra.mxu0 0.0
    %1674 = vmatprep.subr.mxu0 0.0
    %1675 = vmatpush1.msra.mxu0 0.0
    %1676 = vmatprep.subr.mxu0 0.0
    %1677 = vmatpush1.msra.mxu0 0.0
    %1678 = vmatprep.subr.mxu0 0.0
    %1679 = vmatpush1.msra.mxu0 0.0
    %1680 = vmatprep.subr.mxu0 0.0
    %1681 = vmatpush1.msra.mxu0 0.0
    %1682 = vmatprep.subr.mxu0 0.0
    %1683 = vmatpush1.msra.mxu0 0.0
    %1684 = vmatprep.subr.mxu0 0.0
    %1685 = vmatpush1.msra.mxu0 0.0
    %1686 = vmatprep.subr.mxu0 0.0
    %1687 = vmatpush1.msra.mxu0 0.0
    %1688 = vmatprep.subr.mxu0 0.0
    %1689 = vmatpush1.msra.mxu0 0.0
    %1690 = vmatprep.subr.mxu0 0.0
    %1691 = vmatpush1.msra.mxu0 0.0
    %1692 = vmatprep.subr.mxu0 0.0
    %1693 = vmatpush1.msra.mxu0 0.0
    %1694 = vmatprep.subr.mxu0 0.0
    %1695 = vmatpush1.msra.mxu0 0.0
    %1696 = vmatprep.subr.mxu0 0.0
    %1697 = vmatpush1.msra.mxu0 0.0
    %1698 = vmatprep.subr.mxu0 0.0
    %1699 = vmatpush1.msra.mxu0 0.0
    %1700 = vmatprep.subr.mxu0 0.0
    %1701 = vmatpush1.msra.mxu0 0.0
    %1702 = vmatprep.subr.mxu0 0.0
    %1703 = vmatpush1.msra.mxu0 0.0
    %1704 = vmatprep.subr.mxu0 0.0
    %1705 = vmatpush1.msra.mxu0 0.0
    %1706 = vmatprep.subr.mxu0 0.0
    %1707 = vmatpush1.msra.mxu0 0.0
    %1708 = vmatprep.subr.mxu0 0.0
    %1709 = vmatpush1.msra.mxu0 0.0
    %1710 = vmatprep.subr.mxu0 0.0
    %1711 = vmatpush1.msra.mxu0 0.0
    %1712 = vmatprep.mubr.f32.mxu0 0.0
    %1713 = vmatmul.mubr.f32.gmra.mrb[0].mxu0 %v1646
    %v1714 = vpop.f32.mrb[0].mxu0
    %v1715 = vadd.f32 0.0, %v1714
    %v1716 = vpop.f32.mrb[0].mxu0
    %1717 = vdwg.mxu0
    %v1718 = vadd.f32 %v1642, %v1715
    %v1719 = vxor.u32 %v1718, 2147483648
    %v1720 = vmul.f32 %v1719, 1.442695
    %v1721 = vpow.pop %v1720
    %v1722 = vadd.f32 %v1721, 1.0
    %v1723 = vrcp.pop %v1722
    %v1724 = vmul.f32 1.0, %v1723
    %v1725 = vtanh.pop %v1718
    %v1726 = vmul.f32 %v1724, %v1635
    %1728 = vrot.lane.b32.xlu0 %v1725, 64
    %v1729 = vpop.permute.xlu0 %1728
    %v1731 = vmul.f32 %v1724, %v1729
    %1733 = vrot.lane.b32.xlu0 %v1731, 32
    %v1734 = vpop.permute.xlu0 %1733
    %v1736 = vadd.f32 %v1726, %v1734
    %v1737 = vtanh.pop %v1736
    %1739 = vrot.lane.b32.xlu0 %v1737, 64
    %v1740 = vpop.permute.xlu0 %1739
    %v1742 = vmul.f32 %v1724, %v1740
    %v1743 = vld [vmem:[%s768] sm:$0xff]
    %1745 = vrot.lane.b32.xlu0 %v1742, 32
    %v1746 = vpop.permute.xlu0 %1745
    %v1747 = vsel %vm244, %v1746, 0
    %1749 = vmatprep.subr.mxu0 0.0
    %1750 = vmatpush1.msra.mxu0 %v1239
    %1751 = vmatprep.subr.mxu0 0.0
    %1752 = vmatpush1.msra.mxu0 %v1240
    %1753 = vmatprep.subr.mxu0 0.0
    %1754 = vmatpush1.msra.mxu0 %v1241
    %1755 = vmatprep.subr.mxu0 0.0
    %1756 = vmatpush1.msra.mxu0 %v1242
    %1757 = vmatprep.subr.mxu0 0.0
    %1758 = vmatpush1.msra.mxu0 0.0
    %1759 = vmatprep.subr.mxu0 0.0
    %1760 = vmatpush1.msra.mxu0 0.0
    %1761 = vmatprep.subr.mxu0 0.0
    %1762 = vmatpush1.msra.mxu0 0.0
    %1763 = vmatprep.subr.mxu0 0.0
    %1764 = vmatpush1.msra.mxu0 0.0
    %1765 = vmatprep.subr.mxu0 0.0
    %1766 = vmatpush1.msra.mxu0 0.0
    %1767 = vmatprep.subr.mxu0 0.0
    %1768 = vmatpush1.msra.mxu0 0.0
    %1769 = vmatprep.subr.mxu0 0.0
    %1770 = vmatpush1.msra.mxu0 0.0
    %1771 = vmatprep.subr.mxu0 0.0
    %1772 = vmatpush1.msra.mxu0 0.0
    %1773 = vmatprep.subr.mxu0 0.0
    %1774 = vmatpush1.msra.mxu0 0.0
    %1775 = vmatprep.subr.mxu0 0.0
    %1776 = vmatpush1.msra.mxu0 0.0
    %1777 = vmatprep.subr.mxu0 0.0
    %1778 = vmatpush1.msra.mxu0 0.0
    %1779 = vmatprep.subr.mxu0 0.0
    %1780 = vmatpush1.msra.mxu0 0.0
    %1781 = vmatprep.subr.mxu0 0.0
    %1782 = vmatpush1.msra.mxu0 0.0
    %1783 = vmatprep.subr.mxu0 0.0
    %1784 = vmatpush1.msra.mxu0 0.0
    %1785 = vmatprep.subr.mxu0 0.0
    %1786 = vmatpush1.msra.mxu0 0.0
    %1787 = vmatprep.subr.mxu0 0.0
    %1788 = vmatpush1.msra.mxu0 0.0
    %1789 = vmatprep.subr.mxu0 0.0
    %1790 = vmatpush1.msra.mxu0 0.0
    %1791 = vmatprep.subr.mxu0 0.0
    %1792 = vmatpush1.msra.mxu0 0.0
    %1793 = vmatprep.subr.mxu0 0.0
    %1794 = vmatpush1.msra.mxu0 0.0
    %1795 = vmatprep.subr.mxu0 0.0
    %1796 = vmatpush1.msra.mxu0 0.0
    %1797 = vmatprep.subr.mxu0 0.0
    %1798 = vmatpush1.msra.mxu0 0.0
    %1799 = vmatprep.subr.mxu0 0.0
    %1800 = vmatpush1.msra.mxu0 0.0
    %1801 = vmatprep.subr.mxu0 0.0
    %1802 = vmatpush1.msra.mxu0 0.0
    %1803 = vmatprep.subr.mxu0 0.0
    %1804 = vmatpush1.msra.mxu0 0.0
    %1805 = vmatprep.subr.mxu0 0.0
    %1806 = vmatpush1.msra.mxu0 0.0
    %1807 = vmatprep.subr.mxu0 0.0
    %1808 = vmatpush1.msra.mxu0 0.0
    %1809 = vmatprep.subr.mxu0 0.0
    %1810 = vmatpush1.msra.mxu0 0.0
    %1811 = vmatprep.subr.mxu0 0.0
    %1812 = vmatpush1.msra.mxu0 0.0
    %1813 = vmatprep.mubr.f32.mxu0 0.0
    %1814 = vmatmul.mubr.f32.gmra.mrb[0].mxu0 %v1747
    %v1815 = vpop.f32.mrb[0].mxu0
    %v1816 = vadd.f32 0.0, %v1815
    %v1817 = vpop.f32.mrb[0].mxu0
    %1818 = vdwg.mxu0
    %v1819 = vadd.f32 %v1743, %v1816
    %v1820 = vxor.u32 %v1819, 2147483648
    %v1821 = vmul.f32 %v1820, 1.442695
    %v1822 = vpow.pop %v1821
    %v1823 = vadd.f32 %v1822, 1.0
    %v1824 = vrcp.pop %v1823
    %v1825 = vmul.f32 1.0, %v1824
    %v1826 = vtanh.pop %v1819
    %v1827 = vmul.f32 %v1825, %v1736
    %1829 = vrot.lane.b32.xlu0 %v1826, 64
    %v1830 = vpop.permute.xlu0 %1829
    %v1832 = vmul.f32 %v1825, %v1830
    %1834 = vrot.lane.b32.xlu0 %v1832, 32
    %v1835 = vpop.permute.xlu0 %1834
    %v1837 = vadd.f32 %v1827, %v1835
    %v1838 = vtanh.pop %v1837
    %1840 = vrot.lane.b32.xlu0 %v1838, 64
    %v1841 = vpop.permute.xlu0 %1840
    %v1843 = vmul.f32 %v1825, %v1841
    %v1844 = vld [vmem:[%s873] sm:$0xff]
    %1846 = vrot.lane.b32.xlu0 %v1843, 32
    %v1847 = vpop.permute.xlu0 %1846
    %v1848 = vsel %vm244, %v1847, 0
    %1850 = vmatprep.subr.mxu0 0.0
    %1851 = vmatpush1.msra.mxu0 %v1239
    %1852 = vmatprep.subr.mxu0 0.0
    %1853 = vmatpush1.msra.mxu0 %v1240
    %1854 = vmatprep.subr.mxu0 0.0
    %1855 = vmatpush1.msra.mxu0 %v1241
    %1856 = vmatprep.subr.mxu0 0.0
    %1857 = vmatpush1.msra.mxu0 %v1242
    %1858 = vmatprep.subr.mxu0 0.0
    %1859 = vmatpush1.msra.mxu0 0.0
    %1860 = vmatprep.subr.mxu0 0.0
    %1861 = vmatpush1.msra.mxu0 0.0
    %1862 = vmatprep.subr.mxu0 0.0
    %1863 = vmatpush1.msra.mxu0 0.0
    %1864 = vmatprep.subr.mxu0 0.0
    %1865 = vmatpush1.msra.mxu0 0.0
    %1866 = vmatprep.subr.mxu0 0.0
    %1867 = vmatpush1.msra.mxu0 0.0
    %1868 = vmatprep.subr.mxu0 0.0
    %1869 = vmatpush1.msra.mxu0 0.0
    %1870 = vmatprep.subr.mxu0 0.0
    %1871 = vmatpush1.msra.mxu0 0.0
    %1872 = vmatprep.subr.mxu0 0.0
    %1873 = vmatpush1.msra.mxu0 0.0
    %1874 = vmatprep.subr.mxu0 0.0
    %1875 = vmatpush1.msra.mxu0 0.0
    %1876 = vmatprep.subr.mxu0 0.0
    %1877 = vmatpush1.msra.mxu0 0.0
    %1878 = vmatprep.subr.mxu0 0.0
    %1879 = vmatpush1.msra.mxu0 0.0
    %1880 = vmatprep.subr.mxu0 0.0
    %1881 = vmatpush1.msra.mxu0 0.0
    %1882 = vmatprep.subr.mxu0 0.0
    %1883 = vmatpush1.msra.mxu0 0.0
    %1884 = vmatprep.subr.mxu0 0.0
    %1885 = vmatpush1.msra.mxu0 0.0
    %1886 = vmatprep.subr.mxu0 0.0
    %1887 = vmatpush1.msra.mxu0 0.0
    %1888 = vmatprep.subr.mxu0 0.0
    %1889 = vmatpush1.msra.mxu0 0.0
    %1890 = vmatprep.subr.mxu0 0.0
    %1891 = vmatpush1.msra.mxu0 0.0
    %1892 = vmatprep.subr.mxu0 0.0
    %1893 = vmatpush1.msra.mxu0 0.0
    %1894 = vmatprep.subr.mxu0 0.0
    %1895 = vmatpush1.msra.mxu0 0.0
    %1896 = vmatprep.subr.mxu0 0.0
    %1897 = vmatpush1.msra.mxu0 0.0
    %1898 = vmatprep.subr.mxu0 0.0
    %1899 = vmatpush1.msra.mxu0 0.0
    %1900 = vmatprep.subr.mxu0 0.0
    %1901 = vmatpush1.msra.mxu0 0.0
    %1902 = vmatprep.subr.mxu0 0.0
    %1903 = vmatpush1.msra.mxu0 0.0
    %1904 = vmatprep.subr.mxu0 0.0
    %1905 = vmatpush1.msra.mxu0 0.0
    %1906 = vmatprep.subr.mxu0 0.0
    %1907 = vmatpush1.msra.mxu0 0.0
    %1908 = vmatprep.subr.mxu0 0.0
    %1909 = vmatpush1.msra.mxu0 0.0
    %1910 = vmatprep.subr.mxu0 0.0
    %1911 = vmatpush1.msra.mxu0 0.0
    %1912 = vmatprep.subr.mxu0 0.0
    %1913 = vmatpush1.msra.mxu0 0.0
    %1914 = vmatprep.mubr.f32.mxu0 0.0
    %1915 = vmatmul.mubr.f32.gmra.mrb[0].mxu0 %v1848
    %v1916 = vpop.f32.mrb[0].mxu0
    %v1917 = vadd.f32 0.0, %v1916
    %v1918 = vpop.f32.mrb[0].mxu0
    %1919 = vdwg.mxu0
    %v1920 = vadd.f32 %v1844, %v1917
    %v1921 = vxor.u32 %v1920, 2147483648
    %v1922 = vmul.f32 %v1921, 1.442695
    %v1923 = vpow.pop %v1922
    %v1924 = vadd.f32 %v1923, 1.0
    %v1925 = vrcp.pop %v1924
    %v1926 = vmul.f32 1.0, %v1925
    %v1927 = vtanh.pop %v1920
    %v1928 = vmul.f32 %v1926, %v1837
    %1930 = vrot.lane.b32.xlu0 %v1927, 64
    %v1931 = vpop.permute.xlu0 %1930
    %v1933 = vmul.f32 %v1926, %v1931
    %1935 = vrot.lane.b32.xlu0 %v1933, 32
    %v1936 = vpop.permute.xlu0 %1935
    %v1938 = vadd.f32 %v1928, %v1936
    %v1939 = vtanh.pop %v1938
    %1941 = vrot.lane.b32.xlu0 %v1939, 64
    %v1942 = vpop.permute.xlu0 %1941
    %v1944 = vmul.f32 %v1926, %v1942
    %v1945 = vld [vmem:[%s978] sm:$0xff]
    %1947 = vrot.lane.b32.xlu0 %v1944, 32
    %v1948 = vpop.permute.xlu0 %1947
    %v1949 = vsel %vm244, %v1948, 0
    %1951 = vmatprep.subr.mxu0 0.0
    %1952 = vmatpush1.msra.mxu0 %v1239
    %1953 = vmatprep.subr.mxu0 0.0
    %1954 = vmatpush1.msra.mxu0 %v1240
    %1955 = vmatprep.subr.mxu0 0.0
    %1956 = vmatpush1.msra.mxu0 %v1241
    %1957 = vmatprep.subr.mxu0 0.0
    %1958 = vmatpush1.msra.mxu0 %v1242
    %1959 = vmatprep.subr.mxu0 0.0
    %1960 = vmatpush1.msra.mxu0 0.0
    %1961 = vmatprep.subr.mxu0 0.0
    %1962 = vmatpush1.msra.mxu0 0.0
    %1963 = vmatprep.subr.mxu0 0.0
    %1964 = vmatpush1.msra.mxu0 0.0
    %1965 = vmatprep.subr.mxu0 0.0
    %1966 = vmatpush1.msra.mxu0 0.0
    %1967 = vmatprep.subr.mxu0 0.0
    %1968 = vmatpush1.msra.mxu0 0.0
    %1969 = vmatprep.subr.mxu0 0.0
    %1970 = vmatpush1.msra.mxu0 0.0
    %1971 = vmatprep.subr.mxu0 0.0
    %1972 = vmatpush1.msra.mxu0 0.0
    %1973 = vmatprep.subr.mxu0 0.0
    %1974 = vmatpush1.msra.mxu0 0.0
    %1975 = vmatprep.subr.mxu0 0.0
    %1976 = vmatpush1.msra.mxu0 0.0
    %1977 = vmatprep.subr.mxu0 0.0
    %1978 = vmatpush1.msra.mxu0 0.0
    %1979 = vmatprep.subr.mxu0 0.0
    %1980 = vmatpush1.msra.mxu0 0.0
    %1981 = vmatprep.subr.mxu0 0.0
    %1982 = vmatpush1.msra.mxu0 0.0
    %1983 = vmatprep.subr.mxu0 0.0
    %1984 = vmatpush1.msra.mxu0 0.0
    %1985 = vmatprep.subr.mxu0 0.0
    %1986 = vmatpush1.msra.mxu0 0.0
    %1987 = vmatprep.subr.mxu0 0.0
    %1988 = vmatpush1.msra.mxu0 0.0
    %1989 = vmatprep.subr.mxu0 0.0
    %1990 = vmatpush1.msra.mxu0 0.0
    %1991 = vmatprep.subr.mxu0 0.0
    %1992 = vmatpush1.msra.mxu0 0.0
    %1993 = vmatprep.subr.mxu0 0.0
    %1994 = vmatpush1.msra.mxu0 0.0
    %1995 = vmatprep.subr.mxu0 0.0
    %1996 = vmatpush1.msra.mxu0 0.0
    %1997 = vmatprep.subr.mxu0 0.0
    %1998 = vmatpush1.msra.mxu0 0.0
    %1999 = vmatprep.subr.mxu0 0.0
    %2000 = vmatpush1.msra.mxu0 0.0
    %2001 = vmatprep.subr.mxu0 0.0
    %2002 = vmatpush1.msra.mxu0 0.0
    %2003 = vmatprep.subr.mxu0 0.0
    %2004 = vmatpush1.msra.mxu0 0.0
    %2005 = vmatprep.subr.mxu0 0.0
    %2006 = vmatpush1.msra.mxu0 0.0
    %2007 = vmatprep.subr.mxu0 0.0
    %2008 = vmatpush1.msra.mxu0 0.0
    %2009 = vmatprep.subr.mxu0 0.0
    %2010 = vmatpush1.msra.mxu0 0.0
    %2011 = vmatprep.subr.mxu0 0.0
    %2012 = vmatpush1.msra.mxu0 0.0
    %2013 = vmatprep.subr.mxu0 0.0
    %2014 = vmatpush1.msra.mxu0 0.0
    %2015 = vmatprep.mubr.f32.mxu0 0.0
    %2016 = vmatmul.mubr.f32.gmra.mrb[0].mxu0 %v1949
    %v2017 = vpop.f32.mrb[0].mxu0
    %v2018 = vadd.f32 0.0, %v2017
    %v2019 = vpop.f32.mrb[0].mxu0
    %2020 = vdwg.mxu0
    %v2021 = vadd.f32 %v1945, %v2018
    %v2022 = vxor.u32 %v2021, 2147483648
    %v2023 = vmul.f32 %v2022, 1.442695
    %v2024 = vpow.pop %v2023
    %v2025 = vadd.f32 %v2024, 1.0
    %v2026 = vrcp.pop %v2025
    %v2027 = vmul.f32 1.0, %v2026
    %v2028 = vtanh.pop %v2021
    %v2029 = vmul.f32 %v2027, %v1938
    %2031 = vrot.lane.b32.xlu0 %v2028, 64
    %v2032 = vpop.permute.xlu0 %2031
    %v2034 = vmul.f32 %v2027, %v2032
    %2036 = vrot.lane.b32.xlu0 %v2034, 32
    %v2037 = vpop.permute.xlu0 %2036
    %v2039 = vadd.f32 %v2029, %v2037
    %v2040 = vtanh.pop %v2039
    %2042 = vrot.lane.b32.xlu0 %v2040, 64
    %v2043 = vpop.permute.xlu0 %2042
    %v2045 = vmul.f32 %v2027, %v2043
    %v2046 = vld [vmem:[%s1] sm:$0xff]
    %v2047 = vld [vmem:[#allocation6] sm:$0x7f]
    %v2048 = vld [vmem:[%s9] sm:$0x1]
    %v2050 = vlaneseq
    %v2051 = vshrl.u32 %v2050, 7
    %v2052 = vsub.s32 0, %v2051
    %v2053 = vrot.slane %v2048, %v2052
    %vm2055 = vcmask 56320
    %v2057 = vsel %vm2055, %v2046, 0
    %vm2059 = vcmask 1046528
    %v2061 = vsel %vm2059, %v2047, 0
    %2063 = vmatprep.subr.mxu0 0.0
    %2064 = vmatpush1.msra.mxu0 %v2061
    %2065 = vmatprep.subr.mxu0 0.0
    %2066 = vmatpush1.msra.mxu0 0.0
    %2067 = vmatprep.subr.mxu0 0.0
    %2068 = vmatpush1.msra.mxu0 0.0
    %2069 = vmatprep.subr.mxu0 0.0
    %2070 = vmatpush1.msra.mxu0 0.0
    %2071 = vmatprep.subr.mxu0 0.0
    %2072 = vmatpush1.msra.mxu0 0.0
    %2073 = vmatprep.subr.mxu0 0.0
    %2074 = vmatpush1.msra.mxu0 0.0
    %2075 = vmatprep.subr.mxu0 0.0
    %2076 = vmatpush1.msra.mxu0 0.0
    %2077 = vmatprep.subr.mxu0 0.0
    %2078 = vmatpush1.msra.mxu0 0.0
    %2079 = vmatprep.subr.mxu0 0.0
    %2080 = vmatpush1.msra.mxu0 0.0
    %2081 = vmatprep.subr.mxu0 0.0
    %2082 = vmatpush1.msra.mxu0 0.0
    %2083 = vmatprep.subr.mxu0 0.0
    %2084 = vmatpush1.msra.mxu0 0.0
    %2085 = vmatprep.subr.mxu0 0.0
    %2086 = vmatpush1.msra.mxu0 0.0
    %2087 = vmatprep.subr.mxu0 0.0
    %2088 = vmatpush1.msra.mxu0 0.0
    %2089 = vmatprep.subr.mxu0 0.0
    %2090 = vmatpush1.msra.mxu0 0.0
    %2091 = vmatprep.subr.mxu0 0.0
    %2092 = vmatpush1.msra.mxu0 0.0
    %2093 = vmatprep.subr.mxu0 0.0
    %2094 = vmatpush1.msra.mxu0 0.0
    %2095 = vmatprep.subr.mxu0 0.0
    %2096 = vmatpush1.msra.mxu0 0.0
    %2097 = vmatprep.subr.mxu0 0.0
    %2098 = vmatpush1.msra.mxu0 0.0
    %2099 = vmatprep.subr.mxu0 0.0
    %2100 = vmatpush1.msra.mxu0 0.0
    %2101 = vmatprep.subr.mxu0 0.0
    %2102 = vmatpush1.msra.mxu0 0.0
    %2103 = vmatprep.subr.mxu0 0.0
    %2104 = vmatpush1.msra.mxu0 0.0
    %2105 = vmatprep.subr.mxu0 0.0
    %2106 = vmatpush1.msra.mxu0 0.0
    %2107 = vmatprep.subr.mxu0 0.0
    %2108 = vmatpush1.msra.mxu0 0.0
    %2109 = vmatprep.subr.mxu0 0.0
    %2110 = vmatpush1.msra.mxu0 0.0
    %2111 = vmatprep.subr.mxu0 0.0
    %2112 = vmatpush1.msra.mxu0 0.0
    %2113 = vmatprep.subr.mxu0 0.0
    %2114 = vmatpush1.msra.mxu0 0.0
    %2115 = vmatprep.subr.mxu0 0.0
    %2116 = vmatpush1.msra.mxu0 0.0
    %2117 = vmatprep.subr.mxu0 0.0
    %2118 = vmatpush1.msra.mxu0 0.0
    %2119 = vmatprep.subr.mxu0 0.0
    %2120 = vmatpush1.msra.mxu0 0.0
    %2121 = vmatprep.subr.mxu0 0.0
    %2122 = vmatpush1.msra.mxu0 0.0
    %2123 = vmatprep.subr.mxu0 0.0
    %2124 = vmatpush1.msra.mxu0 0.0
    %2125 = vmatprep.subr.mxu0 0.0
    %2126 = vmatpush1.msra.mxu0 0.0
    %2127 = vmatprep.mubr.f32.mxu0 0.0
    %2128 = vmatmul.mubr.f32.gmra.mrb[0].mxu0 %v2057
    %v2129 = vpop.f32.mrb[0].mxu0
    %v2130 = vadd.f32 %v2053, %v2129
    %v2131 = vpop.f32.mrb[0].mxu0
    %2132 = vdwg.mxu0
    %v2133 = vmax.f32 %v2130, 0.0
    %v2134 = vld [vmem:[%s10] sm:$0xff]
    %v2135 = vld [vmem:[%s10 + $0x8] sm:$0xff]
    %v2136 = vld [vmem:[%s10 + $0x10] sm:$0xff]
    %v2137 = vld [vmem:[%s10 + $0x18] sm:$0xff]
    %v2138 = vld [vmem:[%s11] sm:$0xff]
    %v2139 = vld [vmem:[%s11 + $0x8] sm:$0xff]
    %v2140 = vld [vmem:[%s11 + $0x10] sm:$0xff]
    %v2141 = vld [vmem:[%s11 + $0x18] sm:$0xff]
    %v2143 = vsel %vm244, %v2133, 0
    %2145 = vmatprep.subr.mxu0 0.0
    %2146 = vmatpush1.msra.mxu0 %v2138
    %2147 = vmatprep.subr.mxu0 0.0
    %2148 = vmatpush1.msra.mxu0 %v2139
    %2149 = vmatprep.subr.mxu0 0.0
    %2150 = vmatpush1.msra.mxu0 %v2140
    %2151 = vmatprep.subr.mxu0 0.0
    %2152 = vmatpush1.msra.mxu0 %v2141
    %2153 = vmatprep.subr.mxu0 0.0
    %2154 = vmatpush1.msra.mxu0 0.0
    %2155 = vmatprep.subr.mxu0 0.0
    %2156 = vmatpush1.msra.mxu0 0.0
    %2157 = vmatprep.subr.mxu0 0.0
    %2158 = vmatpush1.msra.mxu0 0.0
    %2159 = vmatprep.subr.mxu0 0.0
    %2160 = vmatpush1.msra.mxu0 0.0
    %2161 = vmatprep.subr.mxu0 0.0
    %2162 = vmatpush1.msra.mxu0 0.0
    %2163 = vmatprep.subr.mxu0 0.0
    %2164 = vmatpush1.msra.mxu0 0.0
    %2165 = vmatprep.subr.mxu0 0.0
    %2166 = vmatpush1.msra.mxu0 0.0
    %2167 = vmatprep.subr.mxu0 0.0
    %2168 = vmatpush1.msra.mxu0 0.0
    %2169 = vmatprep.subr.mxu0 0.0
    %2170 = vmatpush1.msra.mxu0 0.0
    %2171 = vmatprep.subr.mxu0 0.0
    %2172 = vmatpush1.msra.mxu0 0.0
    %2173 = vmatprep.subr.mxu0 0.0
    %2174 = vmatpush1.msra.mxu0 0.0
    %2175 = vmatprep.subr.mxu0 0.0
    %2176 = vmatpush1.msra.mxu0 0.0
    %2177 = vmatprep.subr.mxu0 0.0
    %2178 = vmatpush1.msra.mxu0 0.0
    %2179 = vmatprep.subr.mxu0 0.0
    %2180 = vmatpush1.msra.mxu0 0.0
    %2181 = vmatprep.subr.mxu0 0.0
    %2182 = vmatpush1.msra.mxu0 0.0
    %2183 = vmatprep.subr.mxu0 0.0
    %2184 = vmatpush1.msra.mxu0 0.0
    %2185 = vmatprep.subr.mxu0 0.0
    %2186 = vmatpush1.msra.mxu0 0.0
    %2187 = vmatprep.subr.mxu0 0.0
    %2188 = vmatpush1.msra.mxu0 0.0
    %2189 = vmatprep.subr.mxu0 0.0
    %2190 = vmatpush1.msra.mxu0 0.0
    %2191 = vmatprep.subr.mxu0 0.0
    %2192 = vmatpush1.msra.mxu0 0.0
    %2193 = vmatprep.subr.mxu0 0.0
    %2194 = vmatpush1.msra.mxu0 0.0
    %2195 = vmatprep.subr.mxu0 0.0
    %2196 = vmatpush1.msra.mxu0 0.0
    %2197 = vmatprep.subr.mxu0 0.0
    %2198 = vmatpush1.msra.mxu0 0.0
    %2199 = vmatprep.subr.mxu0 0.0
    %2200 = vmatpush1.msra.mxu0 0.0
    %2201 = vmatprep.subr.mxu0 0.0
    %2202 = vmatpush1.msra.mxu0 0.0
    %2203 = vmatprep.subr.mxu0 0.0
    %2204 = vmatpush1.msra.mxu0 0.0
    %2205 = vmatprep.subr.mxu0 0.0
    %2206 = vmatpush1.msra.mxu0 0.0
    %2207 = vmatprep.subr.mxu0 0.0
    %2208 = vmatpush1.msra.mxu0 0.0
    %2209 = vmatprep.mubr.f32.mxu0 0.0
    %2210 = vmatmul.mubr.f32.gmra.mrb[0].mxu0 %v2143
    %v2211 = vpop.f32.mrb[0].mxu0
    %v2212 = vadd.f32 0.0, %v2211
    %v2213 = vpop.f32.mrb[0].mxu0
    %2214 = vdwg.mxu0
    %2216 = vrot.lane.b32.xlu0 %v2045, 32
    %v2217 = vpop.permute.xlu0 %2216
    %v2218 = vsel %vm244, %v2217, 0
    %2220 = vmatprep.subr.mxu0 0.0
    %2221 = vmatpush1.msra.mxu0 %v2134
    %2222 = vmatprep.subr.mxu0 0.0
    %2223 = vmatpush1.msra.mxu0 %v2135
    %2224 = vmatprep.subr.mxu0 0.0
    %2225 = vmatpush1.msra.mxu0 %v2136
    %2226 = vmatprep.subr.mxu0 0.0
    %2227 = vmatpush1.msra.mxu0 %v2137
    %2228 = vmatprep.subr.mxu0 0.0
    %2229 = vmatpush1.msra.mxu0 0.0
    %2230 = vmatprep.subr.mxu0 0.0
    %2231 = vmatpush1.msra.mxu0 0.0
    %2232 = vmatprep.subr.mxu0 0.0
    %2233 = vmatpush1.msra.mxu0 0.0
    %2234 = vmatprep.subr.mxu0 0.0
    %2235 = vmatpush1.msra.mxu0 0.0
    %2236 = vmatprep.subr.mxu0 0.0
    %2237 = vmatpush1.msra.mxu0 0.0
    %2238 = vmatprep.subr.mxu0 0.0
    %2239 = vmatpush1.msra.mxu0 0.0
    %2240 = vmatprep.subr.mxu0 0.0
    %2241 = vmatpush1.msra.mxu0 0.0
    %2242 = vmatprep.subr.mxu0 0.0
    %2243 = vmatpush1.msra.mxu0 0.0
    %2244 = vmatprep.subr.mxu0 0.0
    %2245 = vmatpush1.msra.mxu0 0.0
    %2246 = vmatprep.subr.mxu0 0.0
    %2247 = vmatpush1.msra.mxu0 0.0
    %2248 = vmatprep.subr.mxu0 0.0
    %2249 = vmatpush1.msra.mxu0 0.0
    %2250 = vmatprep.subr.mxu0 0.0
    %2251 = vmatpush1.msra.mxu0 0.0
    %2252 = vmatprep.subr.mxu0 0.0
    %2253 = vmatpush1.msra.mxu0 0.0
    %2254 = vmatprep.subr.mxu0 0.0
    %2255 = vmatpush1.msra.mxu0 0.0
    %2256 = vmatprep.subr.mxu0 0.0
    %2257 = vmatpush1.msra.mxu0 0.0
    %2258 = vmatprep.subr.mxu0 0.0
    %2259 = vmatpush1.msra.mxu0 0.0
    %2260 = vmatprep.subr.mxu0 0.0
    %2261 = vmatpush1.msra.mxu0 0.0
    %2262 = vmatprep.subr.mxu0 0.0
    %2263 = vmatpush1.msra.mxu0 0.0
    %2264 = vmatprep.subr.mxu0 0.0
    %2265 = vmatpush1.msra.mxu0 0.0
    %2266 = vmatprep.subr.mxu0 0.0
    %2267 = vmatpush1.msra.mxu0 0.0
    %2268 = vmatprep.subr.mxu0 0.0
    %2269 = vmatpush1.msra.mxu0 0.0
    %2270 = vmatprep.subr.mxu0 0.0
    %2271 = vmatpush1.msra.mxu0 0.0
    %2272 = vmatprep.subr.mxu0 0.0
    %2273 = vmatpush1.msra.mxu0 0.0
    %2274 = vmatprep.subr.mxu0 0.0
    %2275 = vmatpush1.msra.mxu0 0.0
    %2276 = vmatprep.subr.mxu0 0.0
    %2277 = vmatpush1.msra.mxu0 0.0
    %2278 = vmatprep.subr.mxu0 0.0
    %2279 = vmatpush1.msra.mxu0 0.0
    %2280 = vmatprep.subr.mxu0 0.0
    %2281 = vmatpush1.msra.mxu0 0.0
    %2282 = vmatprep.subr.mxu0 0.0
    %2283 = vmatpush1.msra.mxu0 0.0
    %2284 = vmatprep.mubr.f32.mxu0 0.0
    %2285 = vmatmul.mubr.f32.gmra.mrb[0].mxu0 %v2218
    %v2286 = vpop.f32.mrb[0].mxu0
    %v2287 = vadd.f32 %v2212, %v2286
    %v2288 = vpop.f32.mrb[0].mxu0
    %2289 = vdwg.mxu0
    %v2290 = vld [vmem:[%s12] sm:$0x1]
    %v2292 = vlaneseq
    %v2293 = vshrl.u32 %v2292, 7
    %v2294 = vsub.s32 0, %v2293
    %v2295 = vrot.slane %v2290, %v2294
    %v2297 = vadd.f32 %v2287, %v2295
    %v2298 = vmax.f32 %v2297, 0.0
    %v2299 = vld [vmem:[%s13] sm:$0xff]
    %v2300 = vld [vmem:[%s13 + $0x8] sm:$0xff]
    %v2301 = vld [vmem:[%s13 + $0x10] sm:$0xff]
    %v2302 = vld [vmem:[%s13 + $0x18] sm:$0xff]
    %v2303 = vld [vmem:[#allocation8] sm:$0x1]
    %v2305 = vlaneseq
    %v2306 = vshrl.u32 %v2305, 7
    %v2307 = vsub.s32 0, %v2306
    %v2308 = vrot.slane %v2303, %v2307
    %v2311 = vsel %vm244, %v2298, 0
    %2313 = vmatprep.subr.mxu0 0.0
    %2314 = vmatpush1.msra.mxu0 %v2299
    %2315 = vmatprep.subr.mxu0 0.0
    %2316 = vmatpush1.msra.mxu0 %v2300
    %2317 = vmatprep.subr.mxu0 0.0
    %2318 = vmatpush1.msra.mxu0 %v2301
    %2319 = vmatprep.subr.mxu0 0.0
    %2320 = vmatpush1.msra.mxu0 %v2302
    %2321 = vmatprep.subr.mxu0 0.0
    %2322 = vmatpush1.msra.mxu0 0.0
    %2323 = vmatprep.subr.mxu0 0.0
    %2324 = vmatpush1.msra.mxu0 0.0
    %2325 = vmatprep.subr.mxu0 0.0
    %2326 = vmatpush1.msra.mxu0 0.0
    %2327 = vmatprep.subr.mxu0 0.0
    %2328 = vmatpush1.msra.mxu0 0.0
    %2329 = vmatprep.subr.mxu0 0.0
    %2330 = vmatpush1.msra.mxu0 0.0
    %2331 = vmatprep.subr.mxu0 0.0
    %2332 = vmatpush1.msra.mxu0 0.0
    %2333 = vmatprep.subr.mxu0 0.0
    %2334 = vmatpush1.msra.mxu0 0.0
    %2335 = vmatprep.subr.mxu0 0.0
    %2336 = vmatpush1.msra.mxu0 0.0
    %2337 = vmatprep.subr.mxu0 0.0
    %2338 = vmatpush1.msra.mxu0 0.0
    %2339 = vmatprep.subr.mxu0 0.0
    %2340 = vmatpush1.msra.mxu0 0.0
    %2341 = vmatprep.subr.mxu0 0.0
    %2342 = vmatpush1.msra.mxu0 0.0
    %2343 = vmatprep.subr.mxu0 0.0
    %2344 = vmatpush1.msra.mxu0 0.0
    %2345 = vmatprep.subr.mxu0 0.0
    %2346 = vmatpush1.msra.mxu0 0.0
    %2347 = vmatprep.subr.mxu0 0.0
    %2348 = vmatpush1.msra.mxu0 0.0
    %2349 = vmatprep.subr.mxu0 0.0
    %2350 = vmatpush1.msra.mxu0 0.0
    %2351 = vmatprep.subr.mxu0 0.0
    %2352 = vmatpush1.msra.mxu0 0.0
    %2353 = vmatprep.subr.mxu0 0.0
    %2354 = vmatpush1.msra.mxu0 0.0
    %2355 = vmatprep.subr.mxu0 0.0
    %2356 = vmatpush1.msra.mxu0 0.0
    %2357 = vmatprep.subr.mxu0 0.0
    %2358 = vmatpush1.msra.mxu0 0.0
    %2359 = vmatprep.subr.mxu0 0.0
    %2360 = vmatpush1.msra.mxu0 0.0
    %2361 = vmatprep.subr.mxu0 0.0
    %2362 = vmatpush1.msra.mxu0 0.0
    %2363 = vmatprep.subr.mxu0 0.0
    %2364 = vmatpush1.msra.mxu0 0.0
    %2365 = vmatprep.subr.mxu0 0.0
    %2366 = vmatpush1.msra.mxu0 0.0
    %2367 = vmatprep.subr.mxu0 0.0
    %2368 = vmatpush1.msra.mxu0 0.0
    %2369 = vmatprep.subr.mxu0 0.0
    %2370 = vmatpush1.msra.mxu0 0.0
    %2371 = vmatprep.subr.mxu0 0.0
    %2372 = vmatpush1.msra.mxu0 0.0
    %2373 = vmatprep.subr.mxu0 0.0
    %2374 = vmatpush1.msra.mxu0 0.0
    %2375 = vmatprep.subr.mxu0 0.0
    %2376 = vmatpush1.msra.mxu0 0.0
    %2377 = vmatprep.mubr.f32.mxu0 0.0
    %2378 = vmatmul.mubr.f32.gmra.mrb[0].mxu0 %v2311
    %v2379 = vpop.f32.mrb[0].mxu0
    %v2380 = vadd.f32 %v2308, %v2379
    %v2381 = vpop.f32.mrb[0].mxu0
    %2382 = vdwg.mxu0
    %v2383 = vlaneseq
    %v2384 = vand.u32 %v2383, 127
    %vm2385 = vcmp.ge.s32.totalorder %v2384, 4
    %v2386 = vmax.f32 %v2380, -20.0
    %v2387 = vmin.f32 %v2386, 2.0
    %v2388 = vsel %vm2385, %v2387, %v2380
    %2389 = vst.msk [vmem:[%s15] sm:$0xff] %vm101, %v2388
    // Predicated region
    $region74: #{network_forward.1} parent=1 // pred_check
      _
    $region75: #{network_forward.1} parent=1 // pred_check_branch
      %2391 = sbr.rel (0) target = $region77
    $region76: #{network_forward.1} parent=1 // pred_region
      _
    $region77: #{network_forward.1} parent=1 // pred_fallthru
      _
    // Predicated region
    $region78: #{network_forward.1} parent=1 // pred_check
      _
    $region79: #{network_forward.1} parent=1 // pred_check_branch
      %2393 = sbr.rel (0) target = $region81
    $region80: #{network_forward.1} parent=1 // pred_region
      _
    $region81: #{network_forward.1} parent=1 // pred_fallthru
      _
    %2394 = vsyncpa [#allocation5], 1
    %2395 = vsyncpa [#allocation7], 1

</llo_original>
